<compile_context>
chip_gen: v6e
topology: v6e:2x2x1
jax: 0.10.0
libtpu: 0.0.40
codegen_flags: <defaults>
</compile_context>

<pallas_src>
import functools

import jax
import jax.numpy as jnp
from jax.experimental import pallas as pl
from jax.experimental.pallas import tpu as pltpu


# ----------------------------------------------------------------------------
# helpers
# ----------------------------------------------------------------------------
def _round_up(x, m):
    return ((x + m - 1) // m) * m


def _m_tile(M, pref=256):
    """Row-tile: prefer >=2 grid points (v7x has 2 TCs), stay sublane-aligned."""
    for t in (pref, 128, 64, 32, 16):
        if M % t == 0 and M // t >= 2:
            return t
    return M


def _n_tile(N):
    """Column-tile: single tile for small N (avoids re-running the fused LN
    prologue per N tile); otherwise wide MXU-friendly tiles."""
    if N <= 512:
        return N
    for t in (512, 256, 128):
        if N % t == 0:
            return t
    return N


# ----------------------------------------------------------------------------
# Pallas kernels
# ----------------------------------------------------------------------------
def _patch_embed_kernel(x_ref, w_ref, b_ref, pos_ref, o_ref):
    # x:[tm,Kp_pad] f32, w:[Kp_pad,D] bf16 -> o:[tm,D] f32 (bias + pos fused)
    y = jnp.dot(x_ref[...].astype(jnp.bfloat16), w_ref[...],
                preferred_element_type=jnp.float32)
    o_ref[...] = y + b_ref[...] + pos_ref[...]


def patch_embed(patches_flat, w, b, pos_flat):
    """Conv2d(k=p, s=p) as a single flattened matmul; bias + pos-embed fused."""
    M, Kp = patches_flat.shape
    D = w.shape[1]
    tm = _m_tile(M)
    return pl.pallas_call(
        _patch_embed_kernel,
        grid=(M // tm,),
        in_specs=[
            pl.BlockSpec((tm, Kp), lambda i: (i, 0)),
            pl.BlockSpec((Kp, D), lambda i: (0, 0)),
            pl.BlockSpec((1, D), lambda i: (0, 0)),
            pl.BlockSpec((tm, D), lambda i: (i, 0)),
        ],
        out_specs=pl.BlockSpec((tm, D), lambda i: (i, 0)),
        out_shape=jax.ShapeDtypeStruct((M, D), jnp.float32),
        compiler_params=pltpu.CompilerParams(dimension_semantics=("parallel",)),
    )(patches_flat, w, b, pos_flat)


def _ln_linear_kernel(x_ref, g_ref, bn_ref, w_ref, b_ref, o_ref, *, eps, activation):
    # fused: LayerNorm (fp32 stats) -> bf16 matmul (fp32 acc) -> bias -> GELU -> bf16
    x = x_ref[...]                                          # [tm, K] f32
    mu = jnp.mean(x, axis=-1, keepdims=True)
    xc = x - mu
    var = jnp.mean(xc * xc, axis=-1, keepdims=True)
    xn = xc * jax.lax.rsqrt(var + eps) * g_ref[...] + bn_ref[...]
    y = jnp.dot(xn.astype(jnp.bfloat16), w_ref[...],
                preferred_element_type=jnp.float32)         # [tm, tn] f32
    y = y + b_ref[...]
    if activation == "gelu":
        # tanh GELU (EUP) instead of PyTorch's exact erf GELU: perf trade-off,
        # tolerance-level numerical deviation from the reference.
        y = jax.nn.gelu(y, approximate=True)
    o_ref[...] = y.astype(o_ref.dtype)


def ln_linear(x, ln_g, ln_b, w, b, activation=None, eps=1e-6, out_dtype=jnp.bfloat16):
    """act(LayerNorm(x) @ w + b) with LN fused into the matmul prologue."""
    M, K = x.shape
    N = w.shape[1]
    tm, tn = _m_tile(M), _n_tile(N)
    return pl.pallas_call(
        functools.partial(_ln_linear_kernel, eps=eps, activation=activation),
        grid=(M // tm, N // tn),
        in_specs=[
            pl.BlockSpec((tm, K), lambda i, j: (i, 0)),
            pl.BlockSpec((1, K), lambda i, j: (0, 0)),
            pl.BlockSpec((1, K), lambda i, j: (0, 0)),
            pl.BlockSpec((K, tn), lambda i, j: (0, j)),
            pl.BlockSpec((1, tn), lambda i, j: (0, j)),
        ],
        out_specs=pl.BlockSpec((tm, tn), lambda i, j: (i, j)),
        out_shape=jax.ShapeDtypeStruct((M, N), out_dtype),
        compiler_params=pltpu.CompilerParams(
            dimension_semantics=("parallel", "parallel")),
    )(x, ln_g, ln_b, w, b)


def _linear_scale_add_kernel(res_ref, x_ref, w_ref, b_ref, g_ref, o_ref):
    # fused: bf16 matmul (fp32 acc) -> bias -> LayerScale -> residual add (fp32)
    y = jnp.dot(x_ref[...].astype(jnp.bfloat16), w_ref[...],
                preferred_element_type=jnp.float32)
    y = y + b_ref[...]
    o_ref[...] = res_ref[...] + y * g_ref[...]


def linear_scale_add(res, x, w, b, gamma):
    """res + gamma * (x @ w + b); residual buffer aliased in place."""
    M, K = x.shape
    N = w.shape[1]
    tm, tn = _m_tile(M), _n_tile(N)
    return pl.pallas_call(
        _linear_scale_add_kernel,
        grid=(M // tm, N // tn),
        in_specs=[
            pl.BlockSpec((tm, tn), lambda i, j: (i, j)),    # residual (aliased)
            pl.BlockSpec((tm, K), lambda i, j: (i, 0)),
            pl.BlockSpec((K, tn), lambda i, j: (0, j)),
            pl.BlockSpec((1, tn), lambda i, j: (0, j)),
            pl.BlockSpec((1, tn), lambda i, j: (0, j)),
        ],
        out_specs=pl.BlockSpec((tm, tn), lambda i, j: (i, j)),
        out_shape=jax.ShapeDtypeStruct((M, N), jnp.float32),
        input_output_aliases={0: 0},
        compiler_params=pltpu.CompilerParams(
            dimension_semantics=("parallel", "parallel")),
    )(res, x, w, b, gamma)


def _attn_proj_kernel(res_ref, qkv_ref, pw_ref, pb_ref, ls_ref, o_ref,
                      *, dim, heads, dh, seq):
    # Fully fused attention branch for one batch element:
    #   softmax(q k^T) v  ->  @ proj_w (per-head accumulation, no concat)
    #   -> + proj_b -> * LayerScale -> + residual.
    # qkv block: [1, S_pad, 3D] bf16 (q|k|v column layout, heads-major per chunk).
    # 1/sqrt(dh) is already folded into the qkv weights at init.
    s_pad = qkv_ref.shape[1]
    qkv = qkv_ref[0]                                        # [S_pad, 3D] bf16
    # mask padded key columns (tokens >= seq are zero padding)
    kmask = jax.lax.broadcasted_iota(jnp.int32, (s_pad, s_pad), 1) < seq
    acc = None                                              # [S_pad, D] f32
    for h in range(heads):
        q = qkv[:, h * dh:(h + 1) * dh]
        k = qkv[:, dim + h * dh: dim + (h + 1) * dh]
        v = qkv[:, 2 * dim + h * dh: 2 * dim + (h + 1) * dh]
        # contract Dh of both operands: K consumed in native layout, no k.T
        s = jax.lax.dot_general(
            q, k, dimension_numbers=(((1,), (1,)), ((), ())),
            preferred_element_type=jnp.float32)             # [S_pad, S_pad] f32
        s = jnp.where(kmask, s, jnp.float32(-1e30))
        s = s - jnp.max(s, axis=-1, keepdims=True)
        p = jnp.exp(s)
        # approx reciprocal: ~1e-3..1e-4 rel. deviation from exact division.
        p = p * pl.reciprocal(jnp.sum(p, axis=-1, keepdims=True), approx=True)
        ctx = jnp.dot(p.astype(jnp.bfloat16), v,
                      preferred_element_type=jnp.float32)   # [S_pad, Dh] f32
        contrib = jnp.dot(ctx.astype(jnp.bfloat16),
                          pw_ref[h * dh:(h + 1) * dh, :],
                          preferred_element_type=jnp.float32)  # [S_pad, D] f32
        acc = contrib if acc is None else acc + contrib
    o_ref[0] = res_ref[0] + (acc + pb_ref[...]) * ls_ref[...]


def attention_proj_residual(res, qkv, pw, pb, ls, *, dim, heads, seq):
    """res:[B,S_pad,D] f32, qkv:[B,S_pad,3D] bf16 -> res + ls*(attn(qkv)@pw + pb)."""
    B, s_pad, three_d = qkv.shape
    dh = dim // heads
    return pl.pallas_call(
        functools.partial(_attn_proj_kernel, dim=dim, heads=heads, dh=dh, seq=seq),
        grid=(B,),
        in_specs=[
            pl.BlockSpec((1, s_pad, dim), lambda i: (i, 0, 0)),      # residual (aliased)
            pl.BlockSpec((1, s_pad, three_d), lambda i: (i, 0, 0)),
            pl.BlockSpec((dim, dim), lambda i: (0, 0)),
            pl.BlockSpec((1, dim), lambda i: (0, 0)),
            pl.BlockSpec((1, dim), lambda i: (0, 0)),
        ],
        out_specs=pl.BlockSpec((1, s_pad, dim), lambda i: (i, 0, 0)),
        out_shape=jax.ShapeDtypeStruct((B, s_pad, dim), jnp.float32),
        input_output_aliases={0: 0},
        compiler_params=pltpu.CompilerParams(dimension_semantics=("parallel",)),
    )(res, qkv, pw, pb, ls)


# ----------------------------------------------------------------------------
# Glue: patch extraction + model definition (pure-JAX reshapes only)
# ----------------------------------------------------------------------------
def patchify(x, p, kp_pad):
    """NCHW -> [B, N_patches, Kp_pad] with (C, kh, kw) flattening order
    (matches Conv2d(kernel=p, stride=p) + flatten(2).transpose(1,2)),
    zero-padded on the contraction dim to kp_pad (lane-dense matmul)."""
    B, C, H, W = x.shape
    hp, wp = H // p, W // p
    x = x.reshape(B, C, hp, p, wp, p)
    x = x.transpose(0, 2, 4, 1, 3, 5)                      # [B, hp, wp, C, p, p]
    flat = x.reshape(B, hp * wp, C * p * p)
    kp = C * p * p
    if kp_pad > kp:
        flat = jnp.pad(flat, ((0, 0), (0, 0), (0, kp_pad - kp)))
    return flat


def init_params(key, *, in_chans, patch, dim, depth, heads, mlp_ratio, n_tokens):
    keys = iter(jax.random.split(key, 8 + depth * 6))

    def nrm(k, shp, std=0.02):
        return std * jax.random.normal(k, shp)

    hidden = dim * mlp_ratio
    wdt = jnp.bfloat16  # matmul weights stored bf16 (fp32 accumulation in-kernel)
    kp = in_chans * patch * patch
    kp_pad = _round_up(kp, 128)
    scale = (dim // heads) ** -0.5

    # TODO(synk): torch.hub pretrained DINOv2 weights are not loadable here;
    # synthetic random init with matching structure is used instead.
    patch_w = nrm(next(keys), (kp, dim))
    patch_w = jnp.pad(patch_w, ((0, kp_pad - kp), (0, 0)))  # padded input cols hit zeros
    params = {
        # patch embed conv weight [D, C, p, p] stored as matmul weight [Kp_pad, D]
        "patch_w": patch_w.astype(wdt),
        "patch_b": jnp.zeros((1, dim), jnp.float32),
        "cls_token": nrm(next(keys), (1, 1, dim)),
        "pos_embed": nrm(next(keys), (1, n_tokens, dim)),
        "norm_w": jnp.ones((1, dim), jnp.float32),
        "norm_b": jnp.zeros((1, dim), jnp.float32),
        "blocks": [],
    }
    for _ in range(depth):
        # fold the attention 1/sqrt(dh) scale into the q third of qkv_w / qkv_b
        qkv_w = nrm(next(keys), (dim, 3 * dim)).at[:, :dim].multiply(scale)
        qkv_b = jnp.zeros((1, 3 * dim), jnp.float32).at[:, :dim].multiply(scale)
        blk = {
            "norm1_w": jnp.ones((1, dim), jnp.float32),
            "norm1_b": jnp.zeros((1, dim), jnp.float32),
            "qkv_w": qkv_w.astype(wdt),
            "qkv_b": qkv_b,
            "proj_w": nrm(next(keys), (dim, dim)).astype(wdt),
            "proj_b": jnp.zeros((1, dim), jnp.float32),
            "ls1": jnp.full((1, dim), 1.0, jnp.float32),    # DINOv2 init_values=1.0
            "norm2_w": jnp.ones((1, dim), jnp.float32),
            "norm2_b": jnp.zeros((1, dim), jnp.float32),
            "fc1_w": nrm(next(keys), (dim, hidden)).astype(wdt),
            "fc1_b": jnp.zeros((1, hidden), jnp.float32),
            "fc2_w": nrm(next(keys), (hidden, dim)).astype(wdt),
            "fc2_b": jnp.zeros((1, dim), jnp.float32),
            "ls2": jnp.full((1, dim), 1.0, jnp.float32),
        }
        params["blocks"].append(blk)
    return params


def dinov2_forward(params, x, *, patch, dim, heads):
    """params: arrays only (jit-traced); patch/dim/heads: static Python ints."""
    B, C = x.shape[0], x.shape[1]
    kp_pad = params["patch_w"].shape[0]

    # --- patch embed: one flattened matmul; bias + pos-embed fused in kernel ---
    patches = patchify(x, patch, kp_pad)                   # [B, N, Kp_pad]
    N = patches.shape[1]
    S = N + 1
    pos_patch = params["pos_embed"][0, 1:, :]              # [N, D]
    pos_flat = jnp.broadcast_to(pos_patch[None], (B, N, dim)).reshape(B * N, dim)
    tok = patch_embed(patches.reshape(B * N, kp_pad),
                      params["patch_w"], params["patch_b"], pos_flat)
    tok = tok.reshape(B, N, dim)

    # --- prepend CLS (+ its pos-embed); pad token dim to a multiple of 16
    #     (native bf16 sublane tile for the bf16 intermediates) ---
    cls = params["cls_token"] + params["pos_embed"][:, 0:1, :]   # [1, 1, D]
    cls = jnp.broadcast_to(cls, (B, 1, dim))
    xt = jnp.concatenate([cls, tok], axis=1)               # [B, S, D]
    s_pad = _round_up(S, 16)
    xt = jnp.pad(xt, ((0, 0), (0, s_pad - S), (0, 0)))     # zero-pad tokens
    xf = xt.reshape(B * s_pad, dim)                        # fp32 residual stream

    # --- transformer blocks (4 fused pallas_calls per block) ---
    for blk in params["blocks"]:
        # attention branch: LN+QKV fused (bf16 out); attn+proj+LayerScale+residual fused
        qkv = ln_linear(xf, blk["norm1_w"], blk["norm1_b"],
                        blk["qkv_w"], blk["qkv_b"])                    # bf16 [M, 3D]
        xf = attention_proj_residual(
            xf.reshape(B, s_pad, dim), qkv.reshape(B, s_pad, 3 * dim),
            blk["proj_w"], blk["proj_b"], blk["ls1"],
            dim=dim, heads=heads, seq=S).reshape(B * s_pad, dim)

        # MLP branch: LN+fc1+GELU fused (bf16 out); fc2+LayerScale+residual fused
        h = ln_linear(xf, blk["norm2_w"], blk["norm2_b"],
                      blk["fc1_w"], blk["fc1_b"], activation="gelu")   # bf16 [M, 4D]
        xf = linear_scale_add(xf, h, blk["fc2_w"], blk["fc2_b"], blk["ls2"])

    # --- final norm on CLS rows only (LN is row-wise: slice-then-norm ==
    #     norm-then-slice).  Done in plain jnp: a pallas_call launch costs far
    #     more than normalizing B x D floats. ---
    cls_rows = xf.reshape(B, s_pad, dim)[:, 0, :]          # [B, D]
    mu = jnp.mean(cls_rows, axis=-1, keepdims=True)
    xc = cls_rows - mu
    var = jnp.mean(xc * xc, axis=-1, keepdims=True)
    return xc * jax.lax.rsqrt(var + 1e-6) * params["norm_w"] + params["norm_b"]


# ----------------------------------------------------------------------------
if __name__ == "__main__":
    # small config consistent with the module: patch-14 ViT, batch=2, 3x28x28
    B, C, H, W = 2, 3, 28, 28
    PATCH, DIM, DEPTH, HEADS, MLP_RATIO = 14, 128, 2, 2, 4
    N_TOKENS = 1 + (H // PATCH) * (W // PATCH)

    key = jax.random.PRNGKey(0)
    kx, kp = jax.random.split(key)
    x = jax.random.normal(kx, (B, C, H, W), dtype=jnp.float32)
    params = init_params(
        kp, in_chans=C, patch=PATCH, dim=DIM, depth=DEPTH,
        heads=HEADS, mlp_ratio=MLP_RATIO, n_tokens=N_TOKENS,
    )

    # static model config is bound via partial so only arrays are traced by jit
    fwd = jax.jit(functools.partial(dinov2_forward, patch=PATCH, dim=DIM, heads=HEADS))
    out = jax.block_until_ready(fwd(params, x))
    assert out.shape == (B, DIM), out.shape
    assert bool(jnp.all(jnp.isfinite(out)))
    print("KERNEL_OK")
</pallas_src>

<mosaic_0001>
module attributes {stable_mosaic.version = 11 : i64} {
  func.func @_attn_proj_kernel(%arg0: i32, %arg1: memref<1x16x128xf32, #tpu.memory_space<vmem>>, %arg2: memref<1x16x384xbf16, #tpu.memory_space<vmem>>, %arg3: memref<128x128xbf16, #tpu.memory_space<vmem>>, %arg4: memref<1x128xf32, #tpu.memory_space<vmem>>, %arg5: memref<1x128xf32, #tpu.memory_space<vmem>>, %arg6: memref<1x16x128xf32, #tpu.memory_space<vmem>>) attributes {dimension_semantics = [#tpu.dimension_semantics<parallel>], iteration_bounds = array<i64: 2>, scalar_prefetch = 0 : i64, scratch_operands = 0 : i64, tpu.core_type = #tpu.core_type<tc>, window_params = [{transform_indices = @transform_0, window_bounds = array<i64: 1, 16, 128>}, {transform_indices = @transform_1, window_bounds = array<i64: 1, 16, 384>}, {pipeline_mode = #tpu.pipeline_mode<synchronous>, transform_indices = @transform_2, window_bounds = array<i64: 128, 128>}, {pipeline_mode = #tpu.pipeline_mode<synchronous>, transform_indices = @transform_3, window_bounds = array<i64: 1, 128>}, {pipeline_mode = #tpu.pipeline_mode<synchronous>, transform_indices = @transform_4, window_bounds = array<i64: 1, 128>}, {transform_indices = @transform_5, window_bounds = array<i64: 1, 16, 128>}]} {
    %c0 = arith.constant 0 : index
    %c0_0 = arith.constant 0 : index
    %c0_1 = arith.constant 0 : index
    %0 = vector.load %arg2[%c0, %c0_0, %c0_1] : memref<1x16x384xbf16, #tpu.memory_space<vmem>>, vector<1x16x384xbf16>
    %1 = vector.shape_cast %0 : vector<1x16x384xbf16> to vector<16x384xbf16>
    %2 = tpu.iota {dimensions = array<i32: 1>} : vector<16x16xi32>
    %c5_i32 = arith.constant 5 : i32
    %3 = vector.broadcast %c5_i32 : i32 to vector<16x16xi32>
    %4 = arith.cmpi slt, %2, %3 : vector<16x16xi32>
    %5 = vector.extract_strided_slice %1 {offsets = [0, 0], sizes = [16, 64], strides = [1, 1]} : vector<16x384xbf16> to vector<16x64xbf16>
    %6 = vector.extract_strided_slice %1 {offsets = [0, 128], sizes = [16, 64], strides = [1, 1]} : vector<16x384xbf16> to vector<16x64xbf16>
    %7 = vector.extract_strided_slice %1 {offsets = [0, 256], sizes = [16, 64], strides = [1, 1]} : vector<16x384xbf16> to vector<16x64xbf16>
    %cst = arith.constant dense<0.000000e+00> : vector<16x16xf32>
    %8 = tpu.matmul %5, %6, %cst {dimension_numbers = #tpu.dot_dimension_numbers<[1], [1], [0], [0], [0, 0, 1, 0], [], []>} : vector<16x64xbf16>, vector<16x64xbf16>, vector<16x16xf32> -> vector<16x16xf32>
    %cst_2 = arith.constant -1.000000e+30 : f32
    %9 = vector.broadcast %cst_2 : f32 to vector<16x16xf32>
    %10 = arith.select %4, %8, %9 : vector<16x16xi1>, vector<16x16xf32>
    %cst_3 = arith.constant dense<0xFF800000> : vector<16xf32>
    %11 = vector.multi_reduction <maximumf>, %10, %cst_3 [1] : vector<16x16xf32> to vector<16xf32>
    %12 = vector.shape_cast %11 : vector<16xf32> to vector<16x1xf32>
    %13 = vector.broadcast %12 : vector<16x1xf32> to vector<16x16xf32>
    %14 = arith.subf %10, %13 : vector<16x16xf32>
    %15 = math.exp %14 : vector<16x16xf32>
    %cst_4 = arith.constant dense<0.000000e+00> : vector<16xf32>
    %16 = vector.multi_reduction <add>, %15, %cst_4 [1] : vector<16x16xf32> to vector<16xf32>
    %17 = vector.shape_cast %16 : vector<16xf32> to vector<16x1xf32>
    %18 = tpu.reciprocal %17 {approx = true} : vector<16x1xf32> -> vector<16x1xf32>
    %19 = vector.broadcast %18 : vector<16x1xf32> to vector<16x16xf32>
    %20 = arith.mulf %15, %19 : vector<16x16xf32>
    %21 = arith.truncf %20 : vector<16x16xf32> to vector<16x16xbf16>
    %cst_5 = arith.constant dense<0.000000e+00> : vector<16x64xf32>
    %22 = tpu.matmul %21, %7, %cst_5 {dimension_numbers = #tpu.dot_dimension_numbers<[1], [0], [0], [1], [0, 0, 1, 1], [], []>} : vector<16x16xbf16>, vector<16x64xbf16>, vector<16x64xf32> -> vector<16x64xf32>
    %23 = arith.truncf %22 : vector<16x64xf32> to vector<16x64xbf16>
    %c0_6 = arith.constant 0 : index
    %c0_7 = arith.constant 0 : index
    %24 = vector.load %arg3[%c0_6, %c0_7] : memref<128x128xbf16, #tpu.memory_space<vmem>>, vector<64x128xbf16>
    %cst_8 = arith.constant dense<0.000000e+00> : vector<16x128xf32>
    %25 = tpu.matmul %23, %24, %cst_8 {dimension_numbers = #tpu.dot_dimension_numbers<[1], [0], [0], [1], [0, 0, 1, 1], [], []>} : vector<16x64xbf16>, vector<64x128xbf16>, vector<16x128xf32> -> vector<16x128xf32>
    %26 = vector.extract_strided_slice %1 {offsets = [0, 64], sizes = [16, 64], strides = [1, 1]} : vector<16x384xbf16> to vector<16x64xbf16>
    %27 = vector.extract_strided_slice %1 {offsets = [0, 192], sizes = [16, 64], strides = [1, 1]} : vector<16x384xbf16> to vector<16x64xbf16>
    %28 = vector.extract_strided_slice %1 {offsets = [0, 320], sizes = [16, 64], strides = [1, 1]} : vector<16x384xbf16> to vector<16x64xbf16>
    %cst_9 = arith.constant dense<0.000000e+00> : vector<16x16xf32>
    %29 = tpu.matmul %26, %27, %cst_9 {dimension_numbers = #tpu.dot_dimension_numbers<[1], [1], [0], [0], [0, 0, 1, 0], [], []>} : vector<16x64xbf16>, vector<16x64xbf16>, vector<16x16xf32> -> vector<16x16xf32>
    %cst_10 = arith.constant -1.000000e+30 : f32
    %30 = vector.broadcast %cst_10 : f32 to vector<16x16xf32>
    %31 = arith.select %4, %29, %30 : vector<16x16xi1>, vector<16x16xf32>
    %cst_11 = arith.constant dense<0xFF800000> : vector<16xf32>
    %32 = vector.multi_reduction <maximumf>, %31, %cst_11 [1] : vector<16x16xf32> to vector<16xf32>
    %33 = vector.shape_cast %32 : vector<16xf32> to vector<16x1xf32>
    %34 = vector.broadcast %33 : vector<16x1xf32> to vector<16x16xf32>
    %35 = arith.subf %31, %34 : vector<16x16xf32>
    %36 = math.exp %35 : vector<16x16xf32>
    %cst_12 = arith.constant dense<0.000000e+00> : vector<16xf32>
    %37 = vector.multi_reduction <add>, %36, %cst_12 [1] : vector<16x16xf32> to vector<16xf32>
    %38 = vector.shape_cast %37 : vector<16xf32> to vector<16x1xf32>
    %39 = tpu.reciprocal %38 {approx = true} : vector<16x1xf32> -> vector<16x1xf32>
    %40 = vector.broadcast %39 : vector<16x1xf32> to vector<16x16xf32>
    %41 = arith.mulf %36, %40 : vector<16x16xf32>
    %42 = arith.truncf %41 : vector<16x16xf32> to vector<16x16xbf16>
    %cst_13 = arith.constant dense<0.000000e+00> : vector<16x64xf32>
    %43 = tpu.matmul %42, %28, %cst_13 {dimension_numbers = #tpu.dot_dimension_numbers<[1], [0], [0], [1], [0, 0, 1, 1], [], []>} : vector<16x16xbf16>, vector<16x64xbf16>, vector<16x64xf32> -> vector<16x64xf32>
    %44 = arith.truncf %43 : vector<16x64xf32> to vector<16x64xbf16>
    %c64 = arith.constant 64 : index
    %c0_14 = arith.constant 0 : index
    %45 = vector.load %arg3[%c64, %c0_14] : memref<128x128xbf16, #tpu.memory_space<vmem>>, vector<64x128xbf16>
    %cst_15 = arith.constant dense<0.000000e+00> : vector<16x128xf32>
    %46 = tpu.matmul %44, %45, %cst_15 {dimension_numbers = #tpu.dot_dimension_numbers<[1], [0], [0], [1], [0, 0, 1, 1], [], []>} : vector<16x64xbf16>, vector<64x128xbf16>, vector<16x128xf32> -> vector<16x128xf32>
    %47 = arith.addf %25, %46 : vector<16x128xf32>
    %c0_16 = arith.constant 0 : index
    %c0_17 = arith.constant 0 : index
    %c0_18 = arith.constant 0 : index
    %48 = vector.load %arg1[%c0_16, %c0_17, %c0_18] : memref<1x16x128xf32, #tpu.memory_space<vmem>>, vector<1x16x128xf32>
    %49 = vector.shape_cast %48 : vector<1x16x128xf32> to vector<16x128xf32>
    %c0_19 = arith.constant 0 : index
    %c0_20 = arith.constant 0 : index
    %50 = vector.load %arg4[%c0_19, %c0_20] : memref<1x128xf32, #tpu.memory_space<vmem>>, vector<1x128xf32>
    %51 = vector.broadcast %50 : vector<1x128xf32> to vector<16x128xf32>
    %52 = arith.addf %47, %51 : vector<16x128xf32>
    %c0_21 = arith.constant 0 : index
    %c0_22 = arith.constant 0 : index
    %53 = vector.load %arg5[%c0_21, %c0_22] : memref<1x128xf32, #tpu.memory_space<vmem>>, vector<1x128xf32>
    %54 = vector.broadcast %53 : vector<1x128xf32> to vector<16x128xf32>
    %55 = arith.mulf %52, %54 : vector<16x128xf32>
    %56 = arith.addf %49, %55 : vector<16x128xf32>
    %c0_23 = arith.constant 0 : index
    %c0_24 = arith.constant 0 : index
    %c0_25 = arith.constant 0 : index
    %57 = vector.load %arg6[%c0_23, %c0_24, %c0_25] : memref<1x16x128xf32, #tpu.memory_space<vmem>>, vector<1x16x128xf32>
    %58 = vector.shape_cast %57 : vector<1x16x128xf32> to vector<16x128xf32>
    %59 = vector.shape_cast %56 : vector<16x128xf32> to vector<1x16x128xf32>
    tpu.vector_store %arg6[%c0_23, %c0_24, %c0_25], %59 {strides = array<i32>} : memref<1x16x128xf32, #tpu.memory_space<vmem>>, vector<1x16x128xf32>,
    return
  }
  func.func @transform_0(%arg0: i32) -> (i32, i32, i32) {
    %c0_i32 = arith.constant 0 : i32
    %c0_i32_0 = arith.constant 0 : i32
    %c0_i32_1 = arith.constant 0 : i32
    return %arg0, %c0_i32, %c0_i32_0 : i32, i32, i32
  }
  func.func @transform_1(%arg0: i32) -> (i32, i32, i32) {
    %c0_i32 = arith.constant 0 : i32
    %c0_i32_0 = arith.constant 0 : i32
    %c0_i32_1 = arith.constant 0 : i32
    return %arg0, %c0_i32, %c0_i32_0 : i32, i32, i32
  }
  func.func @transform_2(%arg0: i32) -> (i32, i32) {
    %c0_i32 = arith.constant 0 : i32
    %c0_i32_0 = arith.constant 0 : i32
    %c0_i32_1 = arith.constant 0 : i32
    return %c0_i32, %c0_i32_0 : i32, i32
  }
  func.func @transform_3(%arg0: i32) -> (i32, i32) {
    %c0_i32 = arith.constant 0 : i32
    %c0_i32_0 = arith.constant 0 : i32
    %c0_i32_1 = arith.constant 0 : i32
    return %c0_i32, %c0_i32_0 : i32, i32
  }
  func.func @transform_4(%arg0: i32) -> (i32, i32) {
    %c0_i32 = arith.constant 0 : i32
    %c0_i32_0 = arith.constant 0 : i32
    %c0_i32_1 = arith.constant 0 : i32
    return %c0_i32, %c0_i32_0 : i32, i32
  }
  func.func @transform_5(%arg0: i32) -> (i32, i32, i32) {
    %c0_i32 = arith.constant 0 : i32
    %c0_i32_0 = arith.constant 0 : i32
    %c0_i32_1 = arith.constant 0 : i32
    return %arg0, %c0_i32, %c0_i32_0 : i32, i32, i32
  }
}

module attributes {stable_mosaic.version = 11 : i64} {
  func.func @_patch_embed_kernel(%arg0: i32, %arg1: memref<8x640xf32, #tpu.memory_space<vmem>>, %arg2: memref<640x128xbf16, #tpu.memory_space<vmem>>, %arg3: memref<1x128xf32, #tpu.memory_space<vmem>>, %arg4: memref<8x128xf32, #tpu.memory_space<vmem>>, %arg5: memref<8x128xf32, #tpu.memory_space<vmem>>) attributes {dimension_semantics = [#tpu.dimension_semantics<parallel>], iteration_bounds = array<i64: 1>, scalar_prefetch = 0 : i64, scratch_operands = 0 : i64, tpu.core_type = #tpu.core_type<tc>, window_params = [{transform_indices = @transform_0, window_bounds = array<i64: 8, 640>}, {pipeline_mode = #tpu.pipeline_mode<synchronous>, transform_indices = @transform_1, window_bounds = array<i64: 640, 128>}, {pipeline_mode = #tpu.pipeline_mode<synchronous>, transform_indices = @transform_2, window_bounds = array<i64: 1, 128>}, {transform_indices = @transform_3, window_bounds = array<i64: 8, 128>}, {transform_indices = @transform_4, window_bounds = array<i64: 8, 128>}]} {
    %c0 = arith.constant 0 : index
    %c0_0 = arith.constant 0 : index
    %0 = vector.load %arg1[%c0, %c0_0] : memref<8x640xf32, #tpu.memory_space<vmem>>, vector<8x640xf32>
    %1 = arith.truncf %0 : vector<8x640xf32> to vector<8x640xbf16>
    %c0_1 = arith.constant 0 : index
    %c0_2 = arith.constant 0 : index
    %2 = vector.load %arg2[%c0_1, %c0_2] : memref<640x128xbf16, #tpu.memory_space<vmem>>, vector<640x128xbf16>
    %cst = arith.constant dense<0.000000e+00> : vector<8x128xf32>
    %3 = tpu.matmul %1, %2, %cst {dimension_numbers = #tpu.dot_dimension_numbers<[1], [0], [0], [1], [0, 0, 1, 1], [], []>} : vector<8x640xbf16>, vector<640x128xbf16>, vector<8x128xf32> -> vector<8x128xf32>
    %c0_3 = arith.constant 0 : index
    %c0_4 = arith.constant 0 : index
    %4 = vector.load %arg3[%c0_3, %c0_4] : memref<1x128xf32, #tpu.memory_space<vmem>>, vector<1x128xf32>
    %5 = vector.broadcast %4 : vector<1x128xf32> to vector<8x128xf32>
    %6 = arith.addf %3, %5 : vector<8x128xf32>
    %c0_5 = arith.constant 0 : index
    %c0_6 = arith.constant 0 : index
    %7 = vector.load %arg4[%c0_5, %c0_6] : memref<8x128xf32, #tpu.memory_space<vmem>>, vector<8x128xf32>
    %8 = arith.addf %6, %7 : vector<8x128xf32>
    %c0_7 = arith.constant 0 : index
    %c0_8 = arith.constant 0 : index
    %9 = vector.load %arg5[%c0_7, %c0_8] : memref<8x128xf32, #tpu.memory_space<vmem>>, vector<8x128xf32>
    tpu.vector_store %arg5[%c0_7, %c0_8], %8 {strides = array<i32>} : memref<8x128xf32, #tpu.memory_space<vmem>>, vector<8x128xf32>,
    return
  }
  func.func @transform_0(%arg0: i32) -> (i32, i32) {
    %c0_i32 = arith.constant 0 : i32
    %c0_i32_0 = arith.constant 0 : i32
    return %arg0, %c0_i32 : i32, i32
  }
  func.func @transform_1(%arg0: i32) -> (i32, i32) {
    %c0_i32 = arith.constant 0 : i32
    %c0_i32_0 = arith.constant 0 : i32
    %c0_i32_1 = arith.constant 0 : i32
    return %c0_i32, %c0_i32_0 : i32, i32
  }
  func.func @transform_2(%arg0: i32) -> (i32, i32) {
    %c0_i32 = arith.constant 0 : i32
    %c0_i32_0 = arith.constant 0 : i32
    %c0_i32_1 = arith.constant 0 : i32
    return %c0_i32, %c0_i32_0 : i32, i32
  }
  func.func @transform_3(%arg0: i32) -> (i32, i32) {
    %c0_i32 = arith.constant 0 : i32
    %c0_i32_0 = arith.constant 0 : i32
    return %arg0, %c0_i32 : i32, i32
  }
  func.func @transform_4(%arg0: i32) -> (i32, i32) {
    %c0_i32 = arith.constant 0 : i32
    %c0_i32_0 = arith.constant 0 : i32
    return %arg0, %c0_i32 : i32, i32
  }
}

module attributes {stable_mosaic.version = 11 : i64} {
  func.func @_ln_linear_kernel(%arg0: i32, %arg1: i32, %arg2: memref<16x128xf32, #tpu.memory_space<vmem>>, %arg3: memref<1x128xf32, #tpu.memory_space<vmem>>, %arg4: memref<1x128xf32, #tpu.memory_space<vmem>>, %arg5: memref<128x384xbf16, #tpu.memory_space<vmem>>, %arg6: memref<1x384xf32, #tpu.memory_space<vmem>>, %arg7: memref<16x384xbf16, #tpu.memory_space<vmem>>) attributes {dimension_semantics = [#tpu.dimension_semantics<parallel>, #tpu.dimension_semantics<parallel>], iteration_bounds = array<i64: 2, 1>, scalar_prefetch = 0 : i64, scratch_operands = 0 : i64, tpu.core_type = #tpu.core_type<tc>, window_params = [{transform_indices = @transform_0, window_bounds = array<i64: 16, 128>}, {pipeline_mode = #tpu.pipeline_mode<synchronous>, transform_indices = @transform_1, window_bounds = array<i64: 1, 128>}, {pipeline_mode = #tpu.pipeline_mode<synchronous>, transform_indices = @transform_2, window_bounds = array<i64: 1, 128>}, {transform_indices = @transform_3, window_bounds = array<i64: 128, 384>}, {transform_indices = @transform_4, window_bounds = array<i64: 1, 384>}, {transform_indices = @transform_5, window_bounds = array<i64: 16, 384>}]} {
    %c0 = arith.constant 0 : index
    %c0_0 = arith.constant 0 : index
    %0 = vector.load %arg2[%c0, %c0_0] : memref<16x128xf32, #tpu.memory_space<vmem>>, vector<16x128xf32>
    %cst = arith.constant dense<0.000000e+00> : vector<16xf32>
    %1 = vector.multi_reduction <add>, %0, %cst [1] : vector<16x128xf32> to vector<16xf32>
    %2 = vector.shape_cast %1 : vector<16xf32> to vector<16x1xf32>
    %cst_1 = arith.constant 1.280000e+02 : f32
    %3 = vector.broadcast %cst_1 : f32 to vector<16x1xf32>
    %4 = arith.divf %2, %3 : vector<16x1xf32>
    %5 = vector.broadcast %4 : vector<16x1xf32> to vector<16x128xf32>
    %6 = arith.subf %0, %5 : vector<16x128xf32>
    %7 = arith.mulf %6, %6 : vector<16x128xf32>
    %cst_2 = arith.constant dense<0.000000e+00> : vector<16xf32>
    %8 = vector.multi_reduction <add>, %7, %cst_2 [1] : vector<16x128xf32> to vector<16xf32>
    %9 = vector.shape_cast %8 : vector<16xf32> to vector<16x1xf32>
    %cst_3 = arith.constant 1.280000e+02 : f32
    %10 = vector.broadcast %cst_3 : f32 to vector<16x1xf32>
    %11 = arith.divf %9, %10 : vector<16x1xf32>
    %cst_4 = arith.constant 9.99999997E-7 : f32
    %12 = vector.broadcast %cst_4 : f32 to vector<16x1xf32>
    %13 = arith.addf %11, %12 : vector<16x1xf32>
    %14 = math.rsqrt %13 : vector<16x1xf32>
    %15 = vector.broadcast %14 : vector<16x1xf32> to vector<16x128xf32>
    %16 = arith.mulf %6, %15 : vector<16x128xf32>
    %c0_5 = arith.constant 0 : index
    %c0_6 = arith.constant 0 : index
    %17 = vector.load %arg3[%c0_5, %c0_6] : memref<1x128xf32, #tpu.memory_space<vmem>>, vector<1x128xf32>
    %18 = vector.broadcast %17 : vector<1x128xf32> to vector<16x128xf32>
    %19 = arith.mulf %16, %18 : vector<16x128xf32>
    %c0_7 = arith.constant 0 : index
    %c0_8 = arith.constant 0 : index
    %20 = vector.load %arg4[%c0_7, %c0_8] : memref<1x128xf32, #tpu.memory_space<vmem>>, vector<1x128xf32>
    %21 = vector.broadcast %20 : vector<1x128xf32> to vector<16x128xf32>
    %22 = arith.addf %19, %21 : vector<16x128xf32>
    %23 = arith.truncf %22 : vector<16x128xf32> to vector<16x128xbf16>
    %c0_9 = arith.constant 0 : index
    %c0_10 = arith.constant 0 : index
    %24 = vector.load %arg5[%c0_9, %c0_10] : memref<128x384xbf16, #tpu.memory_space<vmem>>, vector<128x384xbf16>
    %cst_11 = arith.constant dense<0.000000e+00> : vector<16x384xf32>
    %25 = tpu.matmul %23, %24, %cst_11 {dimension_numbers = #tpu.dot_dimension_numbers<[1], [0], [0], [1], [0, 0, 1, 1], [], []>} : vector<16x128xbf16>, vector<128x384xbf16>, vector<16x384xf32> -> vector<16x384xf32>
    %c0_12 = arith.constant 0 : index
    %c0_13 = arith.constant 0 : index
    %26 = vector.load %arg6[%c0_12, %c0_13] : memref<1x384xf32, #tpu.memory_space<vmem>>, vector<1x384xf32>
    %27 = vector.broadcast %26 : vector<1x384xf32> to vector<16x384xf32>
    %28 = arith.addf %25, %27 : vector<16x384xf32>
    %29 = arith.truncf %28 : vector<16x384xf32> to vector<16x384xbf16>
    %c0_14 = arith.constant 0 : index
    %c0_15 = arith.constant 0 : index
    %30 = vector.load %arg7[%c0_14, %c0_15] : memref<16x384xbf16, #tpu.memory_space<vmem>>, vector<16x384xbf16>
    tpu.vector_store %arg7[%c0_14, %c0_15], %29 {strides = array<i32>} : memref<16x384xbf16, #tpu.memory_space<vmem>>, vector<16x384xbf16>,
    return
  }
  func.func @transform_0(%arg0: i32, %arg1: i32) -> (i32, i32) {
    %c0_i32 = arith.constant 0 : i32
    %c0_i32_0 = arith.constant 0 : i32
    return %arg0, %c0_i32 : i32, i32
  }
  func.func @transform_1(%arg0: i32, %arg1: i32) -> (i32, i32) {
    %c0_i32 = arith.constant 0 : i32
    %c0_i32_0 = arith.constant 0 : i32
    %c0_i32_1 = arith.constant 0 : i32
    return %c0_i32, %c0_i32_0 : i32, i32
  }
  func.func @transform_2(%arg0: i32, %arg1: i32) -> (i32, i32) {
    %c0_i32 = arith.constant 0 : i32
    %c0_i32_0 = arith.constant 0 : i32
    %c0_i32_1 = arith.constant 0 : i32
    return %c0_i32, %c0_i32_0 : i32, i32
  }
  func.func @transform_3(%arg0: i32, %arg1: i32) -> (i32, i32) {
    %c0_i32 = arith.constant 0 : i32
    %c0_i32_0 = arith.constant 0 : i32
    return %c0_i32, %arg1 : i32, i32
  }
  func.func @transform_4(%arg0: i32, %arg1: i32) -> (i32, i32) {
    %c0_i32 = arith.constant 0 : i32
    %c0_i32_0 = arith.constant 0 : i32
    return %c0_i32, %arg1 : i32, i32
  }
  func.func @transform_5(%arg0: i32, %arg1: i32) -> (i32, i32) {
    %c0_i32 = arith.constant 0 : i32
    return %arg0, %arg1 : i32, i32
  }
}

module attributes {stable_mosaic.version = 11 : i64} {
  func.func @_ln_linear_kernel(%arg0: i32, %arg1: i32, %arg2: memref<16x128xf32, #tpu.memory_space<vmem>>, %arg3: memref<1x128xf32, #tpu.memory_space<vmem>>, %arg4: memref<1x128xf32, #tpu.memory_space<vmem>>, %arg5: memref<128x512xbf16, #tpu.memory_space<vmem>>, %arg6: memref<1x512xf32, #tpu.memory_space<vmem>>, %arg7: memref<16x512xbf16, #tpu.memory_space<vmem>>) attributes {dimension_semantics = [#tpu.dimension_semantics<parallel>, #tpu.dimension_semantics<parallel>], iteration_bounds = array<i64: 2, 1>, scalar_prefetch = 0 : i64, scratch_operands = 0 : i64, tpu.core_type = #tpu.core_type<tc>, window_params = [{transform_indices = @transform_0, window_bounds = array<i64: 16, 128>}, {pipeline_mode = #tpu.pipeline_mode<synchronous>, transform_indices = @transform_1, window_bounds = array<i64: 1, 128>}, {pipeline_mode = #tpu.pipeline_mode<synchronous>, transform_indices = @transform_2, window_bounds = array<i64: 1, 128>}, {transform_indices = @transform_3, window_bounds = array<i64: 128, 512>}, {transform_indices = @transform_4, window_bounds = array<i64: 1, 512>}, {transform_indices = @transform_5, window_bounds = array<i64: 16, 512>}]} {
    %c0 = arith.constant 0 : index
    %c0_0 = arith.constant 0 : index
    %0 = vector.load %arg2[%c0, %c0_0] : memref<16x128xf32, #tpu.memory_space<vmem>>, vector<16x128xf32>
    %cst = arith.constant dense<0.000000e+00> : vector<16xf32>
    %1 = vector.multi_reduction <add>, %0, %cst [1] : vector<16x128xf32> to vector<16xf32>
    %2 = vector.shape_cast %1 : vector<16xf32> to vector<16x1xf32>
    %cst_1 = arith.constant 1.280000e+02 : f32
    %3 = vector.broadcast %cst_1 : f32 to vector<16x1xf32>
    %4 = arith.divf %2, %3 : vector<16x1xf32>
    %5 = vector.broadcast %4 : vector<16x1xf32> to vector<16x128xf32>
    %6 = arith.subf %0, %5 : vector<16x128xf32>
    %7 = arith.mulf %6, %6 : vector<16x128xf32>
    %cst_2 = arith.constant dense<0.000000e+00> : vector<16xf32>
    %8 = vector.multi_reduction <add>, %7, %cst_2 [1] : vector<16x128xf32> to vector<16xf32>
    %9 = vector.shape_cast %8 : vector<16xf32> to vector<16x1xf32>
    %cst_3 = arith.constant 1.280000e+02 : f32
    %10 = vector.broadcast %cst_3 : f32 to vector<16x1xf32>
    %11 = arith.divf %9, %10 : vector<16x1xf32>
    %cst_4 = arith.constant 9.99999997E-7 : f32
    %12 = vector.broadcast %cst_4 : f32 to vector<16x1xf32>
    %13 = arith.addf %11, %12 : vector<16x1xf32>
    %14 = math.rsqrt %13 : vector<16x1xf32>
    %15 = vector.broadcast %14 : vector<16x1xf32> to vector<16x128xf32>
    %16 = arith.mulf %6, %15 : vector<16x128xf32>
    %c0_5 = arith.constant 0 : index
    %c0_6 = arith.constant 0 : index
    %17 = vector.load %arg3[%c0_5, %c0_6] : memref<1x128xf32, #tpu.memory_space<vmem>>, vector<1x128xf32>
    %18 = vector.broadcast %17 : vector<1x128xf32> to vector<16x128xf32>
    %19 = arith.mulf %16, %18 : vector<16x128xf32>
    %c0_7 = arith.constant 0 : index
    %c0_8 = arith.constant 0 : index
    %20 = vector.load %arg4[%c0_7, %c0_8] : memref<1x128xf32, #tpu.memory_space<vmem>>, vector<1x128xf32>
    %21 = vector.broadcast %20 : vector<1x128xf32> to vector<16x128xf32>
    %22 = arith.addf %19, %21 : vector<16x128xf32>
    %23 = arith.truncf %22 : vector<16x128xf32> to vector<16x128xbf16>
    %c0_9 = arith.constant 0 : index
    %c0_10 = arith.constant 0 : index
    %24 = vector.load %arg5[%c0_9, %c0_10] : memref<128x512xbf16, #tpu.memory_space<vmem>>, vector<128x512xbf16>
    %cst_11 = arith.constant dense<0.000000e+00> : vector<16x512xf32>
    %25 = tpu.matmul %23, %24, %cst_11 {dimension_numbers = #tpu.dot_dimension_numbers<[1], [0], [0], [1], [0, 0, 1, 1], [], []>} : vector<16x128xbf16>, vector<128x512xbf16>, vector<16x512xf32> -> vector<16x512xf32>
    %c0_12 = arith.constant 0 : index
    %c0_13 = arith.constant 0 : index
    %26 = vector.load %arg6[%c0_12, %c0_13] : memref<1x512xf32, #tpu.memory_space<vmem>>, vector<1x512xf32>
    %27 = vector.broadcast %26 : vector<1x512xf32> to vector<16x512xf32>
    %28 = arith.addf %25, %27 : vector<16x512xf32>
    %29 = arith.mulf %28, %28 : vector<16x512xf32>
    %30 = arith.mulf %28, %29 : vector<16x512xf32>
    %cst_14 = arith.constant 4.471500e-02 : f32
    %31 = vector.broadcast %cst_14 : f32 to vector<16x512xf32>
    %32 = arith.mulf %31, %30 : vector<16x512xf32>
    %33 = arith.addf %28, %32 : vector<16x512xf32>
    %cst_15 = arith.constant 0.797884583 : f32
    %34 = vector.broadcast %cst_15 : f32 to vector<16x512xf32>
    %35 = arith.mulf %34, %33 : vector<16x512xf32>
    %36 = math.tanh %35 : vector<16x512xf32>
    %cst_16 = arith.constant 1.000000e+00 : f32
    %37 = vector.broadcast %cst_16 : f32 to vector<16x512xf32>
    %38 = arith.addf %37, %36 : vector<16x512xf32>
    %cst_17 = arith.constant 5.000000e-01 : f32
    %39 = vector.broadcast %cst_17 : f32 to vector<16x512xf32>
    %40 = arith.mulf %39, %38 : vector<16x512xf32>
    %41 = arith.mulf %28, %40 : vector<16x512xf32>
    %42 = arith.truncf %41 : vector<16x512xf32> to vector<16x512xbf16>
    %c0_18 = arith.constant 0 : index
    %c0_19 = arith.constant 0 : index
    %43 = vector.load %arg7[%c0_18, %c0_19] : memref<16x512xbf16, #tpu.memory_space<vmem>>, vector<16x512xbf16>
    tpu.vector_store %arg7[%c0_18, %c0_19], %42 {strides = array<i32>} : memref<16x512xbf16, #tpu.memory_space<vmem>>, vector<16x512xbf16>,
    return
  }
  func.func @transform_0(%arg0: i32, %arg1: i32) -> (i32, i32) {
    %c0_i32 = arith.constant 0 : i32
    %c0_i32_0 = arith.constant 0 : i32
    return %arg0, %c0_i32 : i32, i32
  }
  func.func @transform_1(%arg0: i32, %arg1: i32) -> (i32, i32) {
    %c0_i32 = arith.constant 0 : i32
    %c0_i32_0 = arith.constant 0 : i32
    %c0_i32_1 = arith.constant 0 : i32
    return %c0_i32, %c0_i32_0 : i32, i32
  }
  func.func @transform_2(%arg0: i32, %arg1: i32) -> (i32, i32) {
    %c0_i32 = arith.constant 0 : i32
    %c0_i32_0 = arith.constant 0 : i32
    %c0_i32_1 = arith.constant 0 : i32
    return %c0_i32, %c0_i32_0 : i32, i32
  }
  func.func @transform_3(%arg0: i32, %arg1: i32) -> (i32, i32) {
    %c0_i32 = arith.constant 0 : i32
    %c0_i32_0 = arith.constant 0 : i32
    return %c0_i32, %arg1 : i32, i32
  }
  func.func @transform_4(%arg0: i32, %arg1: i32) -> (i32, i32) {
    %c0_i32 = arith.constant 0 : i32
    %c0_i32_0 = arith.constant 0 : i32
    return %c0_i32, %arg1 : i32, i32
  }
  func.func @transform_5(%arg0: i32, %arg1: i32) -> (i32, i32) {
    %c0_i32 = arith.constant 0 : i32
    return %arg0, %arg1 : i32, i32
  }
}

module attributes {stable_mosaic.version = 11 : i64} {
  func.func @_linear_scale_add_kernel(%arg0: i32, %arg1: i32, %arg2: memref<16x128xf32, #tpu.memory_space<vmem>>, %arg3: memref<16x512xbf16, #tpu.memory_space<vmem>>, %arg4: memref<512x128xbf16, #tpu.memory_space<vmem>>, %arg5: memref<1x128xf32, #tpu.memory_space<vmem>>, %arg6: memref<1x128xf32, #tpu.memory_space<vmem>>, %arg7: memref<16x128xf32, #tpu.memory_space<vmem>>) attributes {dimension_semantics = [#tpu.dimension_semantics<parallel>, #tpu.dimension_semantics<parallel>], iteration_bounds = array<i64: 2, 1>, scalar_prefetch = 0 : i64, scratch_operands = 0 : i64, tpu.core_type = #tpu.core_type<tc>, window_params = [{transform_indices = @transform_0, window_bounds = array<i64: 16, 128>}, {transform_indices = @transform_1, window_bounds = array<i64: 16, 512>}, {transform_indices = @transform_2, window_bounds = array<i64: 512, 128>}, {transform_indices = @transform_3, window_bounds = array<i64: 1, 128>}, {transform_indices = @transform_4, window_bounds = array<i64: 1, 128>}, {transform_indices = @transform_5, window_bounds = array<i64: 16, 128>}]} {
    %c0 = arith.constant 0 : index
    %c0_0 = arith.constant 0 : index
    %0 = vector.load %arg3[%c0, %c0_0] : memref<16x512xbf16, #tpu.memory_space<vmem>>, vector<16x512xbf16>
    %c0_1 = arith.constant 0 : index
    %c0_2 = arith.constant 0 : index
    %1 = vector.load %arg4[%c0_1, %c0_2] : memref<512x128xbf16, #tpu.memory_space<vmem>>, vector<512x128xbf16>
    %cst = arith.constant dense<0.000000e+00> : vector<16x128xf32>
    %2 = tpu.matmul %0, %1, %cst {dimension_numbers = #tpu.dot_dimension_numbers<[1], [0], [0], [1], [0, 0, 1, 1], [], []>} : vector<16x512xbf16>, vector<512x128xbf16>, vector<16x128xf32> -> vector<16x128xf32>
    %c0_3 = arith.constant 0 : index
    %c0_4 = arith.constant 0 : index
    %3 = vector.load %arg5[%c0_3, %c0_4] : memref<1x128xf32, #tpu.memory_space<vmem>>, vector<1x128xf32>
    %4 = vector.broadcast %3 : vector<1x128xf32> to vector<16x128xf32>
    %5 = arith.addf %2, %4 : vector<16x128xf32>
    %c0_5 = arith.constant 0 : index
    %c0_6 = arith.constant 0 : index
    %6 = vector.load %arg2[%c0_5, %c0_6] : memref<16x128xf32, #tpu.memory_space<vmem>>, vector<16x128xf32>
    %c0_7 = arith.constant 0 : index
    %c0_8 = arith.constant 0 : index
    %7 = vector.load %arg6[%c0_7, %c0_8] : memref<1x128xf32, #tpu.memory_space<vmem>>, vector<1x128xf32>
    %8 = vector.broadcast %7 : vector<1x128xf32> to vector<16x128xf32>
    %9 = arith.mulf %5, %8 : vector<16x128xf32>
    %10 = arith.addf %6, %9 : vector<16x128xf32>
    %c0_9 = arith.constant 0 : index
    %c0_10 = arith.constant 0 : index
    %11 = vector.load %arg7[%c0_9, %c0_10] : memref<16x128xf32, #tpu.memory_space<vmem>>, vector<16x128xf32>
    tpu.vector_store %arg7[%c0_9, %c0_10], %10 {strides = array<i32>} : memref<16x128xf32, #tpu.memory_space<vmem>>, vector<16x128xf32>,
    return
  }
  func.func @transform_0(%arg0: i32, %arg1: i32) -> (i32, i32) {
    %c0_i32 = arith.constant 0 : i32
    return %arg0, %arg1 : i32, i32
  }
  func.func @transform_1(%arg0: i32, %arg1: i32) -> (i32, i32) {
    %c0_i32 = arith.constant 0 : i32
    %c0_i32_0 = arith.constant 0 : i32
    return %arg0, %c0_i32 : i32, i32
  }
  func.func @transform_2(%arg0: i32, %arg1: i32) -> (i32, i32) {
    %c0_i32 = arith.constant 0 : i32
    %c0_i32_0 = arith.constant 0 : i32
    return %c0_i32, %arg1 : i32, i32
  }
  func.func @transform_3(%arg0: i32, %arg1: i32) -> (i32, i32) {
    %c0_i32 = arith.constant 0 : i32
    %c0_i32_0 = arith.constant 0 : i32
    return %c0_i32, %arg1 : i32, i32
  }
  func.func @transform_4(%arg0: i32, %arg1: i32) -> (i32, i32) {
    %c0_i32 = arith.constant 0 : i32
    %c0_i32_0 = arith.constant 0 : i32
    return %c0_i32, %arg1 : i32, i32
  }
  func.func @transform_5(%arg0: i32, %arg1: i32) -> (i32, i32) {
    %c0_i32 = arith.constant 0 : i32
    return %arg0, %arg1 : i32, i32
  }
}

</mosaic_0001>

<llo_original>
// kernel: dinov2_forward.11
$region0: #{dinov2_forward.11}
  #allocation0 [shape = 'u32[]', space=smem, size = 0x4, offset = 0x4, fixed_abs, tag = 'smem constant byte address 0x4 - core index']
  #allocation1 [shape = 'u32[144,128]{1,0:T(1,128)}', space=vmem, size = 0x12000, scoped, tag = 'internal scratch']
  %s0 = inlined_call_operand.vmem [shape: f32[2,16,128], index: 0, kind: input, shape index: {}, may-alias: {0,5}]
  %s1 = inlined_call_operand.vmem [shape: bf16[2,16,384], index: 1, kind: input, shape index: {}]
  %s2 = inlined_call_operand.vmem [shape: bf16[128,128], index: 2, kind: input, shape index: {}]
  %s3 = inlined_call_operand.vmem [shape: f32[1,128], index: 3, kind: input, shape index: {}]
  %s4 = inlined_call_operand.vmem [shape: f32[1,128], index: 4, kind: input, shape index: {}]
  %s5 = inlined_call_operand.vmem [shape: f32[2,16,128], index: 5, kind: output, shape index: {}, may-alias: {0,5}]
  %s6 = sld [smem:[#allocation0]]
  $region53: #{dinov2_forward.11} parent=0
    _
  %s8 = ssub.s32 1, %s6
  %s9 = scalar_select 0, %s8, %s6
  loop: start=0, step=1, limit=4
  $region2: #{dinov2_forward.11} parent=0 // loop_pre_header
    _
  $region3: #{dinov2_forward.11} parent=0 // loop_header
    %s11 = sphi 0, %s15
    %p12 = scmp.ge.s32.totalorder %s11, 4
    %s21 = sphi 0, %s23
    %s24 = sphi 0, %s21
    %s25 = sphi 0, %s24
    %s41 = sphi 0, %s25
    %s47 = sphi 0, %s49
    %s50 = sphi 0, %s47
    %s51 = sphi 0, %s50
    %s67 = sphi 0, %s51
    %s71 = sphi 0, %s71
    %s73 = sphi 0, %s71
    %s74 = sphi 0, %s73
    %s88 = sphi 0, %s74
    %s92 = sphi 0, %s92
    %s94 = sphi 0, %s92
    %s95 = sphi 0, %s94
    %s109 = sphi 0, %s95
    %s113 = sphi 0, %s113
    %s115 = sphi 0, %s113
    %s116 = sphi 0, %s115
    %s130 = sphi 0, %s116
    %s136 = sphi 0, %s138
    %s139 = sphi 0, %s136
    %s140 = sphi 0, %s139
    %s156 = sphi 0, %s140
  $region4: #{dinov2_forward.11} parent=0 // loop_header_branch
    %14 = sbr.rel (%p12) target = $region8
  $region5: #{dinov2_forward.11} parent=0 // loop_body
    %s16 = ssub.s32 %s11, 1
    %s17 = ssub.s32 %s11, 2
    %s18 = sadd.s32 %s11, 1
    %s19 = ssub.s32 %s11, %s18
    %p20 = scmp.eq.s32.totalorder %s19, 0
    %s22 = sadd.s32 %s21, 1
    %s23 = scalar_select %p20, %s21, %s22
    %p26 = pneg %p20
    %p27 = scmp.eq.s32.totalorder %s11, 1
    %p28 = por %p26, %p27
    %p29 = scmp.ne.s32.totalorder %s21, %s24
    %p30 = scmp.eq.s32.totalorder %s11, 0
    %p31 = por %p29, %p30
    %p32 = scmp.ne.s32.totalorder %s21, %s24
    %p33 = scmp.eq.s32.totalorder %s16, 1
    %p34 = por %p32, %p33
    %p35 = scmp.ne.s32.totalorder %s24, %s25
    %p36 = scmp.eq.s32.totalorder %s16, 0
    %p37 = por %p35, %p36
    %p38 = scmp.ne.s32.totalorder %s24, %s25
    %p39 = scmp.eq.s32.totalorder %s17, 1
    %p40 = por %p38, %p39
    %p42 = scmp.ne.s32.totalorder %s25, %s41
    %p43 = scmp.eq.s32.totalorder %s17, 0
    %p44 = por %p42, %p43
    %s45 = ssub.s32 %s11, %s18
    %p46 = scmp.eq.s32.totalorder %s45, 0
    %s48 = sadd.s32 %s47, 1
    %s49 = scalar_select %p46, %s47, %s48
    %p52 = pneg %p46
    %p53 = scmp.eq.s32.totalorder %s11, 1
    %p54 = por %p52, %p53
    %p55 = scmp.ne.s32.totalorder %s47, %s50
    %p56 = scmp.eq.s32.totalorder %s11, 0
    %p57 = por %p55, %p56
    %p58 = scmp.ne.s32.totalorder %s47, %s50
    %p59 = scmp.eq.s32.totalorder %s16, 1
    %p60 = por %p58, %p59
    %p61 = scmp.ne.s32.totalorder %s50, %s51
    %p62 = scmp.eq.s32.totalorder %s16, 0
    %p63 = por %p61, %p62
    %p64 = scmp.ne.s32.totalorder %s50, %s51
    %p65 = scmp.eq.s32.totalorder %s17, 1
    %p66 = por %p64, %p65
    %p68 = scmp.ne.s32.totalorder %s51, %s67
    %p69 = scmp.eq.s32.totalorder %s17, 0
    %p70 = por %p68, %p69
    %s72 = sadd.s32 %s71, 1
    %p75 = scmp.eq.s32.totalorder %s11, 1
    %p76 = scmp.ne.s32.totalorder %s71, %s73
    %p77 = scmp.eq.s32.totalorder %s11, 0
    %p78 = por %p76, %p77
    %p79 = scmp.ne.s32.totalorder %s71, %s73
    %p80 = scmp.eq.s32.totalorder %s16, 1
    %p81 = por %p79, %p80
    %p82 = scmp.ne.s32.totalorder %s73, %s74
    %p83 = scmp.eq.s32.totalorder %s16, 0
    %p84 = por %p82, %p83
    %p85 = scmp.ne.s32.totalorder %s73, %s74
    %p86 = scmp.eq.s32.totalorder %s17, 1
    %p87 = por %p85, %p86
    %p89 = scmp.ne.s32.totalorder %s74, %s88
    %p90 = scmp.eq.s32.totalorder %s17, 0
    %p91 = por %p89, %p90
    %s93 = sadd.s32 %s92, 1
    %p96 = scmp.eq.s32.totalorder %s11, 1
    %p97 = scmp.ne.s32.totalorder %s92, %s94
    %p98 = scmp.eq.s32.totalorder %s11, 0
    %p99 = por %p97, %p98
    %p100 = scmp.ne.s32.totalorder %s92, %s94
    %p101 = scmp.eq.s32.totalorder %s16, 1
    %p102 = por %p100, %p101
    %p103 = scmp.ne.s32.totalorder %s94, %s95
    %p104 = scmp.eq.s32.totalorder %s16, 0
    %p105 = por %p103, %p104
    %p106 = scmp.ne.s32.totalorder %s94, %s95
    %p107 = scmp.eq.s32.totalorder %s17, 1
    %p108 = por %p106, %p107
    %p110 = scmp.ne.s32.totalorder %s95, %s109
    %p111 = scmp.eq.s32.totalorder %s17, 0
    %p112 = por %p110, %p111
    %s114 = sadd.s32 %s113, 1
    %p117 = scmp.eq.s32.totalorder %s11, 1
    %p118 = scmp.ne.s32.totalorder %s113, %s115
    %p119 = scmp.eq.s32.totalorder %s11, 0
    %p120 = por %p118, %p119
    %p121 = scmp.ne.s32.totalorder %s113, %s115
    %p122 = scmp.eq.s32.totalorder %s16, 1
    %p123 = por %p121, %p122
    %p124 = scmp.ne.s32.totalorder %s115, %s116
    %p125 = scmp.eq.s32.totalorder %s16, 0
    %p126 = por %p124, %p125
    %p127 = scmp.ne.s32.totalorder %s115, %s116
    %p128 = scmp.eq.s32.totalorder %s17, 1
    %p129 = por %p127, %p128
    %p131 = scmp.ne.s32.totalorder %s116, %s130
    %p132 = scmp.eq.s32.totalorder %s17, 0
    %p133 = por %p131, %p132
    %s134 = ssub.s32 %s11, %s18
    %p135 = scmp.eq.s32.totalorder %s134, 0
    %s137 = sadd.s32 %s136, 1
    %s138 = scalar_select %p135, %s136, %s137
    %p141 = pneg %p135
    %p142 = scmp.eq.s32.totalorder %s11, 1
    %p143 = por %p141, %p142
    %p144 = scmp.ne.s32.totalorder %s136, %s139
    %p145 = scmp.eq.s32.totalorder %s11, 0
    %p146 = por %p144, %p145
    %p147 = scmp.ne.s32.totalorder %s136, %s139
    %p148 = scmp.eq.s32.totalorder %s16, 1
    %p149 = por %p147, %p148
    %p150 = scmp.ne.s32.totalorder %s139, %s140
    %p151 = scmp.eq.s32.totalorder %s16, 0
    %p152 = por %p150, %p151
    %p153 = scmp.ne.s32.totalorder %s139, %s140
    %p154 = scmp.eq.s32.totalorder %s17, 1
    %p155 = por %p153, %p154
    %p157 = scmp.ne.s32.totalorder %s140, %s156
    %p158 = scmp.eq.s32.totalorder %s17, 0
    %p159 = por %p157, %p158
    %p160 = scmp.le.s32.totalorder 1, %s11
    %p161 = scmp.lt.s32.totalorder %s11, 3
    %p162 = pnand %p160, %p161
    %p163 = pneg %p162
    // Predicated region
    $region9: #{dinov2_forward.11} parent=5 // pred_check
      _
    $region10: #{dinov2_forward.11} parent=5 // pred_check_branch
      %165 = sbr.rel (%p162) target = $region12
    $region11: #{dinov2_forward.11} parent=5 // pred_region
      %s166 = ssub.s32 %s11, 1
      // Predicated region
      $region13: #{dinov2_forward.11} parent=11 // pred_check
        %p167 = pneg %p84
      $region14: #{dinov2_forward.11} parent=11 // pred_check_branch
        %169 = sbr.rel (%p167) target = $region16
      $region15: #{dinov2_forward.11} parent=11 // pred_region
        _
      $region16: #{dinov2_forward.11} parent=11 // pred_fallthru
        _
      // Predicated region
      $region17: #{dinov2_forward.11} parent=11 // pred_check
        %p170 = pneg %p105
      $region18: #{dinov2_forward.11} parent=11 // pred_check_branch
        %172 = sbr.rel (%p170) target = $region20
      $region19: #{dinov2_forward.11} parent=11 // pred_region
        _
      $region20: #{dinov2_forward.11} parent=11 // pred_fallthru
        _
      // Predicated region
      $region21: #{dinov2_forward.11} parent=11 // pred_check
        %p173 = pneg %p126
      $region22: #{dinov2_forward.11} parent=11 // pred_check_branch
        %175 = sbr.rel (%p173) target = $region24
      $region23: #{dinov2_forward.11} parent=11 // pred_region
        _
      $region24: #{dinov2_forward.11} parent=11 // pred_fallthru
        _
    $region12: #{dinov2_forward.11} parent=5 // pred_fallthru
      _
    %p176 = scmp.lt.s32.totalorder %s11, 2
    // Predicated region
    $region25: #{dinov2_forward.11} parent=5 // pred_check
      %p177 = pneg %p176
    $region26: #{dinov2_forward.11} parent=5 // pred_check_branch
      %179 = sbr.rel (%p177) target = $region28
    $region27: #{dinov2_forward.11} parent=5 // pred_region
      // Predicated region
      $region29: #{dinov2_forward.11} parent=27 // pred_check
        %p180 = pneg %p31
      $region30: #{dinov2_forward.11} parent=27 // pred_check_branch
        %182 = sbr.rel (%p180) target = $region32
      $region31: #{dinov2_forward.11} parent=27 // pred_region
        %p183 = scmp.lt.s32.totalorder %s11, 1
        %s184 = scalar_select %p183, %s11, 1
        %s185 = smul.addr %s184, 2
        %s186 = smul.addr %s185, 8
        %s187 = scalar_lea.vmem %s0, %s186
      $region32: #{dinov2_forward.11} parent=27 // pred_fallthru
        _
      // Predicated region
      $region33: #{dinov2_forward.11} parent=27 // pred_check
        %p188 = pneg %p57
      $region34: #{dinov2_forward.11} parent=27 // pred_check_branch
        %190 = sbr.rel (%p188) target = $region36
      $region35: #{dinov2_forward.11} parent=27 // pred_region
        %p191 = scmp.lt.s32.totalorder %s11, 1
        %s192 = scalar_select %p191, %s11, 1
        %s193 = smul.addr %s192, 6
        %s194 = smul.addr %s193, 4
        %s195 = scalar_lea.vmem %s1, %s194
      $region36: #{dinov2_forward.11} parent=27 // pred_fallthru
        _
    $region28: #{dinov2_forward.11} parent=5 // pred_fallthru
      _
    %p196 = scmp.le.s32.totalorder 1, %s11
    %p197 = scmp.lt.s32.totalorder %s11, 3
    %p198 = pnand %p196, %p197
    %p199 = pneg %p198
    // Predicated region
    $region37: #{dinov2_forward.11} parent=5 // pred_check
      _
    $region38: #{dinov2_forward.11} parent=5 // pred_check_branch
      %201 = sbr.rel (%p198) target = $region40
    $region39: #{dinov2_forward.11} parent=5 // pred_region
      %s202 = ssub.s32 %s11, 1
      %p203 = scmp.lt.s32.totalorder %s16, 1
      %s204 = scalar_select %p203, %s16, 1
      %s205 = smul.addr %s204, 2
      %s206 = smul.addr %s205, 8
      %s207 = scalar_lea.vmem %s0, %s206
      %p208 = pneg %p37
      %p209 = pneg %p34
      %p210 = scmp.lt.s32.totalorder %s16, 1
      %s211 = scalar_select %p210, %s16, 1
      %s212 = smul.addr %s211, 6
      %s213 = smul.addr %s212, 4
      %s214 = scalar_lea.vmem %s1, %s213
      %p215 = pneg %p63
      %p216 = pneg %p60
      %p217 = pneg %p84
      %p218 = pneg %p81
      %p219 = pneg %p105
      %p220 = pneg %p102
      %p221 = pneg %p126
      %p222 = pneg %p123
      %p223 = pneg %p152
      %p224 = pneg %p149
      %p225 = scmp.lt.s32.totalorder %s16, 1
      %s226 = scalar_select %p225, %s16, 1
      %s227 = smul.addr %s226, 2
      %s228 = smul.addr %s227, 8
      %s229 = scalar_lea.vmem %s5, %s228
      %p230 = scmp.lt.s32.totalorder %s16, 1
      %s231 = scalar_select %p230, %s16, 1
      %s232 = smul.addr %s231, 2
      %s233 = smul.addr %s232, 8
      %s234 = scalar_lea.vmem %s0, %s233
      %p235 = scmp.lt.s32.totalorder %s16, 1
      %s236 = scalar_select %p235, %s16, 1
      %s237 = smul.addr %s236, 6
      %s238 = smul.addr %s237, 4
      %s239 = scalar_lea.vmem %s1, %s238
      %p240 = scmp.lt.s32.totalorder %s16, 1
      %s241 = scalar_select %p240, %s16, 1
      %s242 = smul.addr %s241, 2
      %s243 = smul.addr %s242, 8
      %s244 = scalar_lea.vmem %s5, %s243
      %v246 = vld [vmem:[%s239] sm:$0xff]
      %v247 = vld [vmem:[%s239 + $0x8] sm:$0xf]
      %v248 = vld [vmem:[%s239 + $0xc] sm:$0xff]
      %v249 = vld [vmem:[%s239 + $0x14] sm:$0xf]
      %v250 = vlaneseq
      %v251 = vand.u32 %v250, 127
      %vm252 = vcmp.lt.s32.totalorder %v251, 5
      %v255 = vunpack.c.l.b16 %v246
      %v256 = vunpack.c.l.b16 %v248
      %v257 = vpack.c.b16 %v256, %v255
      %v258 = vunpack.c.h.b16 %v246
      %v259 = vunpack.c.h.b16 %v248
      %v260 = vpack.c.b16 %v259, %v258
      %vm261 = vcmask 523264
      %v263 = vsel %vm261, %v257, 0
      %v266 = vsel %vm261, %v260, 0
      %268 = vmatprep.subr.bf16.mxu0 0
      %269 = vmatpush1.bf16.xpose.msra.mxu0 0
      %270 = vmatprep.subr.bf16.mxu0 0
      %271 = vmatpush1.bf16.xpose.msra.mxu0 0
      %272 = vmatprep.subr.bf16.mxu0 0
      %273 = vmatpush1.bf16.xpose.msra.mxu0 0
      %274 = vmatprep.subr.bf16.mxu0 0
      %275 = vmatpush1.bf16.xpose.msra.mxu0 0
      %276 = vmatprep.subr.bf16.mxu0 0
      %277 = vmatpush1.bf16.xpose.msra.mxu0 0
      %278 = vmatprep.subr.bf16.mxu0 0
      %279 = vmatpush1.bf16.xpose.msra.mxu0 0
      %280 = vmatprep.subr.bf16.mxu0 0
      %281 = vmatpush1.bf16.xpose.msra.mxu0 0
      %282 = vmatprep.subr.bf16.mxu0 0
      %283 = vmatpush1.bf16.xpose.msra.mxu0 %v266
      %284 = vmatprep.subr.bf16.mxu0 0
      %285 = vmatpush2.bf16.xpose.msra.mxu0 0
      %286 = vmatprep.subr.bf16.mxu0 0
      %287 = vmatpush2.bf16.xpose.msra.mxu0 0
      %288 = vmatprep.subr.bf16.mxu0 0
      %289 = vmatpush2.bf16.xpose.msra.mxu0 0
      %290 = vmatprep.subr.bf16.mxu0 0
      %291 = vmatpush2.bf16.xpose.msra.mxu0 0
      %292 = vmatprep.subr.bf16.mxu0 0
      %293 = vmatpush2.bf16.xpose.msra.mxu0 0
      %294 = vmatprep.subr.bf16.mxu0 0
      %295 = vmatpush2.bf16.xpose.msra.mxu0 0
      %296 = vmatprep.subr.bf16.mxu0 0
      %297 = vmatpush2.bf16.xpose.msra.mxu0 0
      %298 = vmatprep.subr.bf16.mxu0 0
      %299 = vmatpush2.bf16.xpose.msra.mxu0 0
      %300 = vmatprep.mubr.bf16.mxu0 0
      %301 = vmatmul.mubr.bf16.gmra.mxu0 %v263
      %v302 = vpop.f32.mrf.mxu0
      %v303 = vadd.f32 0.0, %v302
      %v304 = vpop.f32.mrf.mxu0
      %v305 = vpop.f32.mrf.mxu0
      %v306 = vadd.f32 0.0, %v305
      %v307 = vpop.f32.mrf.mxu0
      %308 = vdwg.mxu0
      %v309 = vsel %vm252, %v303, -1e+30
      %v310 = vsel %vm252, %v306, -1e+30
      %vm311 = vcmask 130048
      %v312 = vsel %vm311, %v309, -inf
      %313 = vmax.xlane.f32.xlu0 %v312
      %v314 = vpop.xlane.xlu0 %313
      %v315 = vsel %vm311, %v310, -inf
      %316 = vmax.xlane.f32.xlu0 %v315
      %v317 = vpop.xlane.xlu0 %316
      %v318 = vsub.f32 %v309, %v314
      %v319 = vsub.f32 %v310, %v317
      %v320 = vmul.f32 %v318, 1.442695
      %v321 = vpow.pop %v320
      %v322 = vmul.f32 %v319, 1.442695
      %v323 = vpow.pop %v322
      %v324 = vsel %vm311, %v321, 0.0
      %325 = vadd.xlane.f32.xlu0 %v324
      %v326 = vpop.xlane.xlu0 %325
      %v327 = vsel %vm311, %v323, 0.0
      %328 = vadd.xlane.f32.xlu0 %v327
      %v329 = vpop.xlane.xlu0 %328
      %v330 = vrcp.pop %v326
      %v331 = vrcp.pop %v329
      %v332 = vmul.f32 %v321, %v330
      %v333 = vmul.f32 %v323, %v331
      %v334 = vpack.c.bf16 %v333, %v332
      %v337 = vunpack.c.l.b16 %v247
      %v338 = vunpack.c.l.b16 %v249
      %v339 = vpack.c.b16 %v338, %v337
      %v342 = vsel %vm311, %v334, 0
      %344 = vmatprep.subr.bf16.mxu0 0
      %345 = vmatpush1.bf16.msra.mxu0 0
      %346 = vmatprep.subr.bf16.mxu0 0
      %347 = vmatpush1.bf16.msra.mxu0 0
      %348 = vmatprep.subr.bf16.mxu0 0
      %349 = vmatpush1.bf16.msra.mxu0 0
      %350 = vmatprep.subr.bf16.mxu0 0
      %351 = vmatpush1.bf16.msra.mxu0 0
      %352 = vmatprep.subr.bf16.mxu0 0
      %353 = vmatpush1.bf16.msra.mxu0 0
      %354 = vmatprep.subr.bf16.mxu0 0
      %355 = vmatpush1.bf16.msra.mxu0 0
      %356 = vmatprep.subr.bf16.mxu0 0
      %357 = vmatpush1.bf16.msra.mxu0 0
      %358 = vmatprep.subr.bf16.mxu0 0
      %359 = vmatpush1.bf16.msra.mxu0 %v339
      %360 = vmatprep.subr.bf16.mxu0 0
      %361 = vmatpush2.bf16.msra.mxu0 0
      %362 = vmatprep.subr.bf16.mxu0 0
      %363 = vmatpush2.bf16.msra.mxu0 0
      %364 = vmatprep.subr.bf16.mxu0 0
      %365 = vmatpush2.bf16.msra.mxu0 0
      %366 = vmatprep.subr.bf16.mxu0 0
      %367 = vmatpush2.bf16.msra.mxu0 0
      %368 = vmatprep.subr.bf16.mxu0 0
      %369 = vmatpush2.bf16.msra.mxu0 0
      %370 = vmatprep.subr.bf16.mxu0 0
      %371 = vmatpush2.bf16.msra.mxu0 0
      %372 = vmatprep.subr.bf16.mxu0 0
      %373 = vmatpush2.bf16.msra.mxu0 0
      %374 = vmatprep.subr.bf16.mxu0 0
      %375 = vmatpush2.bf16.msra.mxu0 0
      %376 = vmatprep.mubr.bf16.mxu0 0
      %377 = vmatmul.mubr.bf16.gmra.mxu0 %v342
      %v378 = vpop.f32.mrf.mxu0
      %v379 = vadd.f32 0.0, %v378
      %v380 = vpop.f32.mrf.mxu0
      %v381 = vpop.f32.mrf.mxu0
      %v382 = vadd.f32 0.0, %v381
      %v383 = vpop.f32.mrf.mxu0
      %384 = vdwg.mxu0
      %v385 = vpack.c.bf16 %v382, %v379
      %v386 = vld [vmem:[%s2] sm:$0xf]
      %v387 = vld [vmem:[%s2 + $0x4] sm:$0xf]
      %v388 = vld [vmem:[%s2 + $0x8] sm:$0xf]
      %v389 = vld [vmem:[%s2 + $0xc] sm:$0xf]
      %v390 = vld [vmem:[%s2 + $0x10] sm:$0xf]
      %v391 = vld [vmem:[%s2 + $0x14] sm:$0xf]
      %v392 = vld [vmem:[%s2 + $0x18] sm:$0xf]
      %v393 = vld [vmem:[%s2 + $0x1c] sm:$0xf]
      %394 = vrot.lane.b32.xlu0 %v257, 64
      %v395 = vpop.permute.xlu0 %394
      %396 = vrot.lane.b32.xlu0 %v260, 64
      %v397 = vpop.permute.xlu0 %396
      %v399 = vsel %vm261, %v395, 0
      %v402 = vsel %vm261, %v397, 0
      %404 = vmatprep.subr.bf16.mxu0 0
      %405 = vmatpush1.bf16.xpose.msra.mxu0 0
      %406 = vmatprep.subr.bf16.mxu0 0
      %407 = vmatpush1.bf16.xpose.msra.mxu0 0
      %408 = vmatprep.subr.bf16.mxu0 0
      %409 = vmatpush1.bf16.xpose.msra.mxu0 0
      %410 = vmatprep.subr.bf16.mxu0 0
      %411 = vmatpush1.bf16.xpose.msra.mxu0 0
      %412 = vmatprep.subr.bf16.mxu0 0
      %413 = vmatpush1.bf16.xpose.msra.mxu0 0
      %414 = vmatprep.subr.bf16.mxu0 0
      %415 = vmatpush1.bf16.xpose.msra.mxu0 0
      %416 = vmatprep.subr.bf16.mxu0 0
      %417 = vmatpush1.bf16.xpose.msra.mxu0 0
      %418 = vmatprep.subr.bf16.mxu0 0
      %419 = vmatpush1.bf16.xpose.msra.mxu0 %v402
      %420 = vmatprep.subr.bf16.mxu0 0
      %421 = vmatpush2.bf16.xpose.msra.mxu0 0
      %422 = vmatprep.subr.bf16.mxu0 0
      %423 = vmatpush2.bf16.xpose.msra.mxu0 0
      %424 = vmatprep.subr.bf16.mxu0 0
      %425 = vmatpush2.bf16.xpose.msra.mxu0 0
      %426 = vmatprep.subr.bf16.mxu0 0
      %427 = vmatpush2.bf16.xpose.msra.mxu0 0
      %428 = vmatprep.subr.bf16.mxu0 0
      %429 = vmatpush2.bf16.xpose.msra.mxu0 0
      %430 = vmatprep.subr.bf16.mxu0 0
      %431 = vmatpush2.bf16.xpose.msra.mxu0 0
      %432 = vmatprep.subr.bf16.mxu0 0
      %433 = vmatpush2.bf16.xpose.msra.mxu0 0
      %434 = vmatprep.subr.bf16.mxu0 0
      %435 = vmatpush2.bf16.xpose.msra.mxu0 0
      %436 = vmatprep.mubr.bf16.mxu0 0
      %437 = vmatmul.mubr.bf16.gmra.mxu0 %v399
      %v438 = vpop.f32.mrf.mxu0
      %v439 = vadd.f32 0.0, %v438
      %v440 = vpop.f32.mrf.mxu0
      %v441 = vpop.f32.mrf.mxu0
      %v442 = vadd.f32 0.0, %v441
      %v443 = vpop.f32.mrf.mxu0
      %444 = vdwg.mxu0
      %v445 = vsel %vm252, %v439, -1e+30
      %v446 = vsel %vm252, %v442, -1e+30
      %v447 = vsel %vm311, %v445, -inf
      %448 = vmax.xlane.f32.xlu0 %v447
      %v449 = vpop.xlane.xlu0 %448
      %v450 = vsel %vm311, %v446, -inf
      %451 = vmax.xlane.f32.xlu0 %v450
      %v452 = vpop.xlane.xlu0 %451
      %v453 = vsub.f32 %v445, %v449
      %v454 = vsub.f32 %v446, %v452
      %v455 = vmul.f32 %v453, 1.442695
      %v456 = vpow.pop %v455
      %v457 = vmul.f32 %v454, 1.442695
      %v458 = vpow.pop %v457
      %v459 = vsel %vm311, %v456, 0.0
      %460 = vadd.xlane.f32.xlu0 %v459
      %v461 = vpop.xlane.xlu0 %460
      %v462 = vsel %vm311, %v458, 0.0
      %463 = vadd.xlane.f32.xlu0 %v462
      %v464 = vpop.xlane.xlu0 %463
      %v465 = vrcp.pop %v461
      %v466 = vrcp.pop %v464
      %v467 = vmul.f32 %v456, %v465
      %v468 = vmul.f32 %v458, %v466
      %v469 = vpack.c.bf16 %v468, %v467
      %470 = vrot.lane.b32.xlu0 %v339, 64
      %v471 = vpop.permute.xlu0 %470
      %v474 = vsel %vm311, %v469, 0
      %476 = vmatprep.subr.bf16.mxu0 0
      %477 = vmatpush1.bf16.msra.mxu0 0
      %478 = vmatprep.subr.bf16.mxu0 0
      %479 = vmatpush1.bf16.msra.mxu0 0
      %480 = vmatprep.subr.bf16.mxu0 0
      %481 = vmatpush1.bf16.msra.mxu0 0
      %482 = vmatprep.subr.bf16.mxu0 0
      %483 = vmatpush1.bf16.msra.mxu0 0
      %484 = vmatprep.subr.bf16.mxu0 0
      %485 = vmatpush1.bf16.msra.mxu0 0
      %486 = vmatprep.subr.bf16.mxu0 0
      %487 = vmatpush1.bf16.msra.mxu0 0
      %488 = vmatprep.subr.bf16.mxu0 0
      %489 = vmatpush1.bf16.msra.mxu0 0
      %490 = vmatprep.subr.bf16.mxu0 0
      %491 = vmatpush1.bf16.msra.mxu0 %v471
      %492 = vmatprep.subr.bf16.mxu0 0
      %493 = vmatpush2.bf16.msra.mxu0 0
      %494 = vmatprep.subr.bf16.mxu0 0
      %495 = vmatpush2.bf16.msra.mxu0 0
      %496 = vmatprep.subr.bf16.mxu0 0
      %497 = vmatpush2.bf16.msra.mxu0 0
      %498 = vmatprep.subr.bf16.mxu0 0
      %499 = vmatpush2.bf16.msra.mxu0 0
      %500 = vmatprep.subr.bf16.mxu0 0
      %501 = vmatpush2.bf16.msra.mxu0 0
      %502 = vmatprep.subr.bf16.mxu0 0
      %503 = vmatpush2.bf16.msra.mxu0 0
      %504 = vmatprep.subr.bf16.mxu0 0
      %505 = vmatpush2.bf16.msra.mxu0 0
      %506 = vmatprep.subr.bf16.mxu0 0
      %507 = vmatpush2.bf16.msra.mxu0 0
      %508 = vmatprep.mubr.bf16.mxu0 0
      %509 = vmatmul.mubr.bf16.gmra.mxu0 %v474
      %v510 = vpop.f32.mrf.mxu0
      %v511 = vadd.f32 0.0, %v510
      %v512 = vpop.f32.mrf.mxu0
      %v513 = vpop.f32.mrf.mxu0
      %v514 = vadd.f32 0.0, %v513
      %v515 = vpop.f32.mrf.mxu0
      %516 = vdwg.mxu0
      %v517 = vpack.c.bf16 %v514, %v511
      %v518 = vld [vmem:[%s2 + $0x20] sm:$0xf]
      %v519 = vld [vmem:[%s2 + $0x24] sm:$0xf]
      %v520 = vld [vmem:[%s2 + $0x28] sm:$0xf]
      %v521 = vld [vmem:[%s2 + $0x2c] sm:$0xf]
      %v522 = vld [vmem:[%s2 + $0x30] sm:$0xf]
      %v523 = vld [vmem:[%s2 + $0x34] sm:$0xf]
      %v524 = vld [vmem:[%s2 + $0x38] sm:$0xf]
      %v525 = vld [vmem:[%s2 + $0x3c] sm:$0xf]
      %v534 = vunpack.c.l.b16 %v518
      %v535 = vunpack.c.l.b16 %v519
      %v536 = vunpack.c.l.b16 %v520
      %v537 = vunpack.c.l.b16 %v521
      %v538 = vunpack.c.l.b16 %v522
      %v539 = vunpack.c.l.b16 %v523
      %v540 = vunpack.c.l.b16 %v524
      %v541 = vunpack.c.l.b16 %v525
      %v542 = vpack.c.b16 %v535, %v534
      %v543 = vpack.c.b16 %v537, %v536
      %v544 = vpack.c.b16 %v539, %v538
      %v545 = vpack.c.b16 %v541, %v540
      %v551 = vsel %vm261, %v517, 0
      %553 = vmatprep.subr.bf16.mxu0 0
      %554 = vmatpush1.bf16.msra.mxu0 0
      %555 = vmatprep.subr.bf16.mxu0 0
      %556 = vmatpush1.bf16.msra.mxu0 0
      %557 = vmatprep.subr.bf16.mxu0 0
      %558 = vmatpush1.bf16.msra.mxu0 0
      %559 = vmatprep.subr.bf16.mxu0 0
      %560 = vmatpush1.bf16.msra.mxu0 0
      %561 = vmatprep.subr.bf16.mxu0 0
      %562 = vmatpush1.bf16.msra.mxu0 %v545
      %563 = vmatprep.subr.bf16.mxu0 0
      %564 = vmatpush1.bf16.msra.mxu0 %v544
      %565 = vmatprep.subr.bf16.mxu0 0
      %566 = vmatpush1.bf16.msra.mxu0 %v543
      %567 = vmatprep.subr.bf16.mxu0 0
      %568 = vmatpush1.bf16.msra.mxu0 %v542
      %569 = vmatprep.subr.bf16.mxu0 0
      %570 = vmatpush2.bf16.msra.mxu0 0
      %571 = vmatprep.subr.bf16.mxu0 0
      %572 = vmatpush2.bf16.msra.mxu0 0
      %573 = vmatprep.subr.bf16.mxu0 0
      %574 = vmatpush2.bf16.msra.mxu0 0
      %575 = vmatprep.subr.bf16.mxu0 0
      %576 = vmatpush2.bf16.msra.mxu0 0
      %577 = vmatprep.subr.bf16.mxu0 0
      %578 = vmatpush2.bf16.msra.mxu0 0
      %579 = vmatprep.subr.bf16.mxu0 0
      %580 = vmatpush2.bf16.msra.mxu0 0
      %581 = vmatprep.subr.bf16.mxu0 0
      %582 = vmatpush2.bf16.msra.mxu0 0
      %583 = vmatprep.subr.bf16.mxu0 0
      %584 = vmatpush2.bf16.msra.mxu0 0
      %585 = vmatprep.mubr.bf16.mxu0 0
      %586 = vmatmul.mubr.bf16.gmra.mxu0 %v551
      %v587 = vpop.f32.mrf.mxu0
      %v588 = vadd.f32 0.0, %v587
      %v589 = vpop.f32.mrf.mxu0
      %v590 = vpop.f32.mrf.mxu0
      %v591 = vadd.f32 0.0, %v590
      %v592 = vpop.f32.mrf.mxu0
      %593 = vdwg.mxu0
      %v602 = vunpack.c.l.b16 %v386
      %v603 = vunpack.c.l.b16 %v387
      %v604 = vunpack.c.l.b16 %v388
      %v605 = vunpack.c.l.b16 %v389
      %v606 = vunpack.c.l.b16 %v390
      %v607 = vunpack.c.l.b16 %v391
      %v608 = vunpack.c.l.b16 %v392
      %v609 = vunpack.c.l.b16 %v393
      %v610 = vpack.c.b16 %v603, %v602
      %v611 = vpack.c.b16 %v605, %v604
      %v612 = vpack.c.b16 %v607, %v606
      %v613 = vpack.c.b16 %v609, %v608
      %v619 = vsel %vm261, %v385, 0
      %621 = vmatprep.subr.bf16.mxu0 0
      %622 = vmatpush1.bf16.msra.mxu0 0
      %623 = vmatprep.subr.bf16.mxu0 0
      %624 = vmatpush1.bf16.msra.mxu0 0
      %625 = vmatprep.subr.bf16.mxu0 0
      %626 = vmatpush1.bf16.msra.mxu0 0
      %627 = vmatprep.subr.bf16.mxu0 0
      %628 = vmatpush1.bf16.msra.mxu0 0
      %629 = vmatprep.subr.bf16.mxu0 0
      %630 = vmatpush1.bf16.msra.mxu0 %v613
      %631 = vmatprep.subr.bf16.mxu0 0
      %632 = vmatpush1.bf16.msra.mxu0 %v612
      %633 = vmatprep.subr.bf16.mxu0 0
      %634 = vmatpush1.bf16.msra.mxu0 %v611
      %635 = vmatprep.subr.bf16.mxu0 0
      %636 = vmatpush1.bf16.msra.mxu0 %v610
      %637 = vmatprep.subr.bf16.mxu0 0
      %638 = vmatpush2.bf16.msra.mxu0 0
      %639 = vmatprep.subr.bf16.mxu0 0
      %640 = vmatpush2.bf16.msra.mxu0 0
      %641 = vmatprep.subr.bf16.mxu0 0
      %642 = vmatpush2.bf16.msra.mxu0 0
      %643 = vmatprep.subr.bf16.mxu0 0
      %644 = vmatpush2.bf16.msra.mxu0 0
      %645 = vmatprep.subr.bf16.mxu0 0
      %646 = vmatpush2.bf16.msra.mxu0 0
      %647 = vmatprep.subr.bf16.mxu0 0
      %648 = vmatpush2.bf16.msra.mxu0 0
      %649 = vmatprep.subr.bf16.mxu0 0
      %650 = vmatpush2.bf16.msra.mxu0 0
      %651 = vmatprep.subr.bf16.mxu0 0
      %652 = vmatpush2.bf16.msra.mxu0 0
      %653 = vmatprep.mubr.bf16.mxu0 0
      %654 = vmatmul.mubr.bf16.gmra.mxu0 %v619
      %v655 = vpop.f32.mrf.mxu0
      %v656 = vadd.f32 %v588, %v655
      %v657 = vpop.f32.mrf.mxu0
      %v658 = vpop.f32.mrf.mxu0
      %v659 = vadd.f32 %v591, %v658
      %v660 = vpop.f32.mrf.mxu0
      %661 = vdwg.mxu0
      %v662 = vld [vmem:[%s234] sm:$0xff]
      %v663 = vld [vmem:[%s234 + $0x8] sm:$0xff]
      %v664 = vld [vmem:[%s3] sm:$0x1]
      %v666 = vlaneseq
      %v667 = vshrl.u32 %v666, 7
      %v668 = vsub.s32 0, %v667
      %v669 = vrot.slane %v664, %v668
      %v671 = vadd.f32 %v656, %v669
      %v672 = vadd.f32 %v659, %v669
      %v673 = vld [vmem:[%s4] sm:$0x1]
      %v675 = vlaneseq
      %v676 = vshrl.u32 %v675, 7
      %v677 = vsub.s32 0, %v676
      %v678 = vrot.slane %v673, %v677
      %v680 = vmul.f32 %v671, %v678
      %v681 = vmul.f32 %v672, %v678
      %v682 = vadd.f32 %v662, %v680
      %v683 = vadd.f32 %v663, %v681
      %684 = vst [vmem:[%s244] sm:$0xff] %v682
      %685 = vst [vmem:[%s244 + $0x8] sm:$0xff] %v683
      %p686 = scmp.lt.s32.totalorder %s16, 1
      %s687 = scalar_select %p686, %s16, 1
      %s688 = smul.addr %s687, 2
      %s689 = smul.addr %s688, 8
      %s690 = scalar_lea.vmem %s5, %s689
      // Predicated region
      $region41: #{dinov2_forward.11} parent=39 // pred_check
        %p691 = pneg %p149
      $region42: #{dinov2_forward.11} parent=39 // pred_check_branch
        %693 = sbr.rel (%p691) target = $region44
      $region43: #{dinov2_forward.11} parent=39 // pred_region
        _
      $region44: #{dinov2_forward.11} parent=39 // pred_fallthru
        _
    $region40: #{dinov2_forward.11} parent=5 // pred_fallthru
      _
    %p694 = scmp.le.s32.totalorder 2, %s11
    // Predicated region
    $region45: #{dinov2_forward.11} parent=5 // pred_check
      %p695 = pneg %p694
    $region46: #{dinov2_forward.11} parent=5 // pred_check_branch
      %697 = sbr.rel (%p695) target = $region48
    $region47: #{dinov2_forward.11} parent=5 // pred_region
      %s698 = ssub.s32 %s11, 2
      // Predicated region
      $region49: #{dinov2_forward.11} parent=47 // pred_check
        %p699 = pneg %p155
      $region50: #{dinov2_forward.11} parent=47 // pred_check_branch
        %701 = sbr.rel (%p699) target = $region52
      $region51: #{dinov2_forward.11} parent=47 // pred_region
        %p702 = scmp.lt.s32.totalorder %s17, 1
        %s703 = scalar_select %p702, %s17, 1
        %s704 = smul.addr %s703, 2
        %s705 = smul.addr %s704, 8
        %s706 = scalar_lea.vmem %s5, %s705
      $region52: #{dinov2_forward.11} parent=47 // pred_fallthru
        _
    $region48: #{dinov2_forward.11} parent=5 // pred_fallthru
      _
  $region6: #{dinov2_forward.11} parent=0 // loop_footer
    %s15 = sadd.s32 1, %s11
  $region7: #{dinov2_forward.11} parent=0 // loop_footer_branch
    %10 = sbr.rel target = $region3
  $region8: #{dinov2_forward.11} parent=0 // loop_exit
    _

// kernel: dinov2_forward.10
$region0: #{dinov2_forward.10}
  #allocation0 [shape = 'u32[]', space=smem, size = 0x4, offset = 0x4, fixed_abs, tag = 'smem constant byte address 0x4 - core index']
  #allocation1 [shape = 'u32[144,128]{1,0:T(1,128)}', space=vmem, size = 0x12000, scoped, tag = 'internal scratch']
  %s0 = inlined_call_operand.vmem [shape: f32[32,128], index: 0, kind: input, shape index: {}]
  %s1 = inlined_call_operand.vmem [shape: f32[1,128], index: 1, kind: input, shape index: {}]
  %s2 = inlined_call_operand.vmem [shape: f32[1,128], index: 2, kind: input, shape index: {}]
  %s3 = inlined_call_operand.vmem [shape: bf16[128,384], index: 3, kind: input, shape index: {}]
  %s4 = inlined_call_operand.vmem [shape: f32[1,384], index: 4, kind: input, shape index: {}]
  %s5 = inlined_call_operand.vmem [shape: bf16[32,384], index: 5, kind: output, shape index: {}]
  %s6 = sld [smem:[#allocation0]]
  $region53: #{dinov2_forward.10} parent=0
    _
  %s8 = ssub.s32 1, %s6
  %s9 = scalar_select 0, %s8, %s6
  loop: start=0, step=1, limit=4
  $region2: #{dinov2_forward.10} parent=0 // loop_pre_header
    _
  $region3: #{dinov2_forward.10} parent=0 // loop_header
    %s11 = sphi 0, %s15
    %p12 = scmp.ge.s32.totalorder %s11, 4
    %s18 = sphi 0, %s30
    %s19 = sphi 0, %s26
    %s20 = sphi 0, %s18
    %s21 = sphi 0, %s19
    %s22 = sphi 0, %s20
    %s23 = sphi 0, %s21
    %s33 = sphi 0, %s35
    %s36 = sphi 0, %s33
    %s37 = sphi 0, %s36
    %s53 = sphi 0, %s37
    %s57 = sphi 0, %s57
    %s59 = sphi 0, %s57
    %s60 = sphi 0, %s59
    %s74 = sphi 0, %s60
    %s78 = sphi 0, %s78
    %s80 = sphi 0, %s78
    %s81 = sphi 0, %s80
    %s95 = sphi 0, %s81
    %s101 = sphi 0, %s103
    %s104 = sphi 0, %s101
    %s105 = sphi 0, %s104
    %s121 = sphi 0, %s105
    %s127 = sphi 0, %s129
    %s130 = sphi 0, %s127
    %s131 = sphi 0, %s130
    %s147 = sphi 0, %s131
    %s155 = sphi 0, %s157
    %s158 = sphi 0, %s155
    %s159 = sphi 0, %s158
    %s175 = sphi 0, %s159
  $region4: #{dinov2_forward.10} parent=0 // loop_header_branch
    %14 = sbr.rel (%p12) target = $region8
  $region5: #{dinov2_forward.10} parent=0 // loop_body
    %s16 = ssub.s32 %s11, 1
    %s17 = ssub.s32 %s11, 2
    %s24 = sadd.s32 1, %s19
    %p25 = scmp.ge.s32.totalorder %s24, 1
    %s26 = scalar_select %p25, 0, %s24
    %s27 = sadd.s32 1, %s18
    %s28 = scalar_select %p25, %s27, %s18
    %p29 = scmp.ge.s32.totalorder %s28, 2
    %s30 = scalar_select %p29, 0, %s28
    %s31 = ssub.s32 %s18, %s30
    %p32 = scmp.eq.s32.totalorder %s31, 0
    %s34 = sadd.s32 %s33, 1
    %s35 = scalar_select %p32, %s33, %s34
    %p38 = pneg %p32
    %p39 = scmp.eq.s32.totalorder %s11, 1
    %p40 = por %p38, %p39
    %p41 = scmp.ne.s32.totalorder %s33, %s36
    %p42 = scmp.eq.s32.totalorder %s11, 0
    %p43 = por %p41, %p42
    %p44 = scmp.ne.s32.totalorder %s33, %s36
    %p45 = scmp.eq.s32.totalorder %s16, 1
    %p46 = por %p44, %p45
    %p47 = scmp.ne.s32.totalorder %s36, %s37
    %p48 = scmp.eq.s32.totalorder %s16, 0
    %p49 = por %p47, %p48
    %p50 = scmp.ne.s32.totalorder %s36, %s37
    %p51 = scmp.eq.s32.totalorder %s17, 1
    %p52 = por %p50, %p51
    %p54 = scmp.ne.s32.totalorder %s37, %s53
    %p55 = scmp.eq.s32.totalorder %s17, 0
    %p56 = por %p54, %p55
    %s58 = sadd.s32 %s57, 1
    %p61 = scmp.eq.s32.totalorder %s11, 1
    %p62 = scmp.ne.s32.totalorder %s57, %s59
    %p63 = scmp.eq.s32.totalorder %s11, 0
    %p64 = por %p62, %p63
    %p65 = scmp.ne.s32.totalorder %s57, %s59
    %p66 = scmp.eq.s32.totalorder %s16, 1
    %p67 = por %p65, %p66
    %p68 = scmp.ne.s32.totalorder %s59, %s60
    %p69 = scmp.eq.s32.totalorder %s16, 0
    %p70 = por %p68, %p69
    %p71 = scmp.ne.s32.totalorder %s59, %s60
    %p72 = scmp.eq.s32.totalorder %s17, 1
    %p73 = por %p71, %p72
    %p75 = scmp.ne.s32.totalorder %s60, %s74
    %p76 = scmp.eq.s32.totalorder %s17, 0
    %p77 = por %p75, %p76
    %s79 = sadd.s32 %s78, 1
    %p82 = scmp.eq.s32.totalorder %s11, 1
    %p83 = scmp.ne.s32.totalorder %s78, %s80
    %p84 = scmp.eq.s32.totalorder %s11, 0
    %p85 = por %p83, %p84
    %p86 = scmp.ne.s32.totalorder %s78, %s80
    %p87 = scmp.eq.s32.totalorder %s16, 1
    %p88 = por %p86, %p87
    %p89 = scmp.ne.s32.totalorder %s80, %s81
    %p90 = scmp.eq.s32.totalorder %s16, 0
    %p91 = por %p89, %p90
    %p92 = scmp.ne.s32.totalorder %s80, %s81
    %p93 = scmp.eq.s32.totalorder %s17, 1
    %p94 = por %p92, %p93
    %p96 = scmp.ne.s32.totalorder %s81, %s95
    %p97 = scmp.eq.s32.totalorder %s17, 0
    %p98 = por %p96, %p97
    %s99 = ssub.s32 %s19, %s26
    %p100 = scmp.eq.s32.totalorder %s99, 0
    %s102 = sadd.s32 %s101, 1
    %s103 = scalar_select %p100, %s101, %s102
    %p106 = pneg %p100
    %p107 = scmp.eq.s32.totalorder %s11, 1
    %p108 = por %p106, %p107
    %p109 = scmp.ne.s32.totalorder %s101, %s104
    %p110 = scmp.eq.s32.totalorder %s11, 0
    %p111 = por %p109, %p110
    %p112 = scmp.ne.s32.totalorder %s101, %s104
    %p113 = scmp.eq.s32.totalorder %s16, 1
    %p114 = por %p112, %p113
    %p115 = scmp.ne.s32.totalorder %s104, %s105
    %p116 = scmp.eq.s32.totalorder %s16, 0
    %p117 = por %p115, %p116
    %p118 = scmp.ne.s32.totalorder %s104, %s105
    %p119 = scmp.eq.s32.totalorder %s17, 1
    %p120 = por %p118, %p119
    %p122 = scmp.ne.s32.totalorder %s105, %s121
    %p123 = scmp.eq.s32.totalorder %s17, 0
    %p124 = por %p122, %p123
    %s125 = ssub.s32 %s19, %s26
    %p126 = scmp.eq.s32.totalorder %s125, 0
    %s128 = sadd.s32 %s127, 1
    %s129 = scalar_select %p126, %s127, %s128
    %p132 = pneg %p126
    %p133 = scmp.eq.s32.totalorder %s11, 1
    %p134 = por %p132, %p133
    %p135 = scmp.ne.s32.totalorder %s127, %s130
    %p136 = scmp.eq.s32.totalorder %s11, 0
    %p137 = por %p135, %p136
    %p138 = scmp.ne.s32.totalorder %s127, %s130
    %p139 = scmp.eq.s32.totalorder %s16, 1
    %p140 = por %p138, %p139
    %p141 = scmp.ne.s32.totalorder %s130, %s131
    %p142 = scmp.eq.s32.totalorder %s16, 0
    %p143 = por %p141, %p142
    %p144 = scmp.ne.s32.totalorder %s130, %s131
    %p145 = scmp.eq.s32.totalorder %s17, 1
    %p146 = por %p144, %p145
    %p148 = scmp.ne.s32.totalorder %s131, %s147
    %p149 = scmp.eq.s32.totalorder %s17, 0
    %p150 = por %p148, %p149
    %s151 = ssub.s32 %s18, %s30
    %s152 = ssub.s32 %s19, %s26
    %s153 = sor.u32 %s151, %s152
    %p154 = scmp.eq.s32.totalorder %s153, 0
    %s156 = sadd.s32 %s155, 1
    %s157 = scalar_select %p154, %s155, %s156
    %p160 = pneg %p154
    %p161 = scmp.eq.s32.totalorder %s11, 1
    %p162 = por %p160, %p161
    %p163 = scmp.ne.s32.totalorder %s155, %s158
    %p164 = scmp.eq.s32.totalorder %s11, 0
    %p165 = por %p163, %p164
    %p166 = scmp.ne.s32.totalorder %s155, %s158
    %p167 = scmp.eq.s32.totalorder %s16, 1
    %p168 = por %p166, %p167
    %p169 = scmp.ne.s32.totalorder %s158, %s159
    %p170 = scmp.eq.s32.totalorder %s16, 0
    %p171 = por %p169, %p170
    %p172 = scmp.ne.s32.totalorder %s158, %s159
    %p173 = scmp.eq.s32.totalorder %s17, 1
    %p174 = por %p172, %p173
    %p176 = scmp.ne.s32.totalorder %s159, %s175
    %p177 = scmp.eq.s32.totalorder %s17, 0
    %p178 = por %p176, %p177
    %p179 = scmp.le.s32.totalorder 1, %s11
    %p180 = scmp.lt.s32.totalorder %s11, 3
    %p181 = pnand %p179, %p180
    %p182 = pneg %p181
    // Predicated region
    $region9: #{dinov2_forward.10} parent=5 // pred_check
      _
    $region10: #{dinov2_forward.10} parent=5 // pred_check_branch
      %184 = sbr.rel (%p181) target = $region12
    $region11: #{dinov2_forward.10} parent=5 // pred_region
      %s185 = ssub.s32 %s11, 1
      // Predicated region
      $region13: #{dinov2_forward.10} parent=11 // pred_check
        %p186 = pneg %p70
      $region14: #{dinov2_forward.10} parent=11 // pred_check_branch
        %188 = sbr.rel (%p186) target = $region16
      $region15: #{dinov2_forward.10} parent=11 // pred_region
        _
      $region16: #{dinov2_forward.10} parent=11 // pred_fallthru
        _
      // Predicated region
      $region17: #{dinov2_forward.10} parent=11 // pred_check
        %p189 = pneg %p91
      $region18: #{dinov2_forward.10} parent=11 // pred_check_branch
        %191 = sbr.rel (%p189) target = $region20
      $region19: #{dinov2_forward.10} parent=11 // pred_region
        _
      $region20: #{dinov2_forward.10} parent=11 // pred_fallthru
        _
      // Predicated region
      $region21: #{dinov2_forward.10} parent=11 // pred_check
        %p192 = pneg %p117
      $region22: #{dinov2_forward.10} parent=11 // pred_check_branch
        %194 = sbr.rel (%p192) target = $region24
      $region23: #{dinov2_forward.10} parent=11 // pred_region
        %s195 = smul.u32 3, %s21
        %p196 = scmp.lt.s32.totalorder %s195, 2
        %s197 = scalar_select %p196, %s195, 2
        %s198 = smul.addr %s197, 4
        %s199 = scalar_lea.vmem %s3, %s198
        %s200 = smul.u32 3, %s21
      $region24: #{dinov2_forward.10} parent=11 // pred_fallthru
        _
      // Predicated region
      $region25: #{dinov2_forward.10} parent=11 // pred_check
        %p201 = pneg %p143
      $region26: #{dinov2_forward.10} parent=11 // pred_check_branch
        %203 = sbr.rel (%p201) target = $region28
      $region27: #{dinov2_forward.10} parent=11 // pred_region
        %s204 = smul.u32 3, %s21
        %p205 = scmp.lt.s32.totalorder %s204, 2
        %s206 = scalar_select %p205, %s204, 2
        %s207 = scalar_lea.vmem %s4, %s206
        %s208 = smul.u32 3, %s21
      $region28: #{dinov2_forward.10} parent=11 // pred_fallthru
        _
    $region12: #{dinov2_forward.10} parent=5 // pred_fallthru
      _
    %p209 = scmp.lt.s32.totalorder %s11, 2
    // Predicated region
    $region29: #{dinov2_forward.10} parent=5 // pred_check
      %p210 = pneg %p209
    $region30: #{dinov2_forward.10} parent=5 // pred_check_branch
      %212 = sbr.rel (%p210) target = $region32
    $region31: #{dinov2_forward.10} parent=5 // pred_region
      // Predicated region
      $region33: #{dinov2_forward.10} parent=31 // pred_check
        %p213 = pneg %p43
      $region34: #{dinov2_forward.10} parent=31 // pred_check_branch
        %215 = sbr.rel (%p213) target = $region36
      $region35: #{dinov2_forward.10} parent=31 // pred_region
        %s216 = smul.u32 2, %s18
        %p217 = scmp.lt.s32.totalorder %s216, 3
        %s218 = scalar_select %p217, %s216, 3
        %s219 = smul.addr %s218, 8
        %s220 = scalar_lea.vmem %s0, %s219
        %s221 = smul.u32 2, %s18
      $region36: #{dinov2_forward.10} parent=31 // pred_fallthru
        _
    $region32: #{dinov2_forward.10} parent=5 // pred_fallthru
      _
    %p222 = scmp.le.s32.totalorder 1, %s11
    %p223 = scmp.lt.s32.totalorder %s11, 3
    %p224 = pnand %p222, %p223
    %p225 = pneg %p224
    // Predicated region
    $region37: #{dinov2_forward.10} parent=5 // pred_check
      _
    $region38: #{dinov2_forward.10} parent=5 // pred_check_branch
      %227 = sbr.rel (%p224) target = $region40
    $region39: #{dinov2_forward.10} parent=5 // pred_region
      %s228 = ssub.s32 %s11, 1
      %s229 = smul.u32 2, %s20
      %p230 = scmp.lt.s32.totalorder %s229, 3
      %s231 = scalar_select %p230, %s229, 3
      %s232 = smul.addr %s231, 8
      %s233 = scalar_lea.vmem %s0, %s232
      %p234 = pneg %p49
      %p235 = pneg %p46
      %p236 = pneg %p70
      %p237 = pneg %p67
      %p238 = pneg %p91
      %p239 = pneg %p88
      %s240 = smul.u32 3, %s21
      %p241 = scmp.lt.s32.totalorder %s240, 2
      %s242 = scalar_select %p241, %s240, 2
      %s243 = smul.addr %s242, 4
      %s244 = scalar_lea.vmem %s3, %s243
      %p245 = pneg %p117
      %p246 = pneg %p114
      %s247 = smul.u32 3, %s21
      %p248 = scmp.lt.s32.totalorder %s247, 2
      %s249 = scalar_select %p248, %s247, 2
      %s250 = scalar_lea.vmem %s4, %s249
      %p251 = pneg %p143
      %p252 = pneg %p140
      %p253 = pneg %p171
      %p254 = pneg %p168
      %s255 = smul.u32 2, %s20
      %s256 = smul.u32 3, %s21
      %p257 = scmp.lt.s32.totalorder %s255, 3
      %s258 = scalar_select %p257, %s255, 3
      %p259 = scmp.lt.s32.totalorder %s256, 2
      %s260 = scalar_select %p259, %s256, 2
      %s261 = smul.addr %s258, 3
      %s262 = sadd.s32 %s260, %s261
      %s263 = smul.addr %s262, 4
      %s264 = scalar_lea.vmem %s5, %s263
      %s265 = smul.u32 2, %s20
      %p266 = scmp.lt.s32.totalorder %s265, 3
      %s267 = scalar_select %p266, %s265, 3
      %s268 = smul.addr %s267, 8
      %s269 = scalar_lea.vmem %s0, %s268
      %s270 = smul.u32 2, %s20
      %s271 = smul.u32 3, %s21
      %p272 = scmp.lt.s32.totalorder %s271, 2
      %s273 = scalar_select %p272, %s271, 2
      %s274 = smul.addr %s273, 4
      %s275 = scalar_lea.vmem %s3, %s274
      %s276 = smul.u32 3, %s21
      %s277 = smul.u32 3, %s21
      %p278 = scmp.lt.s32.totalorder %s277, 2
      %s279 = scalar_select %p278, %s277, 2
      %s280 = scalar_lea.vmem %s4, %s279
      %s281 = smul.u32 3, %s21
      %s282 = smul.u32 2, %s20
      %s283 = smul.u32 3, %s21
      %p284 = scmp.lt.s32.totalorder %s282, 3
      %s285 = scalar_select %p284, %s282, 3
      %p286 = scmp.lt.s32.totalorder %s283, 2
      %s287 = scalar_select %p286, %s283, 2
      %s288 = smul.addr %s285, 3
      %s289 = sadd.s32 %s287, %s288
      %s290 = smul.addr %s289, 4
      %s291 = scalar_lea.vmem %s5, %s290
      %s292 = smul.u32 2, %s20
      %s293 = smul.u32 3, %s21
      %v295 = vld [vmem:[%s269] sm:$0xff]
      %v296 = vld [vmem:[%s269 + $0x8] sm:$0xff]
      %297 = vadd.xlane.f32.xlu0 %v295
      %v298 = vpop.xlane.xlu0 %297
      %299 = vadd.xlane.f32.xlu0 %v296
      %v300 = vpop.xlane.xlu0 %299
      %v301 = vrcp.pop 128.0
      %v302 = vmul.f32 %v298, %v301
      %v303 = vmul.f32 %v300, %v301
      %v304 = vsub.f32 %v295, %v302
      %v305 = vsub.f32 %v296, %v303
      %v306 = vmul.f32 %v304, %v304
      %v307 = vmul.f32 %v305, %v305
      %308 = vadd.xlane.f32.xlu0 %v306
      %v309 = vpop.xlane.xlu0 %308
      %310 = vadd.xlane.f32.xlu0 %v307
      %v311 = vpop.xlane.xlu0 %310
      %v312 = vmul.f32 %v309, %v301
      %v313 = vmul.f32 %v311, %v301
      %v314 = vadd.f32 %v312, 1e-06
      %v315 = vadd.f32 %v313, 1e-06
      %v316 = vrsqrt.pop %v314
      %v317 = vrsqrt.pop %v315
      %v318 = vmul.f32 %v304, %v316
      %v319 = vmul.f32 %v305, %v317
      %v320 = vld [vmem:[%s1] sm:$0x1]
      %v322 = vlaneseq
      %v323 = vshrl.u32 %v322, 7
      %v324 = vsub.s32 0, %v323
      %v325 = vrot.slane %v320, %v324
      %v327 = vmul.f32 %v318, %v325
      %v328 = vmul.f32 %v319, %v325
      %v329 = vld [vmem:[%s2] sm:$0x1]
      %v331 = vlaneseq
      %v332 = vshrl.u32 %v331, 7
      %v333 = vsub.s32 0, %v332
      %v334 = vrot.slane %v329, %v333
      %v336 = vadd.f32 %v327, %v334
      %v337 = vadd.f32 %v328, %v334
      %v338 = vpack.c.bf16 %v337, %v336
      %v339 = vld [vmem:[%s275] sm:$0xff]
      %v340 = vld [vmem:[%s275 + $0x8] sm:$0xf]
      %v341 = vld [vmem:[%s275 + $0xc] sm:$0xff]
      %v342 = vld [vmem:[%s275 + $0x14] sm:$0xf]
      %v343 = vld [vmem:[%s275 + $0x18] sm:$0xff]
      %v344 = vld [vmem:[%s275 + $0x20] sm:$0xf]
      %v345 = vld [vmem:[%s275 + $0x24] sm:$0xff]
      %v346 = vld [vmem:[%s275 + $0x2c] sm:$0xf]
      %v347 = vld [vmem:[%s275 + $0x30] sm:$0xff]
      %v348 = vld [vmem:[%s275 + $0x38] sm:$0xf]
      %v349 = vld [vmem:[%s275 + $0x3c] sm:$0xff]
      %v350 = vld [vmem:[%s275 + $0x44] sm:$0xf]
      %v351 = vld [vmem:[%s275 + $0x48] sm:$0xff]
      %v352 = vld [vmem:[%s275 + $0x50] sm:$0xf]
      %v353 = vld [vmem:[%s275 + $0x54] sm:$0xff]
      %v354 = vld [vmem:[%s275 + $0x5c] sm:$0xf]
      %v355 = vld [vmem:[%s275 + $0x60] sm:$0xff]
      %v356 = vld [vmem:[%s275 + $0x68] sm:$0xf]
      %v357 = vld [vmem:[%s275 + $0x6c] sm:$0xff]
      %v358 = vld [vmem:[%s275 + $0x74] sm:$0xf]
      %v359 = vld [vmem:[%s275 + $0x78] sm:$0xff]
      %v360 = vld [vmem:[%s275 + $0x80] sm:$0xf]
      %v361 = vld [vmem:[%s275 + $0x84] sm:$0xff]
      %v362 = vld [vmem:[%s275 + $0x8c] sm:$0xf]
      %v363 = vld [vmem:[%s275 + $0x90] sm:$0xff]
      %v364 = vld [vmem:[%s275 + $0x98] sm:$0xf]
      %v365 = vld [vmem:[%s275 + $0x9c] sm:$0xff]
      %v366 = vld [vmem:[%s275 + $0xa4] sm:$0xf]
      %v367 = vld [vmem:[%s275 + $0xa8] sm:$0xff]
      %v368 = vld [vmem:[%s275 + $0xb0] sm:$0xf]
      %v369 = vld [vmem:[%s275 + $0xb4] sm:$0xff]
      %v370 = vld [vmem:[%s275 + $0xbc] sm:$0xf]
      %v371 = vld [vmem:[%s280] sm:$0x7]
      %v373 = vlaneseq
      %v374 = vshrl.u32 %v373, 7
      %v375 = vsub.s32 0, %v374
      %v376 = vrot.slane %v371, %v375
      %v377 = vlaneseq
      %v378 = vshrl.u32 %v377, 7
      %v379 = vsub.s32 1, %v378
      %v380 = vrot.slane %v371, %v379
      %v381 = vlaneseq
      %v382 = vshrl.u32 %v381, 7
      %v383 = vsub.s32 2, %v382
      %v384 = vrot.slane %v371, %v383
      %v420 = vunpack.c.l.b16 %v339
      %v421 = vunpack.c.h.b16 %v339
      %v422 = vunpack.c.l.b16 %v340
      %v423 = vunpack.c.l.b16 %v341
      %v424 = vunpack.c.h.b16 %v341
      %v425 = vunpack.c.l.b16 %v342
      %v426 = vunpack.c.l.b16 %v343
      %v427 = vunpack.c.h.b16 %v343
      %v428 = vunpack.c.l.b16 %v344
      %v429 = vunpack.c.l.b16 %v345
      %v430 = vunpack.c.h.b16 %v345
      %v431 = vunpack.c.l.b16 %v346
      %v432 = vunpack.c.l.b16 %v347
      %v433 = vunpack.c.h.b16 %v347
      %v434 = vunpack.c.l.b16 %v348
      %v435 = vunpack.c.l.b16 %v349
      %v436 = vunpack.c.h.b16 %v349
      %v437 = vunpack.c.l.b16 %v350
      %v438 = vunpack.c.l.b16 %v351
      %v439 = vunpack.c.h.b16 %v351
      %v440 = vunpack.c.l.b16 %v352
      %v441 = vunpack.c.l.b16 %v353
      %v442 = vunpack.c.h.b16 %v353
      %v443 = vunpack.c.l.b16 %v354
      %v444 = vunpack.c.l.b16 %v355
      %v445 = vunpack.c.h.b16 %v355
      %v446 = vunpack.c.l.b16 %v356
      %v447 = vunpack.c.l.b16 %v357
      %v448 = vunpack.c.h.b16 %v357
      %v449 = vunpack.c.l.b16 %v358
      %v450 = vunpack.c.l.b16 %v359
      %v451 = vunpack.c.h.b16 %v359
      %v452 = vunpack.c.l.b16 %v360
      %v453 = vunpack.c.l.b16 %v361
      %v454 = vunpack.c.h.b16 %v361
      %v455 = vunpack.c.l.b16 %v362
      %v456 = vunpack.c.l.b16 %v363
      %v457 = vunpack.c.h.b16 %v363
      %v458 = vunpack.c.l.b16 %v364
      %v459 = vunpack.c.l.b16 %v365
      %v460 = vunpack.c.h.b16 %v365
      %v461 = vunpack.c.l.b16 %v366
      %v462 = vunpack.c.l.b16 %v367
      %v463 = vunpack.c.h.b16 %v367
      %v464 = vunpack.c.l.b16 %v368
      %v465 = vunpack.c.l.b16 %v369
      %v466 = vunpack.c.h.b16 %v369
      %v467 = vunpack.c.l.b16 %v370
      %v468 = vpack.c.b16 %v423, %v420
      %v469 = vpack.c.b16 %v424, %v421
      %v470 = vpack.c.b16 %v425, %v422
      %v471 = vpack.c.b16 %v429, %v426
      %v472 = vpack.c.b16 %v430, %v427
      %v473 = vpack.c.b16 %v431, %v428
      %v474 = vpack.c.b16 %v435, %v432
      %v475 = vpack.c.b16 %v436, %v433
      %v476 = vpack.c.b16 %v437, %v434
      %v477 = vpack.c.b16 %v441, %v438
      %v478 = vpack.c.b16 %v442, %v439
      %v479 = vpack.c.b16 %v443, %v440
      %v480 = vpack.c.b16 %v447, %v444
      %v481 = vpack.c.b16 %v448, %v445
      %v482 = vpack.c.b16 %v449, %v446
      %v483 = vpack.c.b16 %v453, %v450
      %v484 = vpack.c.b16 %v454, %v451
      %v485 = vpack.c.b16 %v455, %v452
      %v486 = vpack.c.b16 %v459, %v456
      %v487 = vpack.c.b16 %v460, %v457
      %v488 = vpack.c.b16 %v461, %v458
      %v489 = vpack.c.b16 %v465, %v462
      %v490 = vpack.c.b16 %v466, %v463
      %v491 = vpack.c.b16 %v467, %v464
      %516 = vmatprep.subr.bf16.mxu0 %v490
      %517 = vmatpush1.bf16.msra.mxu0 %v489
      %518 = vmatprep.subr.bf16.mxu0 %v487
      %519 = vmatpush1.bf16.msra.mxu0 %v486
      %520 = vmatprep.subr.bf16.mxu0 %v484
      %521 = vmatpush1.bf16.msra.mxu0 %v483
      %522 = vmatprep.subr.bf16.mxu0 %v481
      %523 = vmatpush1.bf16.msra.mxu0 %v480
      %524 = vmatprep.subr.bf16.mxu0 %v478
      %525 = vmatpush1.bf16.msra.mxu0 %v477
      %526 = vmatprep.subr.bf16.mxu0 %v475
      %527 = vmatpush1.bf16.msra.mxu0 %v474
      %528 = vmatprep.subr.bf16.mxu0 %v472
      %529 = vmatpush1.bf16.msra.mxu0 %v471
      %530 = vmatprep.subr.bf16.mxu0 %v469
      %531 = vmatpush1.bf16.msra.mxu0 %v468
      %532 = vmatprep.subr.bf16.mxu0 0
      %533 = vmatpush2.bf16.msra.mxu0 0
      %534 = vmatprep.subr.bf16.mxu0 0
      %535 = vmatpush2.bf16.msra.mxu0 0
      %536 = vmatprep.subr.bf16.mxu0 0
      %537 = vmatpush2.bf16.msra.mxu0 0
      %538 = vmatprep.subr.bf16.mxu0 0
      %539 = vmatpush2.bf16.msra.mxu0 0
      %540 = vmatprep.subr.bf16.mxu0 0
      %541 = vmatpush2.bf16.msra.mxu0 0
      %542 = vmatprep.subr.bf16.mxu0 0
      %543 = vmatpush2.bf16.msra.mxu0 0
      %544 = vmatprep.subr.bf16.mxu0 0
      %545 = vmatpush2.bf16.msra.mxu0 0
      %546 = vmatprep.subr.bf16.mxu0 0
      %547 = vmatpush2.bf16.msra.mxu0 0
      %548 = vmatprep.mubr.bf16.mxu0 0
      %549 = vmatmul.mubr.bf16.gmra.mxu0 %v338
      %v550 = vpop.f32.mrf.mxu0
      %v551 = vadd.f32 %v376, %v550
      %v552 = vpop.f32.mrf.mxu0
      %v553 = vadd.f32 %v380, %v552
      %v554 = vpop.f32.mrf.mxu0
      %v555 = vadd.f32 %v376, %v554
      %v556 = vpop.f32.mrf.mxu0
      %v557 = vadd.f32 %v380, %v556
      %558 = vdwg.mxu0
      %559 = vmatprep.subr.bf16.mxu0 0
      %560 = vmatpush1.bf16.msra.mxu0 %v491
      %561 = vmatprep.subr.bf16.mxu0 0
      %562 = vmatpush1.bf16.msra.mxu0 %v488
      %563 = vmatprep.subr.bf16.mxu0 0
      %564 = vmatpush1.bf16.msra.mxu0 %v485
      %565 = vmatprep.subr.bf16.mxu0 0
      %566 = vmatpush1.bf16.msra.mxu0 %v482
      %567 = vmatprep.subr.bf16.mxu0 0
      %568 = vmatpush1.bf16.msra.mxu0 %v479
      %569 = vmatprep.subr.bf16.mxu0 0
      %570 = vmatpush1.bf16.msra.mxu0 %v476
      %571 = vmatprep.subr.bf16.mxu0 0
      %572 = vmatpush1.bf16.msra.mxu0 %v473
      %573 = vmatprep.subr.bf16.mxu0 0
      %574 = vmatpush1.bf16.msra.mxu0 %v470
      %575 = vmatprep.subr.bf16.mxu0 0
      %576 = vmatpush2.bf16.msra.mxu0 0
      %577 = vmatprep.subr.bf16.mxu0 0
      %578 = vmatpush2.bf16.msra.mxu0 0
      %579 = vmatprep.subr.bf16.mxu0 0
      %580 = vmatpush2.bf16.msra.mxu0 0
      %581 = vmatprep.subr.bf16.mxu0 0
      %582 = vmatpush2.bf16.msra.mxu0 0
      %583 = vmatprep.subr.bf16.mxu0 0
      %584 = vmatpush2.bf16.msra.mxu0 0
      %585 = vmatprep.subr.bf16.mxu0 0
      %586 = vmatpush2.bf16.msra.mxu0 0
      %587 = vmatprep.subr.bf16.mxu0 0
      %588 = vmatpush2.bf16.msra.mxu0 0
      %589 = vmatprep.subr.bf16.mxu0 0
      %590 = vmatpush2.bf16.msra.mxu0 0
      %591 = vmatprep.mubr.bf16.mxu0 0
      %592 = vmatmul.mubr.bf16.gmra.mxu0 %v338
      %v593 = vpop.f32.mrf.mxu0
      %v594 = vadd.f32 %v384, %v593
      %v595 = vpop.f32.mrf.mxu0
      %v596 = vpop.f32.mrf.mxu0
      %v597 = vadd.f32 %v384, %v596
      %v598 = vpop.f32.mrf.mxu0
      %599 = vdwg.mxu0
      %v600 = vpack.c.bf16 %v555, %v551
      %v601 = vpack.c.bf16 %v557, %v553
      %v602 = vpack.c.bf16 %v597, %v594
      %v606 = vunpack.c.l.b16 %v600
      %v607 = vunpack.c.l.b16 %v601
      %v608 = vunpack.c.l.b16 %v602
      %v609 = vunpack.c.h.b16 %v600
      %v610 = vunpack.c.h.b16 %v601
      %v611 = vunpack.c.h.b16 %v602
      %v612 = vpack.c.b16 %v607, %v606
      %v613 = vpack.c.b16 %v608, %v608
      %v614 = vpack.c.b16 %v610, %v609
      %v615 = vpack.c.b16 %v611, %v611
      %620 = vst [vmem:[%s291] sm:$0xff] %v612
      %621 = vst [vmem:[%s291 + $0x8] sm:$0xf] %v613
      %622 = vst [vmem:[%s291 + $0xc] sm:$0xff] %v614
      %623 = vst [vmem:[%s291 + $0x14] sm:$0xf] %v615
      %s624 = smul.u32 2, %s20
      %s625 = smul.u32 3, %s21
      %p626 = scmp.lt.s32.totalorder %s624, 3
      %s627 = scalar_select %p626, %s624, 3
      %p628 = scmp.lt.s32.totalorder %s625, 2
      %s629 = scalar_select %p628, %s625, 2
      %s630 = smul.addr %s627, 3
      %s631 = sadd.s32 %s629, %s630
      %s632 = smul.addr %s631, 4
      %s633 = scalar_lea.vmem %s5, %s632
      // Predicated region
      $region41: #{dinov2_forward.10} parent=39 // pred_check
        %p634 = pneg %p168
      $region42: #{dinov2_forward.10} parent=39 // pred_check_branch
        %636 = sbr.rel (%p634) target = $region44
      $region43: #{dinov2_forward.10} parent=39 // pred_region
        %s637 = smul.u32 2, %s20
        %s638 = smul.u32 3, %s21
      $region44: #{dinov2_forward.10} parent=39 // pred_fallthru
        _
    $region40: #{dinov2_forward.10} parent=5 // pred_fallthru
      _
    %p639 = scmp.le.s32.totalorder 2, %s11
    // Predicated region
    $region45: #{dinov2_forward.10} parent=5 // pred_check
      %p640 = pneg %p639
    $region46: #{dinov2_forward.10} parent=5 // pred_check_branch
      %642 = sbr.rel (%p640) target = $region48
    $region47: #{dinov2_forward.10} parent=5 // pred_region
      %s643 = ssub.s32 %s11, 2
      // Predicated region
      $region49: #{dinov2_forward.10} parent=47 // pred_check
        %p644 = pneg %p174
      $region50: #{dinov2_forward.10} parent=47 // pred_check_branch
        %646 = sbr.rel (%p644) target = $region52
      $region51: #{dinov2_forward.10} parent=47 // pred_region
        %s647 = smul.u32 2, %s22
        %s648 = smul.u32 3, %s23
        %p649 = scmp.lt.s32.totalorder %s647, 3
        %s650 = scalar_select %p649, %s647, 3
        %p651 = scmp.lt.s32.totalorder %s648, 2
        %s652 = scalar_select %p651, %s648, 2
        %s653 = smul.addr %s650, 3
        %s654 = sadd.s32 %s652, %s653
        %s655 = smul.addr %s654, 4
        %s656 = scalar_lea.vmem %s5, %s655
      $region52: #{dinov2_forward.10} parent=47 // pred_fallthru
        _
    $region48: #{dinov2_forward.10} parent=5 // pred_fallthru
      _
  $region6: #{dinov2_forward.10} parent=0 // loop_footer
    %s15 = sadd.s32 1, %s11
  $region7: #{dinov2_forward.10} parent=0 // loop_footer_branch
    %10 = sbr.rel target = $region3
  $region8: #{dinov2_forward.10} parent=0 // loop_exit
    _

// kernel: dinov2_forward.9
$region0: #{dinov2_forward.9}
  #allocation0 [shape = 'u32[]', space=smem, size = 0x4, offset = 0x4, fixed_abs, tag = 'smem constant byte address 0x4 - core index']
  #allocation1 [shape = 'u32[144,128]{1,0:T(1,128)}', space=vmem, size = 0x12000, scoped, tag = 'internal scratch']
  %s0 = inlined_call_operand.vmem [shape: f32[8,640], index: 0, kind: input, shape index: {}]
  %s1 = inlined_call_operand.vmem [shape: bf16[640,128], index: 1, kind: input, shape index: {}]
  %s2 = inlined_call_operand.vmem [shape: f32[1,128], index: 2, kind: input, shape index: {}]
  %s3 = inlined_call_operand.vmem [shape: f32[8,128], index: 3, kind: input, shape index: {}]
  %s4 = inlined_call_operand.vmem [shape: f32[8,128], index: 4, kind: output, shape index: {}]
  %s5 = sld [smem:[#allocation0]]
  $region26: #{dinov2_forward.9} parent=0
    _
  %s7 = ssub.s32 1, %s5
  %s8 = scalar_select 0, %s7, %s5
  // Predicated region
  $region2: #{dinov2_forward.9} parent=0 // pred_check
    _
  $region3: #{dinov2_forward.9} parent=0 // pred_check_branch
    %10 = sbr.rel (0) target = $region5
  $region4: #{dinov2_forward.9} parent=0 // pred_region
    _
  $region5: #{dinov2_forward.9} parent=0 // pred_fallthru
    _
  // Predicated region
  $region6: #{dinov2_forward.9} parent=0 // pred_check
    _
  $region7: #{dinov2_forward.9} parent=0 // pred_check_branch
    %12 = sbr.rel (0) target = $region9
  $region8: #{dinov2_forward.9} parent=0 // pred_region
    _
  $region9: #{dinov2_forward.9} parent=0 // pred_fallthru
    _
  // Predicated region
  $region10: #{dinov2_forward.9} parent=0 // pred_check
    _
  $region11: #{dinov2_forward.9} parent=0 // pred_check_branch
    %14 = sbr.rel (0) target = $region13
  $region12: #{dinov2_forward.9} parent=0 // pred_region
    _
  $region13: #{dinov2_forward.9} parent=0 // pred_fallthru
    _
  // Predicated region
  $region14: #{dinov2_forward.9} parent=0 // pred_check
    _
  $region15: #{dinov2_forward.9} parent=0 // pred_check_branch
    %16 = sbr.rel (0) target = $region17
  $region16: #{dinov2_forward.9} parent=0 // pred_region
    _
  $region17: #{dinov2_forward.9} parent=0 // pred_fallthru
    _
  %v18 = vld [vmem:[%s0] sm:$0xff]
  %v19 = vld [vmem:[%s0 + $0x8] sm:$0xff]
  %v20 = vld [vmem:[%s0 + $0x10] sm:$0xff]
  %v21 = vld [vmem:[%s0 + $0x18] sm:$0xff]
  %v22 = vld [vmem:[%s0 + $0x20] sm:$0xff]
  %v23 = vpack.c.bf16 %v18, %v18
  %v24 = vpack.c.bf16 %v19, %v19
  %v25 = vpack.c.bf16 %v20, %v20
  %v26 = vpack.c.bf16 %v21, %v21
  %v27 = vpack.c.bf16 %v22, %v22
  %v28 = vld [vmem:[%s1] sm:$0xf]
  %v29 = vld [vmem:[%s1 + $0x4] sm:$0xf]
  %v30 = vld [vmem:[%s1 + $0x8] sm:$0xf]
  %v31 = vld [vmem:[%s1 + $0xc] sm:$0xf]
  %v32 = vld [vmem:[%s1 + $0x10] sm:$0xf]
  %v33 = vld [vmem:[%s1 + $0x14] sm:$0xf]
  %v34 = vld [vmem:[%s1 + $0x18] sm:$0xf]
  %v35 = vld [vmem:[%s1 + $0x1c] sm:$0xf]
  %v36 = vld [vmem:[%s1 + $0x20] sm:$0xf]
  %v37 = vld [vmem:[%s1 + $0x24] sm:$0xf]
  %v38 = vld [vmem:[%s1 + $0x28] sm:$0xf]
  %v39 = vld [vmem:[%s1 + $0x2c] sm:$0xf]
  %v40 = vld [vmem:[%s1 + $0x30] sm:$0xf]
  %v41 = vld [vmem:[%s1 + $0x34] sm:$0xf]
  %v42 = vld [vmem:[%s1 + $0x38] sm:$0xf]
  %v43 = vld [vmem:[%s1 + $0x3c] sm:$0xf]
  %v44 = vld [vmem:[%s1 + $0x40] sm:$0xf]
  %v45 = vld [vmem:[%s1 + $0x44] sm:$0xf]
  %v46 = vld [vmem:[%s1 + $0x48] sm:$0xf]
  %v47 = vld [vmem:[%s1 + $0x4c] sm:$0xf]
  %v48 = vld [vmem:[%s1 + $0x50] sm:$0xf]
  %v49 = vld [vmem:[%s1 + $0x54] sm:$0xf]
  %v50 = vld [vmem:[%s1 + $0x58] sm:$0xf]
  %v51 = vld [vmem:[%s1 + $0x5c] sm:$0xf]
  %v52 = vld [vmem:[%s1 + $0x60] sm:$0xf]
  %v53 = vld [vmem:[%s1 + $0x64] sm:$0xf]
  %v54 = vld [vmem:[%s1 + $0x68] sm:$0xf]
  %v55 = vld [vmem:[%s1 + $0x6c] sm:$0xf]
  %v56 = vld [vmem:[%s1 + $0x70] sm:$0xf]
  %v57 = vld [vmem:[%s1 + $0x74] sm:$0xf]
  %v58 = vld [vmem:[%s1 + $0x78] sm:$0xf]
  %v59 = vld [vmem:[%s1 + $0x7c] sm:$0xf]
  %v60 = vld [vmem:[%s1 + $0x80] sm:$0xf]
  %v61 = vld [vmem:[%s1 + $0x84] sm:$0xf]
  %v62 = vld [vmem:[%s1 + $0x88] sm:$0xf]
  %v63 = vld [vmem:[%s1 + $0x8c] sm:$0xf]
  %v64 = vld [vmem:[%s1 + $0x90] sm:$0xf]
  %v65 = vld [vmem:[%s1 + $0x94] sm:$0xf]
  %v66 = vld [vmem:[%s1 + $0x98] sm:$0xf]
  %v67 = vld [vmem:[%s1 + $0x9c] sm:$0xf]
  %v68 = vld [vmem:[%s1 + $0xa0] sm:$0xf]
  %v69 = vld [vmem:[%s1 + $0xa4] sm:$0xf]
  %v70 = vld [vmem:[%s1 + $0xa8] sm:$0xf]
  %v71 = vld [vmem:[%s1 + $0xac] sm:$0xf]
  %v72 = vld [vmem:[%s1 + $0xb0] sm:$0xf]
  %v73 = vld [vmem:[%s1 + $0xb4] sm:$0xf]
  %v74 = vld [vmem:[%s1 + $0xb8] sm:$0xf]
  %v75 = vld [vmem:[%s1 + $0xbc] sm:$0xf]
  %v76 = vld [vmem:[%s1 + $0xc0] sm:$0xf]
  %v77 = vld [vmem:[%s1 + $0xc4] sm:$0xf]
  %v78 = vld [vmem:[%s1 + $0xc8] sm:$0xf]
  %v79 = vld [vmem:[%s1 + $0xcc] sm:$0xf]
  %v80 = vld [vmem:[%s1 + $0xd0] sm:$0xf]
  %v81 = vld [vmem:[%s1 + $0xd4] sm:$0xf]
  %v82 = vld [vmem:[%s1 + $0xd8] sm:$0xf]
  %v83 = vld [vmem:[%s1 + $0xdc] sm:$0xf]
  %v84 = vld [vmem:[%s1 + $0xe0] sm:$0xf]
  %v85 = vld [vmem:[%s1 + $0xe4] sm:$0xf]
  %v86 = vld [vmem:[%s1 + $0xe8] sm:$0xf]
  %v87 = vld [vmem:[%s1 + $0xec] sm:$0xf]
  %v88 = vld [vmem:[%s1 + $0xf0] sm:$0xf]
  %v89 = vld [vmem:[%s1 + $0xf4] sm:$0xf]
  %v90 = vld [vmem:[%s1 + $0xf8] sm:$0xf]
  %v91 = vld [vmem:[%s1 + $0xfc] sm:$0xf]
  %v92 = vld [vmem:[%s1 + $0x100] sm:$0xf]
  %v93 = vld [vmem:[%s1 + $0x104] sm:$0xf]
  %v94 = vld [vmem:[%s1 + $0x108] sm:$0xf]
  %v95 = vld [vmem:[%s1 + $0x10c] sm:$0xf]
  %v96 = vld [vmem:[%s1 + $0x110] sm:$0xf]
  %v97 = vld [vmem:[%s1 + $0x114] sm:$0xf]
  %v98 = vld [vmem:[%s1 + $0x118] sm:$0xf]
  %v99 = vld [vmem:[%s1 + $0x11c] sm:$0xf]
  %v100 = vld [vmem:[%s1 + $0x120] sm:$0xf]
  %v101 = vld [vmem:[%s1 + $0x124] sm:$0xf]
  %v102 = vld [vmem:[%s1 + $0x128] sm:$0xf]
  %v103 = vld [vmem:[%s1 + $0x12c] sm:$0xf]
  %v104 = vld [vmem:[%s1 + $0x130] sm:$0xf]
  %v105 = vld [vmem:[%s1 + $0x134] sm:$0xf]
  %v106 = vld [vmem:[%s1 + $0x138] sm:$0xf]
  %v107 = vld [vmem:[%s1 + $0x13c] sm:$0xf]
  %v108 = vld [vmem:[%s2] sm:$0x1]
  %v110 = vlaneseq
  %v111 = vshrl.u32 %v110, 7
  %v112 = vsub.s32 0, %v111
  %v113 = vrot.slane %v108, %v112
  %v195 = vunpack.c.l.b16 %v28
  %v196 = vunpack.c.l.b16 %v29
  %v197 = vunpack.c.l.b16 %v30
  %v198 = vunpack.c.l.b16 %v31
  %v199 = vunpack.c.l.b16 %v32
  %v200 = vunpack.c.l.b16 %v33
  %v201 = vunpack.c.l.b16 %v34
  %v202 = vunpack.c.l.b16 %v35
  %v203 = vunpack.c.l.b16 %v36
  %v204 = vunpack.c.l.b16 %v37
  %v205 = vunpack.c.l.b16 %v38
  %v206 = vunpack.c.l.b16 %v39
  %v207 = vunpack.c.l.b16 %v40
  %v208 = vunpack.c.l.b16 %v41
  %v209 = vunpack.c.l.b16 %v42
  %v210 = vunpack.c.l.b16 %v43
  %v211 = vunpack.c.l.b16 %v44
  %v212 = vunpack.c.l.b16 %v45
  %v213 = vunpack.c.l.b16 %v46
  %v214 = vunpack.c.l.b16 %v47
  %v215 = vunpack.c.l.b16 %v48
  %v216 = vunpack.c.l.b16 %v49
  %v217 = vunpack.c.l.b16 %v50
  %v218 = vunpack.c.l.b16 %v51
  %v219 = vunpack.c.l.b16 %v52
  %v220 = vunpack.c.l.b16 %v53
  %v221 = vunpack.c.l.b16 %v54
  %v222 = vunpack.c.l.b16 %v55
  %v223 = vunpack.c.l.b16 %v56
  %v224 = vunpack.c.l.b16 %v57
  %v225 = vunpack.c.l.b16 %v58
  %v226 = vunpack.c.l.b16 %v59
  %v227 = vunpack.c.l.b16 %v60
  %v228 = vunpack.c.l.b16 %v61
  %v229 = vunpack.c.l.b16 %v62
  %v230 = vunpack.c.l.b16 %v63
  %v231 = vunpack.c.l.b16 %v64
  %v232 = vunpack.c.l.b16 %v65
  %v233 = vunpack.c.l.b16 %v66
  %v234 = vunpack.c.l.b16 %v67
  %v235 = vunpack.c.l.b16 %v68
  %v236 = vunpack.c.l.b16 %v69
  %v237 = vunpack.c.l.b16 %v70
  %v238 = vunpack.c.l.b16 %v71
  %v239 = vunpack.c.l.b16 %v72
  %v240 = vunpack.c.l.b16 %v73
  %v241 = vunpack.c.l.b16 %v74
  %v242 = vunpack.c.l.b16 %v75
  %v243 = vunpack.c.l.b16 %v76
  %v244 = vunpack.c.l.b16 %v77
  %v245 = vunpack.c.l.b16 %v78
  %v246 = vunpack.c.l.b16 %v79
  %v247 = vunpack.c.l.b16 %v80
  %v248 = vunpack.c.l.b16 %v81
  %v249 = vunpack.c.l.b16 %v82
  %v250 = vunpack.c.l.b16 %v83
  %v251 = vunpack.c.l.b16 %v84
  %v252 = vunpack.c.l.b16 %v85
  %v253 = vunpack.c.l.b16 %v86
  %v254 = vunpack.c.l.b16 %v87
  %v255 = vunpack.c.l.b16 %v88
  %v256 = vunpack.c.l.b16 %v89
  %v257 = vunpack.c.l.b16 %v90
  %v258 = vunpack.c.l.b16 %v91
  %v259 = vunpack.c.l.b16 %v92
  %v260 = vunpack.c.l.b16 %v93
  %v261 = vunpack.c.l.b16 %v94
  %v262 = vunpack.c.l.b16 %v95
  %v263 = vunpack.c.l.b16 %v96
  %v264 = vunpack.c.l.b16 %v97
  %v265 = vunpack.c.l.b16 %v98
  %v266 = vunpack.c.l.b16 %v99
  %v267 = vunpack.c.l.b16 %v100
  %v268 = vunpack.c.l.b16 %v101
  %v269 = vunpack.c.l.b16 %v102
  %v270 = vunpack.c.l.b16 %v103
  %v271 = vunpack.c.l.b16 %v104
  %v272 = vunpack.c.l.b16 %v105
  %v273 = vunpack.c.l.b16 %v106
  %v274 = vunpack.c.l.b16 %v107
  %v275 = vpack.c.b16 %v196, %v195
  %v276 = vpack.c.b16 %v198, %v197
  %v277 = vpack.c.b16 %v200, %v199
  %v278 = vpack.c.b16 %v202, %v201
  %v279 = vpack.c.b16 %v204, %v203
  %v280 = vpack.c.b16 %v206, %v205
  %v281 = vpack.c.b16 %v208, %v207
  %v282 = vpack.c.b16 %v210, %v209
  %v283 = vpack.c.b16 %v212, %v211
  %v284 = vpack.c.b16 %v214, %v213
  %v285 = vpack.c.b16 %v216, %v215
  %v286 = vpack.c.b16 %v218, %v217
  %v287 = vpack.c.b16 %v220, %v219
  %v288 = vpack.c.b16 %v222, %v221
  %v289 = vpack.c.b16 %v224, %v223
  %v290 = vpack.c.b16 %v226, %v225
  %v291 = vpack.c.b16 %v228, %v227
  %v292 = vpack.c.b16 %v230, %v229
  %v293 = vpack.c.b16 %v232, %v231
  %v294 = vpack.c.b16 %v234, %v233
  %v295 = vpack.c.b16 %v236, %v235
  %v296 = vpack.c.b16 %v238, %v237
  %v297 = vpack.c.b16 %v240, %v239
  %v298 = vpack.c.b16 %v242, %v241
  %v299 = vpack.c.b16 %v244, %v243
  %v300 = vpack.c.b16 %v246, %v245
  %v301 = vpack.c.b16 %v248, %v247
  %v302 = vpack.c.b16 %v250, %v249
  %v303 = vpack.c.b16 %v252, %v251
  %v304 = vpack.c.b16 %v254, %v253
  %v305 = vpack.c.b16 %v256, %v255
  %v306 = vpack.c.b16 %v258, %v257
  %v307 = vpack.c.b16 %v260, %v259
  %v308 = vpack.c.b16 %v262, %v261
  %v309 = vpack.c.b16 %v264, %v263
  %v310 = vpack.c.b16 %v266, %v265
  %v311 = vpack.c.b16 %v268, %v267
  %v312 = vpack.c.b16 %v270, %v269
  %v313 = vpack.c.b16 %v272, %v271
  %v314 = vpack.c.b16 %v274, %v273
  %355 = vmatprep.subr.bf16.mxu0 0
  %356 = vmatpush1.bf16.msra.mxu0 %v282
  %357 = vmatprep.subr.bf16.mxu0 0
  %358 = vmatpush1.bf16.msra.mxu0 %v281
  %359 = vmatprep.subr.bf16.mxu0 0
  %360 = vmatpush1.bf16.msra.mxu0 %v280
  %361 = vmatprep.subr.bf16.mxu0 0
  %362 = vmatpush1.bf16.msra.mxu0 %v279
  %363 = vmatprep.subr.bf16.mxu0 0
  %364 = vmatpush1.bf16.msra.mxu0 %v278
  %365 = vmatprep.subr.bf16.mxu0 0
  %366 = vmatpush1.bf16.msra.mxu0 %v277
  %367 = vmatprep.subr.bf16.mxu0 0
  %368 = vmatpush1.bf16.msra.mxu0 %v276
  %369 = vmatprep.subr.bf16.mxu0 0
  %370 = vmatpush1.bf16.msra.mxu0 %v275
  %371 = vmatprep.subr.bf16.mxu0 0
  %372 = vmatpush2.bf16.msra.mxu0 %v290
  %373 = vmatprep.subr.bf16.mxu0 0
  %374 = vmatpush2.bf16.msra.mxu0 %v289
  %375 = vmatprep.subr.bf16.mxu0 0
  %376 = vmatpush2.bf16.msra.mxu0 %v288
  %377 = vmatprep.subr.bf16.mxu0 0
  %378 = vmatpush2.bf16.msra.mxu0 %v287
  %379 = vmatprep.subr.bf16.mxu0 0
  %380 = vmatpush2.bf16.msra.mxu0 %v286
  %381 = vmatprep.subr.bf16.mxu0 0
  %382 = vmatpush2.bf16.msra.mxu0 %v285
  %383 = vmatprep.subr.bf16.mxu0 0
  %384 = vmatpush2.bf16.msra.mxu0 %v284
  %385 = vmatprep.subr.bf16.mxu0 0
  %386 = vmatpush2.bf16.msra.mxu0 %v283
  %387 = vmatprep.mubr.bf16.mxu0 %v24
  %388 = vmatmul.mubr.bf16.gmra.mxu0 %v23
  %v389 = vpop.f32.mrf.mxu0
  %v390 = vadd.f32 %v113, %v389
  %v391 = vpop.f32.mrf.mxu0
  %v392 = vpop.f32.mrf.mxu0
  %v393 = vpop.f32.mrf.mxu0
  %394 = vdwg.mxu0
  %395 = vmatprep.subr.bf16.mxu0 0
  %396 = vmatpush1.bf16.msra.mxu0 %v298
  %397 = vmatprep.subr.bf16.mxu0 0
  %398 = vmatpush1.bf16.msra.mxu0 %v297
  %399 = vmatprep.subr.bf16.mxu0 0
  %400 = vmatpush1.bf16.msra.mxu0 %v296
  %401 = vmatprep.subr.bf16.mxu0 0
  %402 = vmatpush1.bf16.msra.mxu0 %v295
  %403 = vmatprep.subr.bf16.mxu0 0
  %404 = vmatpush1.bf16.msra.mxu0 %v294
  %405 = vmatprep.subr.bf16.mxu0 0
  %406 = vmatpush1.bf16.msra.mxu0 %v293
  %407 = vmatprep.subr.bf16.mxu0 0
  %408 = vmatpush1.bf16.msra.mxu0 %v292
  %409 = vmatprep.subr.bf16.mxu0 0
  %410 = vmatpush1.bf16.msra.mxu0 %v291
  %411 = vmatprep.subr.bf16.mxu0 0
  %412 = vmatpush2.bf16.msra.mxu0 %v306
  %413 = vmatprep.subr.bf16.mxu0 0
  %414 = vmatpush2.bf16.msra.mxu0 %v305
  %415 = vmatprep.subr.bf16.mxu0 0
  %416 = vmatpush2.bf16.msra.mxu0 %v304
  %417 = vmatprep.subr.bf16.mxu0 0
  %418 = vmatpush2.bf16.msra.mxu0 %v303
  %419 = vmatprep.subr.bf16.mxu0 0
  %420 = vmatpush2.bf16.msra.mxu0 %v302
  %421 = vmatprep.subr.bf16.mxu0 0
  %422 = vmatpush2.bf16.msra.mxu0 %v301
  %423 = vmatprep.subr.bf16.mxu0 0
  %424 = vmatpush2.bf16.msra.mxu0 %v300
  %425 = vmatprep.subr.bf16.mxu0 0
  %426 = vmatpush2.bf16.msra.mxu0 %v299
  %427 = vmatprep.mubr.bf16.mxu0 %v26
  %428 = vmatmul.mubr.bf16.gmra.mxu0 %v25
  %v429 = vpop.f32.mrf.mxu0
  %v430 = vadd.f32 %v390, %v429
  %v431 = vpop.f32.mrf.mxu0
  %v432 = vpop.f32.mrf.mxu0
  %v433 = vpop.f32.mrf.mxu0
  %434 = vdwg.mxu0
  %435 = vmatprep.subr.bf16.mxu0 0
  %436 = vmatpush1.bf16.msra.mxu0 %v314
  %437 = vmatprep.subr.bf16.mxu0 0
  %438 = vmatpush1.bf16.msra.mxu0 %v313
  %439 = vmatprep.subr.bf16.mxu0 0
  %440 = vmatpush1.bf16.msra.mxu0 %v312
  %441 = vmatprep.subr.bf16.mxu0 0
  %442 = vmatpush1.bf16.msra.mxu0 %v311
  %443 = vmatprep.subr.bf16.mxu0 0
  %444 = vmatpush1.bf16.msra.mxu0 %v310
  %445 = vmatprep.subr.bf16.mxu0 0
  %446 = vmatpush1.bf16.msra.mxu0 %v309
  %447 = vmatprep.subr.bf16.mxu0 0
  %448 = vmatpush1.bf16.msra.mxu0 %v308
  %449 = vmatprep.subr.bf16.mxu0 0
  %450 = vmatpush1.bf16.msra.mxu0 %v307
  %451 = vmatprep.subr.bf16.mxu0 0
  %452 = vmatpush2.bf16.msra.mxu0 0
  %453 = vmatprep.subr.bf16.mxu0 0
  %454 = vmatpush2.bf16.msra.mxu0 0
  %455 = vmatprep.subr.bf16.mxu0 0
  %456 = vmatpush2.bf16.msra.mxu0 0
  %457 = vmatprep.subr.bf16.mxu0 0
  %458 = vmatpush2.bf16.msra.mxu0 0
  %459 = vmatprep.subr.bf16.mxu0 0
  %460 = vmatpush2.bf16.msra.mxu0 0
  %461 = vmatprep.subr.bf16.mxu0 0
  %462 = vmatpush2.bf16.msra.mxu0 0
  %463 = vmatprep.subr.bf16.mxu0 0
  %464 = vmatpush2.bf16.msra.mxu0 0
  %465 = vmatprep.subr.bf16.mxu0 0
  %466 = vmatpush2.bf16.msra.mxu0 0
  %467 = vmatprep.mubr.bf16.mxu0 0
  %468 = vmatmul.mubr.bf16.gmra.mxu0 %v27
  %v469 = vpop.f32.mrf.mxu0
  %v470 = vadd.f32 %v430, %v469
  %v471 = vpop.f32.mrf.mxu0
  %v472 = vpop.f32.mrf.mxu0
  %v473 = vpop.f32.mrf.mxu0
  %474 = vdwg.mxu0
  %v475 = vld [vmem:[%s3] sm:$0xff]
  %v476 = vadd.f32 %v470, %v475
  %477 = vst [vmem:[%s4] sm:$0xff] %v476
  // Predicated region
  $region18: #{dinov2_forward.9} parent=0 // pred_check
    _
  $region19: #{dinov2_forward.9} parent=0 // pred_check_branch
    %479 = sbr.rel (0) target = $region21
  $region20: #{dinov2_forward.9} parent=0 // pred_region
    _
  $region21: #{dinov2_forward.9} parent=0 // pred_fallthru
    _
  // Predicated region
  $region22: #{dinov2_forward.9} parent=0 // pred_check
    _
  $region23: #{dinov2_forward.9} parent=0 // pred_check_branch
    %481 = sbr.rel (0) target = $region25
  $region24: #{dinov2_forward.9} parent=0 // pred_region
    _
  $region25: #{dinov2_forward.9} parent=0 // pred_fallthru
    _

// kernel: dinov2_forward.12
$region0: #{dinov2_forward.12}
  #allocation0 [shape = 'u32[]', space=smem, size = 0x4, offset = 0x4, fixed_abs, tag = 'smem constant byte address 0x4 - core index']
  #allocation1 [shape = 'u32[144,128]{1,0:T(1,128)}', space=vmem, size = 0x12000, scoped, tag = 'internal scratch']
  %s0 = inlined_call_operand.vmem [shape: f32[32,128], index: 0, kind: input, shape index: {}]
  %s1 = inlined_call_operand.vmem [shape: f32[1,128], index: 1, kind: input, shape index: {}]
  %s2 = inlined_call_operand.vmem [shape: f32[1,128], index: 2, kind: input, shape index: {}]
  %s3 = inlined_call_operand.vmem [shape: bf16[128,512], index: 3, kind: input, shape index: {}]
  %s4 = inlined_call_operand.vmem [shape: f32[1,512], index: 4, kind: input, shape index: {}]
  %s5 = inlined_call_operand.vmem [shape: bf16[32,512], index: 5, kind: output, shape index: {}]
  %s6 = sld [smem:[#allocation0]]
  $region53: #{dinov2_forward.12} parent=0
    _
  %s8 = ssub.s32 1, %s6
  %s9 = scalar_select 0, %s8, %s6
  loop: start=0, step=1, limit=4
  $region2: #{dinov2_forward.12} parent=0 // loop_pre_header
    _
  $region3: #{dinov2_forward.12} parent=0 // loop_header
    %s11 = sphi 0, %s15
    %p12 = scmp.ge.s32.totalorder %s11, 4
    %s18 = sphi 0, %s30
    %s19 = sphi 0, %s26
    %s20 = sphi 0, %s18
    %s21 = sphi 0, %s19
    %s22 = sphi 0, %s20
    %s23 = sphi 0, %s21
    %s33 = sphi 0, %s35
    %s36 = sphi 0, %s33
    %s37 = sphi 0, %s36
    %s53 = sphi 0, %s37
    %s57 = sphi 0, %s57
    %s59 = sphi 0, %s57
    %s60 = sphi 0, %s59
    %s74 = sphi 0, %s60
    %s78 = sphi 0, %s78
    %s80 = sphi 0, %s78
    %s81 = sphi 0, %s80
    %s95 = sphi 0, %s81
    %s101 = sphi 0, %s103
    %s104 = sphi 0, %s101
    %s105 = sphi 0, %s104
    %s121 = sphi 0, %s105
    %s127 = sphi 0, %s129
    %s130 = sphi 0, %s127
    %s131 = sphi 0, %s130
    %s147 = sphi 0, %s131
    %s155 = sphi 0, %s157
    %s158 = sphi 0, %s155
    %s159 = sphi 0, %s158
    %s175 = sphi 0, %s159
  $region4: #{dinov2_forward.12} parent=0 // loop_header_branch
    %14 = sbr.rel (%p12) target = $region8
  $region5: #{dinov2_forward.12} parent=0 // loop_body
    %s16 = ssub.s32 %s11, 1
    %s17 = ssub.s32 %s11, 2
    %s24 = sadd.s32 1, %s19
    %p25 = scmp.ge.s32.totalorder %s24, 1
    %s26 = scalar_select %p25, 0, %s24
    %s27 = sadd.s32 1, %s18
    %s28 = scalar_select %p25, %s27, %s18
    %p29 = scmp.ge.s32.totalorder %s28, 2
    %s30 = scalar_select %p29, 0, %s28
    %s31 = ssub.s32 %s18, %s30
    %p32 = scmp.eq.s32.totalorder %s31, 0
    %s34 = sadd.s32 %s33, 1
    %s35 = scalar_select %p32, %s33, %s34
    %p38 = pneg %p32
    %p39 = scmp.eq.s32.totalorder %s11, 1
    %p40 = por %p38, %p39
    %p41 = scmp.ne.s32.totalorder %s33, %s36
    %p42 = scmp.eq.s32.totalorder %s11, 0
    %p43 = por %p41, %p42
    %p44 = scmp.ne.s32.totalorder %s33, %s36
    %p45 = scmp.eq.s32.totalorder %s16, 1
    %p46 = por %p44, %p45
    %p47 = scmp.ne.s32.totalorder %s36, %s37
    %p48 = scmp.eq.s32.totalorder %s16, 0
    %p49 = por %p47, %p48
    %p50 = scmp.ne.s32.totalorder %s36, %s37
    %p51 = scmp.eq.s32.totalorder %s17, 1
    %p52 = por %p50, %p51
    %p54 = scmp.ne.s32.totalorder %s37, %s53
    %p55 = scmp.eq.s32.totalorder %s17, 0
    %p56 = por %p54, %p55
    %s58 = sadd.s32 %s57, 1
    %p61 = scmp.eq.s32.totalorder %s11, 1
    %p62 = scmp.ne.s32.totalorder %s57, %s59
    %p63 = scmp.eq.s32.totalorder %s11, 0
    %p64 = por %p62, %p63
    %p65 = scmp.ne.s32.totalorder %s57, %s59
    %p66 = scmp.eq.s32.totalorder %s16, 1
    %p67 = por %p65, %p66
    %p68 = scmp.ne.s32.totalorder %s59, %s60
    %p69 = scmp.eq.s32.totalorder %s16, 0
    %p70 = por %p68, %p69
    %p71 = scmp.ne.s32.totalorder %s59, %s60
    %p72 = scmp.eq.s32.totalorder %s17, 1
    %p73 = por %p71, %p72
    %p75 = scmp.ne.s32.totalorder %s60, %s74
    %p76 = scmp.eq.s32.totalorder %s17, 0
    %p77 = por %p75, %p76
    %s79 = sadd.s32 %s78, 1
    %p82 = scmp.eq.s32.totalorder %s11, 1
    %p83 = scmp.ne.s32.totalorder %s78, %s80
    %p84 = scmp.eq.s32.totalorder %s11, 0
    %p85 = por %p83, %p84
    %p86 = scmp.ne.s32.totalorder %s78, %s80
    %p87 = scmp.eq.s32.totalorder %s16, 1
    %p88 = por %p86, %p87
    %p89 = scmp.ne.s32.totalorder %s80, %s81
    %p90 = scmp.eq.s32.totalorder %s16, 0
    %p91 = por %p89, %p90
    %p92 = scmp.ne.s32.totalorder %s80, %s81
    %p93 = scmp.eq.s32.totalorder %s17, 1
    %p94 = por %p92, %p93
    %p96 = scmp.ne.s32.totalorder %s81, %s95
    %p97 = scmp.eq.s32.totalorder %s17, 0
    %p98 = por %p96, %p97
    %s99 = ssub.s32 %s19, %s26
    %p100 = scmp.eq.s32.totalorder %s99, 0
    %s102 = sadd.s32 %s101, 1
    %s103 = scalar_select %p100, %s101, %s102
    %p106 = pneg %p100
    %p107 = scmp.eq.s32.totalorder %s11, 1
    %p108 = por %p106, %p107
    %p109 = scmp.ne.s32.totalorder %s101, %s104
    %p110 = scmp.eq.s32.totalorder %s11, 0
    %p111 = por %p109, %p110
    %p112 = scmp.ne.s32.totalorder %s101, %s104
    %p113 = scmp.eq.s32.totalorder %s16, 1
    %p114 = por %p112, %p113
    %p115 = scmp.ne.s32.totalorder %s104, %s105
    %p116 = scmp.eq.s32.totalorder %s16, 0
    %p117 = por %p115, %p116
    %p118 = scmp.ne.s32.totalorder %s104, %s105
    %p119 = scmp.eq.s32.totalorder %s17, 1
    %p120 = por %p118, %p119
    %p122 = scmp.ne.s32.totalorder %s105, %s121
    %p123 = scmp.eq.s32.totalorder %s17, 0
    %p124 = por %p122, %p123
    %s125 = ssub.s32 %s19, %s26
    %p126 = scmp.eq.s32.totalorder %s125, 0
    %s128 = sadd.s32 %s127, 1
    %s129 = scalar_select %p126, %s127, %s128
    %p132 = pneg %p126
    %p133 = scmp.eq.s32.totalorder %s11, 1
    %p134 = por %p132, %p133
    %p135 = scmp.ne.s32.totalorder %s127, %s130
    %p136 = scmp.eq.s32.totalorder %s11, 0
    %p137 = por %p135, %p136
    %p138 = scmp.ne.s32.totalorder %s127, %s130
    %p139 = scmp.eq.s32.totalorder %s16, 1
    %p140 = por %p138, %p139
    %p141 = scmp.ne.s32.totalorder %s130, %s131
    %p142 = scmp.eq.s32.totalorder %s16, 0
    %p143 = por %p141, %p142
    %p144 = scmp.ne.s32.totalorder %s130, %s131
    %p145 = scmp.eq.s32.totalorder %s17, 1
    %p146 = por %p144, %p145
    %p148 = scmp.ne.s32.totalorder %s131, %s147
    %p149 = scmp.eq.s32.totalorder %s17, 0
    %p150 = por %p148, %p149
    %s151 = ssub.s32 %s18, %s30
    %s152 = ssub.s32 %s19, %s26
    %s153 = sor.u32 %s151, %s152
    %p154 = scmp.eq.s32.totalorder %s153, 0
    %s156 = sadd.s32 %s155, 1
    %s157 = scalar_select %p154, %s155, %s156
    %p160 = pneg %p154
    %p161 = scmp.eq.s32.totalorder %s11, 1
    %p162 = por %p160, %p161
    %p163 = scmp.ne.s32.totalorder %s155, %s158
    %p164 = scmp.eq.s32.totalorder %s11, 0
    %p165 = por %p163, %p164
    %p166 = scmp.ne.s32.totalorder %s155, %s158
    %p167 = scmp.eq.s32.totalorder %s16, 1
    %p168 = por %p166, %p167
    %p169 = scmp.ne.s32.totalorder %s158, %s159
    %p170 = scmp.eq.s32.totalorder %s16, 0
    %p171 = por %p169, %p170
    %p172 = scmp.ne.s32.totalorder %s158, %s159
    %p173 = scmp.eq.s32.totalorder %s17, 1
    %p174 = por %p172, %p173
    %p176 = scmp.ne.s32.totalorder %s159, %s175
    %p177 = scmp.eq.s32.totalorder %s17, 0
    %p178 = por %p176, %p177
    %p179 = scmp.le.s32.totalorder 1, %s11
    %p180 = scmp.lt.s32.totalorder %s11, 3
    %p181 = pnand %p179, %p180
    %p182 = pneg %p181
    // Predicated region
    $region9: #{dinov2_forward.12} parent=5 // pred_check
      _
    $region10: #{dinov2_forward.12} parent=5 // pred_check_branch
      %184 = sbr.rel (%p181) target = $region12
    $region11: #{dinov2_forward.12} parent=5 // pred_region
      %s185 = ssub.s32 %s11, 1
      // Predicated region
      $region13: #{dinov2_forward.12} parent=11 // pred_check
        %p186 = pneg %p70
      $region14: #{dinov2_forward.12} parent=11 // pred_check_branch
        %188 = sbr.rel (%p186) target = $region16
      $region15: #{dinov2_forward.12} parent=11 // pred_region
        _
      $region16: #{dinov2_forward.12} parent=11 // pred_fallthru
        _
      // Predicated region
      $region17: #{dinov2_forward.12} parent=11 // pred_check
        %p189 = pneg %p91
      $region18: #{dinov2_forward.12} parent=11 // pred_check_branch
        %191 = sbr.rel (%p189) target = $region20
      $region19: #{dinov2_forward.12} parent=11 // pred_region
        _
      $region20: #{dinov2_forward.12} parent=11 // pred_fallthru
        _
      // Predicated region
      $region21: #{dinov2_forward.12} parent=11 // pred_check
        %p192 = pneg %p117
      $region22: #{dinov2_forward.12} parent=11 // pred_check_branch
        %194 = sbr.rel (%p192) target = $region24
      $region23: #{dinov2_forward.12} parent=11 // pred_region
        %s195 = smul.u32 4, %s21
        %p196 = scmp.lt.s32.totalorder %s195, 3
        %s197 = scalar_select %p196, %s195, 3
        %s198 = smul.addr %s197, 4
        %s199 = scalar_lea.vmem %s3, %s198
        %s200 = smul.u32 4, %s21
      $region24: #{dinov2_forward.12} parent=11 // pred_fallthru
        _
      // Predicated region
      $region25: #{dinov2_forward.12} parent=11 // pred_check
        %p201 = pneg %p143
      $region26: #{dinov2_forward.12} parent=11 // pred_check_branch
        %203 = sbr.rel (%p201) target = $region28
      $region27: #{dinov2_forward.12} parent=11 // pred_region
        %s204 = smul.u32 4, %s21
        %p205 = scmp.lt.s32.totalorder %s204, 3
        %s206 = scalar_select %p205, %s204, 3
        %s207 = scalar_lea.vmem %s4, %s206
        %s208 = smul.u32 4, %s21
      $region28: #{dinov2_forward.12} parent=11 // pred_fallthru
        _
    $region12: #{dinov2_forward.12} parent=5 // pred_fallthru
      _
    %p209 = scmp.lt.s32.totalorder %s11, 2
    // Predicated region
    $region29: #{dinov2_forward.12} parent=5 // pred_check
      %p210 = pneg %p209
    $region30: #{dinov2_forward.12} parent=5 // pred_check_branch
      %212 = sbr.rel (%p210) target = $region32
    $region31: #{dinov2_forward.12} parent=5 // pred_region
      // Predicated region
      $region33: #{dinov2_forward.12} parent=31 // pred_check
        %p213 = pneg %p43
      $region34: #{dinov2_forward.12} parent=31 // pred_check_branch
        %215 = sbr.rel (%p213) target = $region36
      $region35: #{dinov2_forward.12} parent=31 // pred_region
        %s216 = smul.u32 2, %s18
        %p217 = scmp.lt.s32.totalorder %s216, 3
        %s218 = scalar_select %p217, %s216, 3
        %s219 = smul.addr %s218, 8
        %s220 = scalar_lea.vmem %s0, %s219
        %s221 = smul.u32 2, %s18
      $region36: #{dinov2_forward.12} parent=31 // pred_fallthru
        _
    $region32: #{dinov2_forward.12} parent=5 // pred_fallthru
      _
    %p222 = scmp.le.s32.totalorder 1, %s11
    %p223 = scmp.lt.s32.totalorder %s11, 3
    %p224 = pnand %p222, %p223
    %p225 = pneg %p224
    // Predicated region
    $region37: #{dinov2_forward.12} parent=5 // pred_check
      _
    $region38: #{dinov2_forward.12} parent=5 // pred_check_branch
      %227 = sbr.rel (%p224) target = $region40
    $region39: #{dinov2_forward.12} parent=5 // pred_region
      %s228 = ssub.s32 %s11, 1
      %s229 = smul.u32 2, %s20
      %p230 = scmp.lt.s32.totalorder %s229, 3
      %s231 = scalar_select %p230, %s229, 3
      %s232 = smul.addr %s231, 8
      %s233 = scalar_lea.vmem %s0, %s232
      %p234 = pneg %p49
      %p235 = pneg %p46
      %p236 = pneg %p70
      %p237 = pneg %p67
      %p238 = pneg %p91
      %p239 = pneg %p88
      %s240 = smul.u32 4, %s21
      %p241 = scmp.lt.s32.totalorder %s240, 3
      %s242 = scalar_select %p241, %s240, 3
      %s243 = smul.addr %s242, 4
      %s244 = scalar_lea.vmem %s3, %s243
      %p245 = pneg %p117
      %p246 = pneg %p114
      %s247 = smul.u32 4, %s21
      %p248 = scmp.lt.s32.totalorder %s247, 3
      %s249 = scalar_select %p248, %s247, 3
      %s250 = scalar_lea.vmem %s4, %s249
      %p251 = pneg %p143
      %p252 = pneg %p140
      %p253 = pneg %p171
      %p254 = pneg %p168
      %s255 = smul.u32 2, %s20
      %s256 = smul.u32 4, %s21
      %p257 = scmp.lt.s32.totalorder %s255, 3
      %s258 = scalar_select %p257, %s255, 3
      %p259 = scmp.lt.s32.totalorder %s256, 3
      %s260 = scalar_select %p259, %s256, 3
      %s261 = smul.addr %s258, 4
      %s262 = sadd.s32 %s260, %s261
      %s263 = smul.addr %s262, 4
      %s264 = scalar_lea.vmem %s5, %s263
      %s265 = smul.u32 2, %s20
      %p266 = scmp.lt.s32.totalorder %s265, 3
      %s267 = scalar_select %p266, %s265, 3
      %s268 = smul.addr %s267, 8
      %s269 = scalar_lea.vmem %s0, %s268
      %s270 = smul.u32 2, %s20
      %s271 = smul.u32 4, %s21
      %p272 = scmp.lt.s32.totalorder %s271, 3
      %s273 = scalar_select %p272, %s271, 3
      %s274 = smul.addr %s273, 4
      %s275 = scalar_lea.vmem %s3, %s274
      %s276 = smul.u32 4, %s21
      %s277 = smul.u32 4, %s21
      %p278 = scmp.lt.s32.totalorder %s277, 3
      %s279 = scalar_select %p278, %s277, 3
      %s280 = scalar_lea.vmem %s4, %s279
      %s281 = smul.u32 4, %s21
      %s282 = smul.u32 2, %s20
      %s283 = smul.u32 4, %s21
      %p284 = scmp.lt.s32.totalorder %s282, 3
      %s285 = scalar_select %p284, %s282, 3
      %p286 = scmp.lt.s32.totalorder %s283, 3
      %s287 = scalar_select %p286, %s283, 3
      %s288 = smul.addr %s285, 4
      %s289 = sadd.s32 %s287, %s288
      %s290 = smul.addr %s289, 4
      %s291 = scalar_lea.vmem %s5, %s290
      %s292 = smul.u32 2, %s20
      %s293 = smul.u32 4, %s21
      %v295 = vld [vmem:[%s269] sm:$0xff]
      %v296 = vld [vmem:[%s269 + $0x8] sm:$0xff]
      %297 = vadd.xlane.f32.xlu0 %v295
      %v298 = vpop.xlane.xlu0 %297
      %299 = vadd.xlane.f32.xlu0 %v296
      %v300 = vpop.xlane.xlu0 %299
      %v301 = vrcp.pop 128.0
      %v302 = vmul.f32 %v298, %v301
      %v303 = vmul.f32 %v300, %v301
      %v304 = vsub.f32 %v295, %v302
      %v305 = vsub.f32 %v296, %v303
      %v306 = vmul.f32 %v304, %v304
      %v307 = vmul.f32 %v305, %v305
      %308 = vadd.xlane.f32.xlu0 %v306
      %v309 = vpop.xlane.xlu0 %308
      %310 = vadd.xlane.f32.xlu0 %v307
      %v311 = vpop.xlane.xlu0 %310
      %v312 = vmul.f32 %v309, %v301
      %v313 = vmul.f32 %v311, %v301
      %v314 = vadd.f32 %v312, 1e-06
      %v315 = vadd.f32 %v313, 1e-06
      %v316 = vrsqrt.pop %v314
      %v317 = vrsqrt.pop %v315
      %v318 = vmul.f32 %v304, %v316
      %v319 = vmul.f32 %v305, %v317
      %v320 = vld [vmem:[%s1] sm:$0x1]
      %v322 = vlaneseq
      %v323 = vshrl.u32 %v322, 7
      %v324 = vsub.s32 0, %v323
      %v325 = vrot.slane %v320, %v324
      %v327 = vmul.f32 %v318, %v325
      %v328 = vmul.f32 %v319, %v325
      %v329 = vld [vmem:[%s2] sm:$0x1]
      %v331 = vlaneseq
      %v332 = vshrl.u32 %v331, 7
      %v333 = vsub.s32 0, %v332
      %v334 = vrot.slane %v329, %v333
      %v336 = vadd.f32 %v327, %v334
      %v337 = vadd.f32 %v328, %v334
      %v338 = vpack.c.bf16 %v337, %v336
      %v339 = vld [vmem:[%s275] sm:$0xff]
      %v340 = vld [vmem:[%s275 + $0x8] sm:$0xff]
      %v341 = vld [vmem:[%s275 + $0x10] sm:$0xff]
      %v342 = vld [vmem:[%s275 + $0x18] sm:$0xff]
      %v343 = vld [vmem:[%s275 + $0x20] sm:$0xff]
      %v344 = vld [vmem:[%s275 + $0x28] sm:$0xff]
      %v345 = vld [vmem:[%s275 + $0x30] sm:$0xff]
      %v346 = vld [vmem:[%s275 + $0x38] sm:$0xff]
      %v347 = vld [vmem:[%s275 + $0x40] sm:$0xff]
      %v348 = vld [vmem:[%s275 + $0x48] sm:$0xff]
      %v349 = vld [vmem:[%s275 + $0x50] sm:$0xff]
      %v350 = vld [vmem:[%s275 + $0x58] sm:$0xff]
      %v351 = vld [vmem:[%s275 + $0x60] sm:$0xff]
      %v352 = vld [vmem:[%s275 + $0x68] sm:$0xff]
      %v353 = vld [vmem:[%s275 + $0x70] sm:$0xff]
      %v354 = vld [vmem:[%s275 + $0x78] sm:$0xff]
      %v355 = vld [vmem:[%s275 + $0x80] sm:$0xff]
      %v356 = vld [vmem:[%s275 + $0x88] sm:$0xff]
      %v357 = vld [vmem:[%s275 + $0x90] sm:$0xff]
      %v358 = vld [vmem:[%s275 + $0x98] sm:$0xff]
      %v359 = vld [vmem:[%s275 + $0xa0] sm:$0xff]
      %v360 = vld [vmem:[%s275 + $0xa8] sm:$0xff]
      %v361 = vld [vmem:[%s275 + $0xb0] sm:$0xff]
      %v362 = vld [vmem:[%s275 + $0xb8] sm:$0xff]
      %v363 = vld [vmem:[%s275 + $0xc0] sm:$0xff]
      %v364 = vld [vmem:[%s275 + $0xc8] sm:$0xff]
      %v365 = vld [vmem:[%s275 + $0xd0] sm:$0xff]
      %v366 = vld [vmem:[%s275 + $0xd8] sm:$0xff]
      %v367 = vld [vmem:[%s275 + $0xe0] sm:$0xff]
      %v368 = vld [vmem:[%s275 + $0xe8] sm:$0xff]
      %v369 = vld [vmem:[%s275 + $0xf0] sm:$0xff]
      %v370 = vld [vmem:[%s275 + $0xf8] sm:$0xff]
      %v371 = vld [vmem:[%s280] sm:$0xf]
      %v373 = vlaneseq
      %v374 = vshrl.u32 %v373, 7
      %v375 = vsub.s32 0, %v374
      %v376 = vrot.slane %v371, %v375
      %v377 = vlaneseq
      %v378 = vshrl.u32 %v377, 7
      %v379 = vsub.s32 1, %v378
      %v380 = vrot.slane %v371, %v379
      %v381 = vlaneseq
      %v382 = vshrl.u32 %v381, 7
      %v383 = vsub.s32 2, %v382
      %v384 = vrot.slane %v371, %v383
      %v385 = vlaneseq
      %v386 = vshrl.u32 %v385, 7
      %v387 = vsub.s32 3, %v386
      %v388 = vrot.slane %v371, %v387
      %v425 = vunpack.c.l.b16 %v339
      %v426 = vunpack.c.h.b16 %v339
      %v427 = vunpack.c.l.b16 %v340
      %v428 = vunpack.c.h.b16 %v340
      %v429 = vunpack.c.l.b16 %v341
      %v430 = vunpack.c.h.b16 %v341
      %v431 = vunpack.c.l.b16 %v342
      %v432 = vunpack.c.h.b16 %v342
      %v433 = vunpack.c.l.b16 %v343
      %v434 = vunpack.c.h.b16 %v343
      %v435 = vunpack.c.l.b16 %v344
      %v436 = vunpack.c.h.b16 %v344
      %v437 = vunpack.c.l.b16 %v345
      %v438 = vunpack.c.h.b16 %v345
      %v439 = vunpack.c.l.b16 %v346
      %v440 = vunpack.c.h.b16 %v346
      %v441 = vunpack.c.l.b16 %v347
      %v442 = vunpack.c.h.b16 %v347
      %v443 = vunpack.c.l.b16 %v348
      %v444 = vunpack.c.h.b16 %v348
      %v445 = vunpack.c.l.b16 %v349
      %v446 = vunpack.c.h.b16 %v349
      %v447 = vunpack.c.l.b16 %v350
      %v448 = vunpack.c.h.b16 %v350
      %v449 = vunpack.c.l.b16 %v351
      %v450 = vunpack.c.h.b16 %v351
      %v451 = vunpack.c.l.b16 %v352
      %v452 = vunpack.c.h.b16 %v352
      %v453 = vunpack.c.l.b16 %v353
      %v454 = vunpack.c.h.b16 %v353
      %v455 = vunpack.c.l.b16 %v354
      %v456 = vunpack.c.h.b16 %v354
      %v457 = vunpack.c.l.b16 %v355
      %v458 = vunpack.c.h.b16 %v355
      %v459 = vunpack.c.l.b16 %v356
      %v460 = vunpack.c.h.b16 %v356
      %v461 = vunpack.c.l.b16 %v357
      %v462 = vunpack.c.h.b16 %v357
      %v463 = vunpack.c.l.b16 %v358
      %v464 = vunpack.c.h.b16 %v358
      %v465 = vunpack.c.l.b16 %v359
      %v466 = vunpack.c.h.b16 %v359
      %v467 = vunpack.c.l.b16 %v360
      %v468 = vunpack.c.h.b16 %v360
      %v469 = vunpack.c.l.b16 %v361
      %v470 = vunpack.c.h.b16 %v361
      %v471 = vunpack.c.l.b16 %v362
      %v472 = vunpack.c.h.b16 %v362
      %v473 = vunpack.c.l.b16 %v363
      %v474 = vunpack.c.h.b16 %v363
      %v475 = vunpack.c.l.b16 %v364
      %v476 = vunpack.c.h.b16 %v364
      %v477 = vunpack.c.l.b16 %v365
      %v478 = vunpack.c.h.b16 %v365
      %v479 = vunpack.c.l.b16 %v366
      %v480 = vunpack.c.h.b16 %v366
      %v481 = vunpack.c.l.b16 %v367
      %v482 = vunpack.c.h.b16 %v367
      %v483 = vunpack.c.l.b16 %v368
      %v484 = vunpack.c.h.b16 %v368
      %v485 = vunpack.c.l.b16 %v369
      %v486 = vunpack.c.h.b16 %v369
      %v487 = vunpack.c.l.b16 %v370
      %v488 = vunpack.c.h.b16 %v370
      %v489 = vpack.c.b16 %v429, %v425
      %v490 = vpack.c.b16 %v430, %v426
      %v491 = vpack.c.b16 %v431, %v427
      %v492 = vpack.c.b16 %v432, %v428
      %v493 = vpack.c.b16 %v437, %v433
      %v494 = vpack.c.b16 %v438, %v434
      %v495 = vpack.c.b16 %v439, %v435
      %v496 = vpack.c.b16 %v440, %v436
      %v497 = vpack.c.b16 %v445, %v441
      %v498 = vpack.c.b16 %v446, %v442
      %v499 = vpack.c.b16 %v447, %v443
      %v500 = vpack.c.b16 %v448, %v444
      %v501 = vpack.c.b16 %v453, %v449
      %v502 = vpack.c.b16 %v454, %v450
      %v503 = vpack.c.b16 %v455, %v451
      %v504 = vpack.c.b16 %v456, %v452
      %v505 = vpack.c.b16 %v461, %v457
      %v506 = vpack.c.b16 %v462, %v458
      %v507 = vpack.c.b16 %v463, %v459
      %v508 = vpack.c.b16 %v464, %v460
      %v509 = vpack.c.b16 %v469, %v465
      %v510 = vpack.c.b16 %v470, %v466
      %v511 = vpack.c.b16 %v471, %v467
      %v512 = vpack.c.b16 %v472, %v468
      %v513 = vpack.c.b16 %v477, %v473
      %v514 = vpack.c.b16 %v478, %v474
      %v515 = vpack.c.b16 %v479, %v475
      %v516 = vpack.c.b16 %v480, %v476
      %v517 = vpack.c.b16 %v485, %v481
      %v518 = vpack.c.b16 %v486, %v482
      %v519 = vpack.c.b16 %v487, %v483
      %v520 = vpack.c.b16 %v488, %v484
      %553 = vmatprep.subr.bf16.mxu0 %v518
      %554 = vmatpush1.bf16.msra.mxu0 %v517
      %555 = vmatprep.subr.bf16.mxu0 %v514
      %556 = vmatpush1.bf16.msra.mxu0 %v513
      %557 = vmatprep.subr.bf16.mxu0 %v510
      %558 = vmatpush1.bf16.msra.mxu0 %v509
      %559 = vmatprep.subr.bf16.mxu0 %v506
      %560 = vmatpush1.bf16.msra.mxu0 %v505
      %561 = vmatprep.subr.bf16.mxu0 %v502
      %562 = vmatpush1.bf16.msra.mxu0 %v501
      %563 = vmatprep.subr.bf16.mxu0 %v498
      %564 = vmatpush1.bf16.msra.mxu0 %v497
      %565 = vmatprep.subr.bf16.mxu0 %v494
      %566 = vmatpush1.bf16.msra.mxu0 %v493
      %567 = vmatprep.subr.bf16.mxu0 %v490
      %568 = vmatpush1.bf16.msra.mxu0 %v489
      %569 = vmatprep.subr.bf16.mxu0 0
      %570 = vmatpush2.bf16.msra.mxu0 0
      %571 = vmatprep.subr.bf16.mxu0 0
      %572 = vmatpush2.bf16.msra.mxu0 0
      %573 = vmatprep.subr.bf16.mxu0 0
      %574 = vmatpush2.bf16.msra.mxu0 0
      %575 = vmatprep.subr.bf16.mxu0 0
      %576 = vmatpush2.bf16.msra.mxu0 0
      %577 = vmatprep.subr.bf16.mxu0 0
      %578 = vmatpush2.bf16.msra.mxu0 0
      %579 = vmatprep.subr.bf16.mxu0 0
      %580 = vmatpush2.bf16.msra.mxu0 0
      %581 = vmatprep.subr.bf16.mxu0 0
      %582 = vmatpush2.bf16.msra.mxu0 0
      %583 = vmatprep.subr.bf16.mxu0 0
      %584 = vmatpush2.bf16.msra.mxu0 0
      %585 = vmatprep.mubr.bf16.mxu0 0
      %586 = vmatmul.mubr.bf16.gmra.mxu0 %v338
      %v587 = vpop.f32.mrf.mxu0
      %v588 = vadd.f32 %v376, %v587
      %v589 = vpop.f32.mrf.mxu0
      %v590 = vadd.f32 %v380, %v589
      %v591 = vpop.f32.mrf.mxu0
      %v592 = vadd.f32 %v376, %v591
      %v593 = vpop.f32.mrf.mxu0
      %v594 = vadd.f32 %v380, %v593
      %595 = vdwg.mxu0
      %596 = vmatprep.subr.bf16.mxu0 %v520
      %597 = vmatpush1.bf16.msra.mxu0 %v519
      %598 = vmatprep.subr.bf16.mxu0 %v516
      %599 = vmatpush1.bf16.msra.mxu0 %v515
      %600 = vmatprep.subr.bf16.mxu0 %v512
      %601 = vmatpush1.bf16.msra.mxu0 %v511
      %602 = vmatprep.subr.bf16.mxu0 %v508
      %603 = vmatpush1.bf16.msra.mxu0 %v507
      %604 = vmatprep.subr.bf16.mxu0 %v504
      %605 = vmatpush1.bf16.msra.mxu0 %v503
      %606 = vmatprep.subr.bf16.mxu0 %v500
      %607 = vmatpush1.bf16.msra.mxu0 %v499
      %608 = vmatprep.subr.bf16.mxu0 %v496
      %609 = vmatpush1.bf16.msra.mxu0 %v495
      %610 = vmatprep.subr.bf16.mxu0 %v492
      %611 = vmatpush1.bf16.msra.mxu0 %v491
      %612 = vmatprep.subr.bf16.mxu0 0
      %613 = vmatpush2.bf16.msra.mxu0 0
      %614 = vmatprep.subr.bf16.mxu0 0
      %615 = vmatpush2.bf16.msra.mxu0 0
      %616 = vmatprep.subr.bf16.mxu0 0
      %617 = vmatpush2.bf16.msra.mxu0 0
      %618 = vmatprep.subr.bf16.mxu0 0
      %619 = vmatpush2.bf16.msra.mxu0 0
      %620 = vmatprep.subr.bf16.mxu0 0
      %621 = vmatpush2.bf16.msra.mxu0 0
      %622 = vmatprep.subr.bf16.mxu0 0
      %623 = vmatpush2.bf16.msra.mxu0 0
      %624 = vmatprep.subr.bf16.mxu0 0
      %625 = vmatpush2.bf16.msra.mxu0 0
      %626 = vmatprep.subr.bf16.mxu0 0
      %627 = vmatpush2.bf16.msra.mxu0 0
      %628 = vmatprep.mubr.bf16.mxu0 0
      %629 = vmatmul.mubr.bf16.gmra.mxu0 %v338
      %v630 = vpop.f32.mrf.mxu0
      %v631 = vadd.f32 %v384, %v630
      %v632 = vpop.f32.mrf.mxu0
      %v633 = vadd.f32 %v388, %v632
      %v634 = vpop.f32.mrf.mxu0
      %v635 = vadd.f32 %v384, %v634
      %v636 = vpop.f32.mrf.mxu0
      %v637 = vadd.f32 %v388, %v636
      %638 = vdwg.mxu0
      %v639 = vmul.f32 %v588, %v588
      %v640 = vmul.f32 %v590, %v590
      %v641 = vmul.f32 %v631, %v631
      %v642 = vmul.f32 %v633, %v633
      %v643 = vmul.f32 %v592, %v592
      %v644 = vmul.f32 %v594, %v594
      %v645 = vmul.f32 %v635, %v635
      %v646 = vmul.f32 %v637, %v637
      %v647 = vmul.f32 %v588, %v639
      %v648 = vmul.f32 %v590, %v640
      %v649 = vmul.f32 %v631, %v641
      %v650 = vmul.f32 %v633, %v642
      %v651 = vmul.f32 %v592, %v643
      %v652 = vmul.f32 %v594, %v644
      %v653 = vmul.f32 %v635, %v645
      %v654 = vmul.f32 %v637, %v646
      %v655 = vmul.f32 %v647, 0.044715
      %v656 = vmul.f32 %v648, 0.044715
      %v657 = vmul.f32 %v649, 0.044715
      %v658 = vmul.f32 %v650, 0.044715
      %v659 = vmul.f32 %v651, 0.044715
      %v660 = vmul.f32 %v652, 0.044715
      %v661 = vmul.f32 %v653, 0.044715
      %v662 = vmul.f32 %v654, 0.044715
      %v663 = vadd.f32 %v588, %v655
      %v664 = vadd.f32 %v590, %v656
      %v665 = vadd.f32 %v631, %v657
      %v666 = vadd.f32 %v633, %v658
      %v667 = vadd.f32 %v592, %v659
      %v668 = vadd.f32 %v594, %v660
      %v669 = vadd.f32 %v635, %v661
      %v670 = vadd.f32 %v637, %v662
      %v671 = vmul.f32 %v663, 0.7978846
      %v672 = vmul.f32 %v664, 0.7978846
      %v673 = vmul.f32 %v665, 0.7978846
      %v674 = vmul.f32 %v666, 0.7978846
      %v675 = vmul.f32 %v667, 0.7978846
      %v676 = vmul.f32 %v668, 0.7978846
      %v677 = vmul.f32 %v669, 0.7978846
      %v678 = vmul.f32 %v670, 0.7978846
      %v679 = vtanh.pop %v671
      %v680 = vtanh.pop %v672
      %v681 = vtanh.pop %v673
      %v682 = vtanh.pop %v674
      %v683 = vtanh.pop %v675
      %v684 = vtanh.pop %v676
      %v685 = vtanh.pop %v677
      %v686 = vtanh.pop %v678
      %v687 = vadd.f32 %v679, 1.0
      %v688 = vadd.f32 %v680, 1.0
      %v689 = vadd.f32 %v681, 1.0
      %v690 = vadd.f32 %v682, 1.0
      %v691 = vadd.f32 %v683, 1.0
      %v692 = vadd.f32 %v684, 1.0
      %v693 = vadd.f32 %v685, 1.0
      %v694 = vadd.f32 %v686, 1.0
      %v695 = vmul.f32 %v687, 0.5
      %v696 = vmul.f32 %v688, 0.5
      %v697 = vmul.f32 %v689, 0.5
      %v698 = vmul.f32 %v690, 0.5
      %v699 = vmul.f32 %v691, 0.5
      %v700 = vmul.f32 %v692, 0.5
      %v701 = vmul.f32 %v693, 0.5
      %v702 = vmul.f32 %v694, 0.5
      %v703 = vmul.f32 %v588, %v695
      %v704 = vmul.f32 %v590, %v696
      %v705 = vmul.f32 %v631, %v697
      %v706 = vmul.f32 %v633, %v698
      %v707 = vmul.f32 %v592, %v699
      %v708 = vmul.f32 %v594, %v700
      %v709 = vmul.f32 %v635, %v701
      %v710 = vmul.f32 %v637, %v702
      %v711 = vpack.c.bf16 %v707, %v703
      %v712 = vpack.c.bf16 %v708, %v704
      %v713 = vpack.c.bf16 %v709, %v705
      %v714 = vpack.c.bf16 %v710, %v706
      %v719 = vunpack.c.l.b16 %v711
      %v720 = vunpack.c.l.b16 %v712
      %v721 = vunpack.c.l.b16 %v713
      %v722 = vunpack.c.l.b16 %v714
      %v723 = vunpack.c.h.b16 %v711
      %v724 = vunpack.c.h.b16 %v712
      %v725 = vunpack.c.h.b16 %v713
      %v726 = vunpack.c.h.b16 %v714
      %v727 = vpack.c.b16 %v720, %v719
      %v728 = vpack.c.b16 %v722, %v721
      %v729 = vpack.c.b16 %v724, %v723
      %v730 = vpack.c.b16 %v726, %v725
      %735 = vst [vmem:[%s291] sm:$0xff] %v727
      %736 = vst [vmem:[%s291 + $0x8] sm:$0xff] %v728
      %737 = vst [vmem:[%s291 + $0x10] sm:$0xff] %v729
      %738 = vst [vmem:[%s291 + $0x18] sm:$0xff] %v730
      %s739 = smul.u32 2, %s20
      %s740 = smul.u32 4, %s21
      %p741 = scmp.lt.s32.totalorder %s739, 3
      %s742 = scalar_select %p741, %s739, 3
      %p743 = scmp.lt.s32.totalorder %s740, 3
      %s744 = scalar_select %p743, %s740, 3
      %s745 = smul.addr %s742, 4
      %s746 = sadd.s32 %s744, %s745
      %s747 = smul.addr %s746, 4
      %s748 = scalar_lea.vmem %s5, %s747
      // Predicated region
      $region41: #{dinov2_forward.12} parent=39 // pred_check
        %p749 = pneg %p168
      $region42: #{dinov2_forward.12} parent=39 // pred_check_branch
        %751 = sbr.rel (%p749) target = $region44
      $region43: #{dinov2_forward.12} parent=39 // pred_region
        %s752 = smul.u32 2, %s20
        %s753 = smul.u32 4, %s21
      $region44: #{dinov2_forward.12} parent=39 // pred_fallthru
        _
    $region40: #{dinov2_forward.12} parent=5 // pred_fallthru
      _
    %p754 = scmp.le.s32.totalorder 2, %s11
    // Predicated region
    $region45: #{dinov2_forward.12} parent=5 // pred_check
      %p755 = pneg %p754
    $region46: #{dinov2_forward.12} parent=5 // pred_check_branch
      %757 = sbr.rel (%p755) target = $region48
    $region47: #{dinov2_forward.12} parent=5 // pred_region
      %s758 = ssub.s32 %s11, 2
      // Predicated region
      $region49: #{dinov2_forward.12} parent=47 // pred_check
        %p759 = pneg %p174
      $region50: #{dinov2_forward.12} parent=47 // pred_check_branch
        %761 = sbr.rel (%p759) target = $region52
      $region51: #{dinov2_forward.12} parent=47 // pred_region
        %s762 = smul.u32 2, %s22
        %s763 = smul.u32 4, %s23
        %p764 = scmp.lt.s32.totalorder %s762, 3
        %s765 = scalar_select %p764, %s762, 3
        %p766 = scmp.lt.s32.totalorder %s763, 3
        %s767 = scalar_select %p766, %s763, 3
        %s768 = smul.addr %s765, 4
        %s769 = sadd.s32 %s767, %s768
        %s770 = smul.addr %s769, 4
        %s771 = scalar_lea.vmem %s5, %s770
      $region52: #{dinov2_forward.12} parent=47 // pred_fallthru
        _
    $region48: #{dinov2_forward.12} parent=5 // pred_fallthru
      _
  $region6: #{dinov2_forward.12} parent=0 // loop_footer
    %s15 = sadd.s32 1, %s11
  $region7: #{dinov2_forward.12} parent=0 // loop_footer_branch
    %10 = sbr.rel target = $region3
  $region8: #{dinov2_forward.12} parent=0 // loop_exit
    _

// kernel: dinov2_forward.13
$region0: #{dinov2_forward.13}
  #allocation0 [shape = 'u32[]', space=smem, size = 0x4, offset = 0x4, fixed_abs, tag = 'smem constant byte address 0x4 - core index']
  #allocation1 [shape = 'u32[144,128]{1,0:T(1,128)}', space=vmem, size = 0x12000, scoped, tag = 'internal scratch']
  %s0 = inlined_call_operand.vmem [shape: f32[32,128], index: 0, kind: input, shape index: {}, may-alias: {0,5}]
  %s1 = inlined_call_operand.vmem [shape: bf16[32,512], index: 1, kind: input, shape index: {}]
  %s2 = inlined_call_operand.vmem [shape: bf16[512,128], index: 2, kind: input, shape index: {}]
  %s3 = inlined_call_operand.vmem [shape: f32[1,128], index: 3, kind: input, shape index: {}]
  %s4 = inlined_call_operand.vmem [shape: f32[1,128], index: 4, kind: input, shape index: {}]
  %s5 = inlined_call_operand.vmem [shape: f32[32,128], index: 5, kind: output, shape index: {}, may-alias: {0,5}]
  %s6 = sld [smem:[#allocation0]]
  $region53: #{dinov2_forward.13} parent=0
    _
  %s8 = ssub.s32 1, %s6
  %s9 = scalar_select 0, %s8, %s6
  loop: start=0, step=1, limit=4
  $region2: #{dinov2_forward.13} parent=0 // loop_pre_header
    _
  $region3: #{dinov2_forward.13} parent=0 // loop_header
    %s11 = sphi 0, %s15
    %p12 = scmp.ge.s32.totalorder %s11, 4
    %s18 = sphi 0, %s30
    %s19 = sphi 0, %s26
    %s20 = sphi 0, %s18
    %s21 = sphi 0, %s19
    %s22 = sphi 0, %s20
    %s23 = sphi 0, %s21
    %s35 = sphi 0, %s37
    %s38 = sphi 0, %s35
    %s39 = sphi 0, %s38
    %s55 = sphi 0, %s39
    %s61 = sphi 0, %s63
    %s64 = sphi 0, %s61
    %s65 = sphi 0, %s64
    %s81 = sphi 0, %s65
    %s87 = sphi 0, %s89
    %s90 = sphi 0, %s87
    %s91 = sphi 0, %s90
    %s107 = sphi 0, %s91
    %s113 = sphi 0, %s115
    %s116 = sphi 0, %s113
    %s117 = sphi 0, %s116
    %s133 = sphi 0, %s117
    %s139 = sphi 0, %s141
    %s142 = sphi 0, %s139
    %s143 = sphi 0, %s142
    %s159 = sphi 0, %s143
    %s167 = sphi 0, %s169
    %s170 = sphi 0, %s167
    %s171 = sphi 0, %s170
    %s187 = sphi 0, %s171
  $region4: #{dinov2_forward.13} parent=0 // loop_header_branch
    %14 = sbr.rel (%p12) target = $region8
  $region5: #{dinov2_forward.13} parent=0 // loop_body
    %s16 = ssub.s32 %s11, 1
    %s17 = ssub.s32 %s11, 2
    %s24 = sadd.s32 1, %s19
    %p25 = scmp.ge.s32.totalorder %s24, 1
    %s26 = scalar_select %p25, 0, %s24
    %s27 = sadd.s32 1, %s18
    %s28 = scalar_select %p25, %s27, %s18
    %p29 = scmp.ge.s32.totalorder %s28, 2
    %s30 = scalar_select %p29, 0, %s28
    %s31 = ssub.s32 %s18, %s30
    %s32 = ssub.s32 %s19, %s26
    %s33 = sor.u32 %s31, %s32
    %p34 = scmp.eq.s32.totalorder %s33, 0
    %s36 = sadd.s32 %s35, 1
    %s37 = scalar_select %p34, %s35, %s36
    %p40 = pneg %p34
    %p41 = scmp.eq.s32.totalorder %s11, 1
    %p42 = por %p40, %p41
    %p43 = scmp.ne.s32.totalorder %s35, %s38
    %p44 = scmp.eq.s32.totalorder %s11, 0
    %p45 = por %p43, %p44
    %p46 = scmp.ne.s32.totalorder %s35, %s38
    %p47 = scmp.eq.s32.totalorder %s16, 1
    %p48 = por %p46, %p47
    %p49 = scmp.ne.s32.totalorder %s38, %s39
    %p50 = scmp.eq.s32.totalorder %s16, 0
    %p51 = por %p49, %p50
    %p52 = scmp.ne.s32.totalorder %s38, %s39
    %p53 = scmp.eq.s32.totalorder %s17, 1
    %p54 = por %p52, %p53
    %p56 = scmp.ne.s32.totalorder %s39, %s55
    %p57 = scmp.eq.s32.totalorder %s17, 0
    %p58 = por %p56, %p57
    %s59 = ssub.s32 %s18, %s30
    %p60 = scmp.eq.s32.totalorder %s59, 0
    %s62 = sadd.s32 %s61, 1
    %s63 = scalar_select %p60, %s61, %s62
    %p66 = pneg %p60
    %p67 = scmp.eq.s32.totalorder %s11, 1
    %p68 = por %p66, %p67
    %p69 = scmp.ne.s32.totalorder %s61, %s64
    %p70 = scmp.eq.s32.totalorder %s11, 0
    %p71 = por %p69, %p70
    %p72 = scmp.ne.s32.totalorder %s61, %s64
    %p73 = scmp.eq.s32.totalorder %s16, 1
    %p74 = por %p72, %p73
    %p75 = scmp.ne.s32.totalorder %s64, %s65
    %p76 = scmp.eq.s32.totalorder %s16, 0
    %p77 = por %p75, %p76
    %p78 = scmp.ne.s32.totalorder %s64, %s65
    %p79 = scmp.eq.s32.totalorder %s17, 1
    %p80 = por %p78, %p79
    %p82 = scmp.ne.s32.totalorder %s65, %s81
    %p83 = scmp.eq.s32.totalorder %s17, 0
    %p84 = por %p82, %p83
    %s85 = ssub.s32 %s19, %s26
    %p86 = scmp.eq.s32.totalorder %s85, 0
    %s88 = sadd.s32 %s87, 1
    %s89 = scalar_select %p86, %s87, %s88
    %p92 = pneg %p86
    %p93 = scmp.eq.s32.totalorder %s11, 1
    %p94 = por %p92, %p93
    %p95 = scmp.ne.s32.totalorder %s87, %s90
    %p96 = scmp.eq.s32.totalorder %s11, 0
    %p97 = por %p95, %p96
    %p98 = scmp.ne.s32.totalorder %s87, %s90
    %p99 = scmp.eq.s32.totalorder %s16, 1
    %p100 = por %p98, %p99
    %p101 = scmp.ne.s32.totalorder %s90, %s91
    %p102 = scmp.eq.s32.totalorder %s16, 0
    %p103 = por %p101, %p102
    %p104 = scmp.ne.s32.totalorder %s90, %s91
    %p105 = scmp.eq.s32.totalorder %s17, 1
    %p106 = por %p104, %p105
    %p108 = scmp.ne.s32.totalorder %s91, %s107
    %p109 = scmp.eq.s32.totalorder %s17, 0
    %p110 = por %p108, %p109
    %s111 = ssub.s32 %s19, %s26
    %p112 = scmp.eq.s32.totalorder %s111, 0
    %s114 = sadd.s32 %s113, 1
    %s115 = scalar_select %p112, %s113, %s114
    %p118 = pneg %p112
    %p119 = scmp.eq.s32.totalorder %s11, 1
    %p120 = por %p118, %p119
    %p121 = scmp.ne.s32.totalorder %s113, %s116
    %p122 = scmp.eq.s32.totalorder %s11, 0
    %p123 = por %p121, %p122
    %p124 = scmp.ne.s32.totalorder %s113, %s116
    %p125 = scmp.eq.s32.totalorder %s16, 1
    %p126 = por %p124, %p125
    %p127 = scmp.ne.s32.totalorder %s116, %s117
    %p128 = scmp.eq.s32.totalorder %s16, 0
    %p129 = por %p127, %p128
    %p130 = scmp.ne.s32.totalorder %s116, %s117
    %p131 = scmp.eq.s32.totalorder %s17, 1
    %p132 = por %p130, %p131
    %p134 = scmp.ne.s32.totalorder %s117, %s133
    %p135 = scmp.eq.s32.totalorder %s17, 0
    %p136 = por %p134, %p135
    %s137 = ssub.s32 %s19, %s26
    %p138 = scmp.eq.s32.totalorder %s137, 0
    %s140 = sadd.s32 %s139, 1
    %s141 = scalar_select %p138, %s139, %s140
    %p144 = pneg %p138
    %p145 = scmp.eq.s32.totalorder %s11, 1
    %p146 = por %p144, %p145
    %p147 = scmp.ne.s32.totalorder %s139, %s142
    %p148 = scmp.eq.s32.totalorder %s11, 0
    %p149 = por %p147, %p148
    %p150 = scmp.ne.s32.totalorder %s139, %s142
    %p151 = scmp.eq.s32.totalorder %s16, 1
    %p152 = por %p150, %p151
    %p153 = scmp.ne.s32.totalorder %s142, %s143
    %p154 = scmp.eq.s32.totalorder %s16, 0
    %p155 = por %p153, %p154
    %p156 = scmp.ne.s32.totalorder %s142, %s143
    %p157 = scmp.eq.s32.totalorder %s17, 1
    %p158 = por %p156, %p157
    %p160 = scmp.ne.s32.totalorder %s143, %s159
    %p161 = scmp.eq.s32.totalorder %s17, 0
    %p162 = por %p160, %p161
    %s163 = ssub.s32 %s18, %s30
    %s164 = ssub.s32 %s19, %s26
    %s165 = sor.u32 %s163, %s164
    %p166 = scmp.eq.s32.totalorder %s165, 0
    %s168 = sadd.s32 %s167, 1
    %s169 = scalar_select %p166, %s167, %s168
    %p172 = pneg %p166
    %p173 = scmp.eq.s32.totalorder %s11, 1
    %p174 = por %p172, %p173
    %p175 = scmp.ne.s32.totalorder %s167, %s170
    %p176 = scmp.eq.s32.totalorder %s11, 0
    %p177 = por %p175, %p176
    %p178 = scmp.ne.s32.totalorder %s167, %s170
    %p179 = scmp.eq.s32.totalorder %s16, 1
    %p180 = por %p178, %p179
    %p181 = scmp.ne.s32.totalorder %s170, %s171
    %p182 = scmp.eq.s32.totalorder %s16, 0
    %p183 = por %p181, %p182
    %p184 = scmp.ne.s32.totalorder %s170, %s171
    %p185 = scmp.eq.s32.totalorder %s17, 1
    %p186 = por %p184, %p185
    %p188 = scmp.ne.s32.totalorder %s171, %s187
    %p189 = scmp.eq.s32.totalorder %s17, 0
    %p190 = por %p188, %p189
    %p191 = scmp.le.s32.totalorder 1, %s11
    %p192 = scmp.lt.s32.totalorder %s11, 3
    %p193 = pnand %p191, %p192
    %p194 = pneg %p193
    // Predicated region
    $region9: #{dinov2_forward.13} parent=5 // pred_check
      _
    $region10: #{dinov2_forward.13} parent=5 // pred_check_branch
      %196 = sbr.rel (%p193) target = $region12
    $region11: #{dinov2_forward.13} parent=5 // pred_region
      %s197 = ssub.s32 %s11, 1
      // Predicated region
      $region13: #{dinov2_forward.13} parent=11 // pred_check
        %p198 = pneg %p103
      $region14: #{dinov2_forward.13} parent=11 // pred_check_branch
        %200 = sbr.rel (%p198) target = $region16
      $region15: #{dinov2_forward.13} parent=11 // pred_region
        %p201 = scmp.lt.s32.totalorder %s21, 0
        %s202 = scalar_select %p201, %s21, 0
        %s203 = smul.addr %s202, 4
        %s204 = scalar_lea.vmem %s2, %s203
      $region16: #{dinov2_forward.13} parent=11 // pred_fallthru
        _
      // Predicated region
      $region17: #{dinov2_forward.13} parent=11 // pred_check
        %p205 = pneg %p129
      $region18: #{dinov2_forward.13} parent=11 // pred_check_branch
        %207 = sbr.rel (%p205) target = $region20
      $region19: #{dinov2_forward.13} parent=11 // pred_region
        %p208 = scmp.lt.s32.totalorder %s21, 0
        %s209 = scalar_select %p208, %s21, 0
        %s210 = scalar_lea.vmem %s3, %s209
      $region20: #{dinov2_forward.13} parent=11 // pred_fallthru
        _
      // Predicated region
      $region21: #{dinov2_forward.13} parent=11 // pred_check
        %p211 = pneg %p155
      $region22: #{dinov2_forward.13} parent=11 // pred_check_branch
        %213 = sbr.rel (%p211) target = $region24
      $region23: #{dinov2_forward.13} parent=11 // pred_region
        %p214 = scmp.lt.s32.totalorder %s21, 0
        %s215 = scalar_select %p214, %s21, 0
        %s216 = scalar_lea.vmem %s4, %s215
      $region24: #{dinov2_forward.13} parent=11 // pred_fallthru
        _
    $region12: #{dinov2_forward.13} parent=5 // pred_fallthru
      _
    %p217 = scmp.lt.s32.totalorder %s11, 2
    // Predicated region
    $region25: #{dinov2_forward.13} parent=5 // pred_check
      %p218 = pneg %p217
    $region26: #{dinov2_forward.13} parent=5 // pred_check_branch
      %220 = sbr.rel (%p218) target = $region28
    $region27: #{dinov2_forward.13} parent=5 // pred_region
      // Predicated region
      $region29: #{dinov2_forward.13} parent=27 // pred_check
        %p221 = pneg %p45
      $region30: #{dinov2_forward.13} parent=27 // pred_check_branch
        %223 = sbr.rel (%p221) target = $region32
      $region31: #{dinov2_forward.13} parent=27 // pred_region
        %s224 = smul.u32 2, %s18
        %p225 = scmp.lt.s32.totalorder %s224, 3
        %s226 = scalar_select %p225, %s224, 3
        %p227 = scmp.lt.s32.totalorder %s19, 0
        %s228 = scalar_select %p227, %s19, 0
        %s229 = sadd.s32 %s228, %s226
        %s230 = smul.addr %s229, 8
        %s231 = scalar_lea.vmem %s0, %s230
        %s232 = smul.u32 2, %s18
      $region32: #{dinov2_forward.13} parent=27 // pred_fallthru
        _
      // Predicated region
      $region33: #{dinov2_forward.13} parent=27 // pred_check
        %p233 = pneg %p71
      $region34: #{dinov2_forward.13} parent=27 // pred_check_branch
        %235 = sbr.rel (%p233) target = $region36
      $region35: #{dinov2_forward.13} parent=27 // pred_region
        %s236 = smul.u32 2, %s18
        %p237 = scmp.lt.s32.totalorder %s236, 3
        %s238 = scalar_select %p237, %s236, 3
        %s239 = smul.addr %s238, 4
        %s240 = smul.addr %s239, 4
        %s241 = scalar_lea.vmem %s1, %s240
        %s242 = smul.u32 2, %s18
      $region36: #{dinov2_forward.13} parent=27 // pred_fallthru
        _
    $region28: #{dinov2_forward.13} parent=5 // pred_fallthru
      _
    %p243 = scmp.le.s32.totalorder 1, %s11
    %p244 = scmp.lt.s32.totalorder %s11, 3
    %p245 = pnand %p243, %p244
    %p246 = pneg %p245
    // Predicated region
    $region37: #{dinov2_forward.13} parent=5 // pred_check
      _
    $region38: #{dinov2_forward.13} parent=5 // pred_check_branch
      %248 = sbr.rel (%p245) target = $region40
    $region39: #{dinov2_forward.13} parent=5 // pred_region
      %s249 = ssub.s32 %s11, 1
      %s250 = smul.u32 2, %s20
      %p251 = scmp.lt.s32.totalorder %s250, 3
      %s252 = scalar_select %p251, %s250, 3
      %p253 = scmp.lt.s32.totalorder %s21, 0
      %s254 = scalar_select %p253, %s21, 0
      %s255 = sadd.s32 %s254, %s252
      %s256 = smul.addr %s255, 8
      %s257 = scalar_lea.vmem %s0, %s256
      %p258 = pneg %p51
      %p259 = pneg %p48
      %s260 = smul.u32 2, %s20
      %p261 = scmp.lt.s32.totalorder %s260, 3
      %s262 = scalar_select %p261, %s260, 3
      %s263 = smul.addr %s262, 4
      %s264 = smul.addr %s263, 4
      %s265 = scalar_lea.vmem %s1, %s264
      %p266 = pneg %p77
      %p267 = pneg %p74
      %p268 = scmp.lt.s32.totalorder %s21, 0
      %s269 = scalar_select %p268, %s21, 0
      %s270 = smul.addr %s269, 4
      %s271 = scalar_lea.vmem %s2, %s270
      %p272 = pneg %p103
      %p273 = pneg %p100
      %p274 = scmp.lt.s32.totalorder %s21, 0
      %s275 = scalar_select %p274, %s21, 0
      %s276 = scalar_lea.vmem %s3, %s275
      %p277 = pneg %p129
      %p278 = pneg %p126
      %p279 = scmp.lt.s32.totalorder %s21, 0
      %s280 = scalar_select %p279, %s21, 0
      %s281 = scalar_lea.vmem %s4, %s280
      %p282 = pneg %p155
      %p283 = pneg %p152
      %p284 = pneg %p183
      %p285 = pneg %p180
      %s286 = smul.u32 2, %s20
      %p287 = scmp.lt.s32.totalorder %s286, 3
      %s288 = scalar_select %p287, %s286, 3
      %p289 = scmp.lt.s32.totalorder %s21, 0
      %s290 = scalar_select %p289, %s21, 0
      %s291 = sadd.s32 %s290, %s288
      %s292 = smul.addr %s291, 8
      %s293 = scalar_lea.vmem %s5, %s292
      %s294 = smul.u32 2, %s20
      %p295 = scmp.lt.s32.totalorder %s294, 3
      %s296 = scalar_select %p295, %s294, 3
      %p297 = scmp.lt.s32.totalorder %s21, 0
      %s298 = scalar_select %p297, %s21, 0
      %s299 = sadd.s32 %s298, %s296
      %s300 = smul.addr %s299, 8
      %s301 = scalar_lea.vmem %s0, %s300
      %s302 = smul.u32 2, %s20
      %s303 = smul.u32 2, %s20
      %p304 = scmp.lt.s32.totalorder %s303, 3
      %s305 = scalar_select %p304, %s303, 3
      %s306 = smul.addr %s305, 4
      %s307 = smul.addr %s306, 4
      %s308 = scalar_lea.vmem %s1, %s307
      %s309 = smul.u32 2, %s20
      %p310 = scmp.lt.s32.totalorder %s21, 0
      %s311 = scalar_select %p310, %s21, 0
      %s312 = smul.addr %s311, 4
      %s313 = scalar_lea.vmem %s2, %s312
      %p314 = scmp.lt.s32.totalorder %s21, 0
      %s315 = scalar_select %p314, %s21, 0
      %s316 = scalar_lea.vmem %s3, %s315
      %p317 = scmp.lt.s32.totalorder %s21, 0
      %s318 = scalar_select %p317, %s21, 0
      %s319 = scalar_lea.vmem %s4, %s318
      %s320 = smul.u32 2, %s20
      %p321 = scmp.lt.s32.totalorder %s320, 3
      %s322 = scalar_select %p321, %s320, 3
      %p323 = scmp.lt.s32.totalorder %s21, 0
      %s324 = scalar_select %p323, %s21, 0
      %s325 = sadd.s32 %s324, %s322
      %s326 = smul.addr %s325, 8
      %s327 = scalar_lea.vmem %s5, %s326
      %s328 = smul.u32 2, %s20
      %v330 = vld [vmem:[%s308] sm:$0xff]
      %v331 = vld [vmem:[%s308 + $0x8] sm:$0xff]
      %v332 = vld [vmem:[%s308 + $0x10] sm:$0xff]
      %v333 = vld [vmem:[%s308 + $0x18] sm:$0xff]
      %v334 = vld [vmem:[%s313] sm:$0xf]
      %v335 = vld [vmem:[%s313 + $0x4] sm:$0xf]
      %v336 = vld [vmem:[%s313 + $0x8] sm:$0xf]
      %v337 = vld [vmem:[%s313 + $0xc] sm:$0xf]
      %v338 = vld [vmem:[%s313 + $0x10] sm:$0xf]
      %v339 = vld [vmem:[%s313 + $0x14] sm:$0xf]
      %v340 = vld [vmem:[%s313 + $0x18] sm:$0xf]
      %v341 = vld [vmem:[%s313 + $0x1c] sm:$0xf]
      %v342 = vld [vmem:[%s313 + $0x20] sm:$0xf]
      %v343 = vld [vmem:[%s313 + $0x24] sm:$0xf]
      %v344 = vld [vmem:[%s313 + $0x28] sm:$0xf]
      %v345 = vld [vmem:[%s313 + $0x2c] sm:$0xf]
      %v346 = vld [vmem:[%s313 + $0x30] sm:$0xf]
      %v347 = vld [vmem:[%s313 + $0x34] sm:$0xf]
      %v348 = vld [vmem:[%s313 + $0x38] sm:$0xf]
      %v349 = vld [vmem:[%s313 + $0x3c] sm:$0xf]
      %v350 = vld [vmem:[%s313 + $0x40] sm:$0xf]
      %v351 = vld [vmem:[%s313 + $0x44] sm:$0xf]
      %v352 = vld [vmem:[%s313 + $0x48] sm:$0xf]
      %v353 = vld [vmem:[%s313 + $0x4c] sm:$0xf]
      %v354 = vld [vmem:[%s313 + $0x50] sm:$0xf]
      %v355 = vld [vmem:[%s313 + $0x54] sm:$0xf]
      %v356 = vld [vmem:[%s313 + $0x58] sm:$0xf]
      %v357 = vld [vmem:[%s313 + $0x5c] sm:$0xf]
      %v358 = vld [vmem:[%s313 + $0x60] sm:$0xf]
      %v359 = vld [vmem:[%s313 + $0x64] sm:$0xf]
      %v360 = vld [vmem:[%s313 + $0x68] sm:$0xf]
      %v361 = vld [vmem:[%s313 + $0x6c] sm:$0xf]
      %v362 = vld [vmem:[%s313 + $0x70] sm:$0xf]
      %v363 = vld [vmem:[%s313 + $0x74] sm:$0xf]
      %v364 = vld [vmem:[%s313 + $0x78] sm:$0xf]
      %v365 = vld [vmem:[%s313 + $0x7c] sm:$0xf]
      %v366 = vld [vmem:[%s313 + $0x80] sm:$0xf]
      %v367 = vld [vmem:[%s313 + $0x84] sm:$0xf]
      %v368 = vld [vmem:[%s313 + $0x88] sm:$0xf]
      %v369 = vld [vmem:[%s313 + $0x8c] sm:$0xf]
      %v370 = vld [vmem:[%s313 + $0x90] sm:$0xf]
      %v371 = vld [vmem:[%s313 + $0x94] sm:$0xf]
      %v372 = vld [vmem:[%s313 + $0x98] sm:$0xf]
      %v373 = vld [vmem:[%s313 + $0x9c] sm:$0xf]
      %v374 = vld [vmem:[%s313 + $0xa0] sm:$0xf]
      %v375 = vld [vmem:[%s313 + $0xa4] sm:$0xf]
      %v376 = vld [vmem:[%s313 + $0xa8] sm:$0xf]
      %v377 = vld [vmem:[%s313 + $0xac] sm:$0xf]
      %v378 = vld [vmem:[%s313 + $0xb0] sm:$0xf]
      %v379 = vld [vmem:[%s313 + $0xb4] sm:$0xf]
      %v380 = vld [vmem:[%s313 + $0xb8] sm:$0xf]
      %v381 = vld [vmem:[%s313 + $0xbc] sm:$0xf]
      %v382 = vld [vmem:[%s313 + $0xc0] sm:$0xf]
      %v383 = vld [vmem:[%s313 + $0xc4] sm:$0xf]
      %v384 = vld [vmem:[%s313 + $0xc8] sm:$0xf]
      %v385 = vld [vmem:[%s313 + $0xcc] sm:$0xf]
      %v386 = vld [vmem:[%s313 + $0xd0] sm:$0xf]
      %v387 = vld [vmem:[%s313 + $0xd4] sm:$0xf]
      %v388 = vld [vmem:[%s313 + $0xd8] sm:$0xf]
      %v389 = vld [vmem:[%s313 + $0xdc] sm:$0xf]
      %v390 = vld [vmem:[%s313 + $0xe0] sm:$0xf]
      %v391 = vld [vmem:[%s313 + $0xe4] sm:$0xf]
      %v392 = vld [vmem:[%s313 + $0xe8] sm:$0xf]
      %v393 = vld [vmem:[%s313 + $0xec] sm:$0xf]
      %v394 = vld [vmem:[%s313 + $0xf0] sm:$0xf]
      %v395 = vld [vmem:[%s313 + $0xf4] sm:$0xf]
      %v396 = vld [vmem:[%s313 + $0xf8] sm:$0xf]
      %v397 = vld [vmem:[%s313 + $0xfc] sm:$0xf]
      %v398 = vld [vmem:[%s316] sm:$0x1]
      %v400 = vlaneseq
      %v401 = vshrl.u32 %v400, 7
      %v402 = vsub.s32 0, %v401
      %v403 = vrot.slane %v398, %v402
      %v409 = vunpack.c.l.b16 %v330
      %v410 = vunpack.c.h.b16 %v330
      %v411 = vunpack.c.l.b16 %v331
      %v412 = vunpack.c.h.b16 %v331
      %v413 = vunpack.c.l.b16 %v332
      %v414 = vunpack.c.h.b16 %v332
      %v415 = vunpack.c.l.b16 %v333
      %v416 = vunpack.c.h.b16 %v333
      %v417 = vpack.c.b16 %v413, %v409
      %v418 = vpack.c.b16 %v414, %v410
      %v419 = vpack.c.b16 %v415, %v411
      %v420 = vpack.c.b16 %v416, %v412
      %v489 = vunpack.c.l.b16 %v334
      %v490 = vunpack.c.l.b16 %v335
      %v491 = vunpack.c.l.b16 %v336
      %v492 = vunpack.c.l.b16 %v337
      %v493 = vunpack.c.l.b16 %v338
      %v494 = vunpack.c.l.b16 %v339
      %v495 = vunpack.c.l.b16 %v340
      %v496 = vunpack.c.l.b16 %v341
      %v497 = vunpack.c.l.b16 %v342
      %v498 = vunpack.c.l.b16 %v343
      %v499 = vunpack.c.l.b16 %v344
      %v500 = vunpack.c.l.b16 %v345
      %v501 = vunpack.c.l.b16 %v346
      %v502 = vunpack.c.l.b16 %v347
      %v503 = vunpack.c.l.b16 %v348
      %v504 = vunpack.c.l.b16 %v349
      %v505 = vunpack.c.l.b16 %v350
      %v506 = vunpack.c.l.b16 %v351
      %v507 = vunpack.c.l.b16 %v352
      %v508 = vunpack.c.l.b16 %v353
      %v509 = vunpack.c.l.b16 %v354
      %v510 = vunpack.c.l.b16 %v355
      %v511 = vunpack.c.l.b16 %v356
      %v512 = vunpack.c.l.b16 %v357
      %v513 = vunpack.c.l.b16 %v358
      %v514 = vunpack.c.l.b16 %v359
      %v515 = vunpack.c.l.b16 %v360
      %v516 = vunpack.c.l.b16 %v361
      %v517 = vunpack.c.l.b16 %v362
      %v518 = vunpack.c.l.b16 %v363
      %v519 = vunpack.c.l.b16 %v364
      %v520 = vunpack.c.l.b16 %v365
      %v521 = vunpack.c.l.b16 %v366
      %v522 = vunpack.c.l.b16 %v367
      %v523 = vunpack.c.l.b16 %v368
      %v524 = vunpack.c.l.b16 %v369
      %v525 = vunpack.c.l.b16 %v370
      %v526 = vunpack.c.l.b16 %v371
      %v527 = vunpack.c.l.b16 %v372
      %v528 = vunpack.c.l.b16 %v373
      %v529 = vunpack.c.l.b16 %v374
      %v530 = vunpack.c.l.b16 %v375
      %v531 = vunpack.c.l.b16 %v376
      %v532 = vunpack.c.l.b16 %v377
      %v533 = vunpack.c.l.b16 %v378
      %v534 = vunpack.c.l.b16 %v379
      %v535 = vunpack.c.l.b16 %v380
      %v536 = vunpack.c.l.b16 %v381
      %v537 = vunpack.c.l.b16 %v382
      %v538 = vunpack.c.l.b16 %v383
      %v539 = vunpack.c.l.b16 %v384
      %v540 = vunpack.c.l.b16 %v385
      %v541 = vunpack.c.l.b16 %v386
      %v542 = vunpack.c.l.b16 %v387
      %v543 = vunpack.c.l.b16 %v388
      %v544 = vunpack.c.l.b16 %v389
      %v545 = vunpack.c.l.b16 %v390
      %v546 = vunpack.c.l.b16 %v391
      %v547 = vunpack.c.l.b16 %v392
      %v548 = vunpack.c.l.b16 %v393
      %v549 = vunpack.c.l.b16 %v394
      %v550 = vunpack.c.l.b16 %v395
      %v551 = vunpack.c.l.b16 %v396
      %v552 = vunpack.c.l.b16 %v397
      %v553 = vpack.c.b16 %v490, %v489
      %v554 = vpack.c.b16 %v492, %v491
      %v555 = vpack.c.b16 %v494, %v493
      %v556 = vpack.c.b16 %v496, %v495
      %v557 = vpack.c.b16 %v498, %v497
      %v558 = vpack.c.b16 %v500, %v499
      %v559 = vpack.c.b16 %v502, %v501
      %v560 = vpack.c.b16 %v504, %v503
      %v561 = vpack.c.b16 %v506, %v505
      %v562 = vpack.c.b16 %v508, %v507
      %v563 = vpack.c.b16 %v510, %v509
      %v564 = vpack.c.b16 %v512, %v511
      %v565 = vpack.c.b16 %v514, %v513
      %v566 = vpack.c.b16 %v516, %v515
      %v567 = vpack.c.b16 %v518, %v517
      %v568 = vpack.c.b16 %v520, %v519
      %v569 = vpack.c.b16 %v522, %v521
      %v570 = vpack.c.b16 %v524, %v523
      %v571 = vpack.c.b16 %v526, %v525
      %v572 = vpack.c.b16 %v528, %v527
      %v573 = vpack.c.b16 %v530, %v529
      %v574 = vpack.c.b16 %v532, %v531
      %v575 = vpack.c.b16 %v534, %v533
      %v576 = vpack.c.b16 %v536, %v535
      %v577 = vpack.c.b16 %v538, %v537
      %v578 = vpack.c.b16 %v540, %v539
      %v579 = vpack.c.b16 %v542, %v541
      %v580 = vpack.c.b16 %v544, %v543
      %v581 = vpack.c.b16 %v546, %v545
      %v582 = vpack.c.b16 %v548, %v547
      %v583 = vpack.c.b16 %v550, %v549
      %v584 = vpack.c.b16 %v552, %v551
      %617 = vmatprep.subr.bf16.mxu0 0
      %618 = vmatpush1.bf16.msra.mxu0 %v560
      %619 = vmatprep.subr.bf16.mxu0 0
      %620 = vmatpush1.bf16.msra.mxu0 %v559
      %621 = vmatprep.subr.bf16.mxu0 0
      %622 = vmatpush1.bf16.msra.mxu0 %v558
      %623 = vmatprep.subr.bf16.mxu0 0
      %624 = vmatpush1.bf16.msra.mxu0 %v557
      %625 = vmatprep.subr.bf16.mxu0 0
      %626 = vmatpush1.bf16.msra.mxu0 %v556
      %627 = vmatprep.subr.bf16.mxu0 0
      %628 = vmatpush1.bf16.msra.mxu0 %v555
      %629 = vmatprep.subr.bf16.mxu0 0
      %630 = vmatpush1.bf16.msra.mxu0 %v554
      %631 = vmatprep.subr.bf16.mxu0 0
      %632 = vmatpush1.bf16.msra.mxu0 %v553
      %633 = vmatprep.subr.bf16.mxu0 0
      %634 = vmatpush2.bf16.msra.mxu0 %v568
      %635 = vmatprep.subr.bf16.mxu0 0
      %636 = vmatpush2.bf16.msra.mxu0 %v567
      %637 = vmatprep.subr.bf16.mxu0 0
      %638 = vmatpush2.bf16.msra.mxu0 %v566
      %639 = vmatprep.subr.bf16.mxu0 0
      %640 = vmatpush2.bf16.msra.mxu0 %v565
      %641 = vmatprep.subr.bf16.mxu0 0
      %642 = vmatpush2.bf16.msra.mxu0 %v564
      %643 = vmatprep.subr.bf16.mxu0 0
      %644 = vmatpush2.bf16.msra.mxu0 %v563
      %645 = vmatprep.subr.bf16.mxu0 0
      %646 = vmatpush2.bf16.msra.mxu0 %v562
      %647 = vmatprep.subr.bf16.mxu0 0
      %648 = vmatpush2.bf16.msra.mxu0 %v561
      %649 = vmatprep.mubr.bf16.mxu0 %v418
      %650 = vmatmul.mubr.bf16.gmra.mxu0 %v417
      %v651 = vpop.f32.mrf.mxu0
      %v652 = vadd.f32 %v403, %v651
      %v653 = vpop.f32.mrf.mxu0
      %v654 = vpop.f32.mrf.mxu0
      %v655 = vadd.f32 %v403, %v654
      %v656 = vpop.f32.mrf.mxu0
      %657 = vdwg.mxu0
      %658 = vmatprep.subr.bf16.mxu0 0
      %659 = vmatpush1.bf16.msra.mxu0 %v576
      %660 = vmatprep.subr.bf16.mxu0 0
      %661 = vmatpush1.bf16.msra.mxu0 %v575
      %662 = vmatprep.subr.bf16.mxu0 0
      %663 = vmatpush1.bf16.msra.mxu0 %v574
      %664 = vmatprep.subr.bf16.mxu0 0
      %665 = vmatpush1.bf16.msra.mxu0 %v573
      %666 = vmatprep.subr.bf16.mxu0 0
      %667 = vmatpush1.bf16.msra.mxu0 %v572
      %668 = vmatprep.subr.bf16.mxu0 0
      %669 = vmatpush1.bf16.msra.mxu0 %v571
      %670 = vmatprep.subr.bf16.mxu0 0
      %671 = vmatpush1.bf16.msra.mxu0 %v570
      %672 = vmatprep.subr.bf16.mxu0 0
      %673 = vmatpush1.bf16.msra.mxu0 %v569
      %674 = vmatprep.subr.bf16.mxu0 0
      %675 = vmatpush2.bf16.msra.mxu0 %v584
      %676 = vmatprep.subr.bf16.mxu0 0
      %677 = vmatpush2.bf16.msra.mxu0 %v583
      %678 = vmatprep.subr.bf16.mxu0 0
      %679 = vmatpush2.bf16.msra.mxu0 %v582
      %680 = vmatprep.subr.bf16.mxu0 0
      %681 = vmatpush2.bf16.msra.mxu0 %v581
      %682 = vmatprep.subr.bf16.mxu0 0
      %683 = vmatpush2.bf16.msra.mxu0 %v580
      %684 = vmatprep.subr.bf16.mxu0 0
      %685 = vmatpush2.bf16.msra.mxu0 %v579
      %686 = vmatprep.subr.bf16.mxu0 0
      %687 = vmatpush2.bf16.msra.mxu0 %v578
      %688 = vmatprep.subr.bf16.mxu0 0
      %689 = vmatpush2.bf16.msra.mxu0 %v577
      %690 = vmatprep.mubr.bf16.mxu0 %v420
      %691 = vmatmul.mubr.bf16.gmra.mxu0 %v419
      %v692 = vpop.f32.mrf.mxu0
      %v693 = vadd.f32 %v652, %v692
      %v694 = vpop.f32.mrf.mxu0
      %v695 = vpop.f32.mrf.mxu0
      %v696 = vadd.f32 %v655, %v695
      %v697 = vpop.f32.mrf.mxu0
      %698 = vdwg.mxu0
      %v699 = vld [vmem:[%s301] sm:$0xff]
      %v700 = vld [vmem:[%s301 + $0x8] sm:$0xff]
      %v701 = vld [vmem:[%s319] sm:$0x1]
      %v703 = vlaneseq
      %v704 = vshrl.u32 %v703, 7
      %v705 = vsub.s32 0, %v704
      %v706 = vrot.slane %v701, %v705
      %v708 = vmul.f32 %v693, %v706
      %v709 = vmul.f32 %v696, %v706
      %v710 = vadd.f32 %v699, %v708
      %v711 = vadd.f32 %v700, %v709
      %712 = vst [vmem:[%s327] sm:$0xff] %v710
      %713 = vst [vmem:[%s327 + $0x8] sm:$0xff] %v711
      %s714 = smul.u32 2, %s20
      %p715 = scmp.lt.s32.totalorder %s714, 3
      %s716 = scalar_select %p715, %s714, 3
      %p717 = scmp.lt.s32.totalorder %s21, 0
      %s718 = scalar_select %p717, %s21, 0
      %s719 = sadd.s32 %s718, %s716
      %s720 = smul.addr %s719, 8
      %s721 = scalar_lea.vmem %s5, %s720
      // Predicated region
      $region41: #{dinov2_forward.13} parent=39 // pred_check
        %p722 = pneg %p180
      $region42: #{dinov2_forward.13} parent=39 // pred_check_branch
        %724 = sbr.rel (%p722) target = $region44
      $region43: #{dinov2_forward.13} parent=39 // pred_region
        %s725 = smul.u32 2, %s20
      $region44: #{dinov2_forward.13} parent=39 // pred_fallthru
        _
    $region40: #{dinov2_forward.13} parent=5 // pred_fallthru
      _
    %p726 = scmp.le.s32.totalorder 2, %s11
    // Predicated region
    $region45: #{dinov2_forward.13} parent=5 // pred_check
      %p727 = pneg %p726
    $region46: #{dinov2_forward.13} parent=5 // pred_check_branch
      %729 = sbr.rel (%p727) target = $region48
    $region47: #{dinov2_forward.13} parent=5 // pred_region
      %s730 = ssub.s32 %s11, 2
      // Predicated region
      $region49: #{dinov2_forward.13} parent=47 // pred_check
        %p731 = pneg %p186
      $region50: #{dinov2_forward.13} parent=47 // pred_check_branch
        %733 = sbr.rel (%p731) target = $region52
      $region51: #{dinov2_forward.13} parent=47 // pred_region
        %s734 = smul.u32 2, %s22
        %p735 = scmp.lt.s32.totalorder %s734, 3
        %s736 = scalar_select %p735, %s734, 3
        %p737 = scmp.lt.s32.totalorder %s23, 0
        %s738 = scalar_select %p737, %s23, 0
        %s739 = sadd.s32 %s738, %s736
        %s740 = smul.addr %s739, 8
        %s741 = scalar_lea.vmem %s5, %s740
      $region52: #{dinov2_forward.13} parent=47 // pred_fallthru
        _
    $region48: #{dinov2_forward.13} parent=5 // pred_fallthru
      _
  $region6: #{dinov2_forward.13} parent=0 // loop_footer
    %s15 = sadd.s32 1, %s11
  $region7: #{dinov2_forward.13} parent=0 // loop_footer_branch
    %10 = sbr.rel target = $region3
  $region8: #{dinov2_forward.13} parent=0 // loop_exit
    _

</llo_original>
